<compile_context>
chip_gen: v6e
topology: v6e:2x2x1
jax: 0.10.0
libtpu: 0.0.40
codegen_flags: <defaults>
</compile_context>

<pallas_src>
import numpy as np
import jax
import jax.numpy as jnp
from jax.experimental import pallas as pl
from jax.experimental.pallas import tpu as pltpu


def _sigmoid(x):
    # Explicit exp-based sigmoid (EUP); saturates correctly for large |x|.
    return 1.0 / (1.0 + jnp.exp(-x))


def _se_block_kernel(xs_ref, w1t_ref, w2_ref, big_ref, out_ref):
    """Fused SEBlock.

    xs_ref  : (1, K, 1)       flattened feat_small column for this batch element
    w1t_ref : (K, C_out)      pool + 4x4-conv folded weight, transposed (resident)
    w2_ref  : (C_out, C_out)  1x1-conv weight, W2[p, o] (resident)
    big_ref : (1, C_out, T)   one spatial tile of feat_big (NCHW, HW flattened)
    out_ref : (1, C_out, T)
    """
    xs = xs_ref[0].astype(jnp.float32)                     # (K, 1) column
    w1t = w1t_ref[...].astype(jnp.float32)                 # (K, C_out)
    # FC1 (pool folded in): y1[o] = sum_k W1_eff[o, k] * xs[k]  -> row
    y1 = jnp.sum(w1t * xs, axis=0, keepdims=True)          # (1, C_out)
    h = y1 * _sigmoid(y1)                                  # Swish
    w2 = w2_ref[...].astype(jnp.float32)                   # (C_out, C_out)
    # FC2 (1x1 conv): y2[p] = sum_o W2[p, o] * h[o]  -> column (no relayout)
    y2 = jnp.sum(w2 * h, axis=1, keepdims=True)            # (C_out, 1)
    # Gate in the output dtype: bf16 feat_big stays bf16 in the hot path.
    gate = _sigmoid(y2).astype(out_ref.dtype)              # (C_out, 1)
    out_ref[...] = (big_ref[...] * gate[None]).astype(out_ref.dtype)


def _default_tile_budget():
    """Per-pipeline-buffer tile budget derived from the chip's VMEM size."""
    vmem = 64 << 20                       # conservative fallback (v7x per-TC VMEM)
    try:
        info = pltpu.get_tpu_info()
        vmem = int(getattr(info, "vmem_capacity_bytes", vmem))
    except Exception:
        pass
    # ~vmem/16 per buffer (in + out, double-buffered -> ~vmem/4 total pipeline
    # buffers), clamped to the 2-6 MiB range suggested by the step-overhead
    # roofline (v7x ~4 MiB, v6e/v5e up to 6 MiB with an explicit vmem limit).
    return int(min(6 << 20, max(2 << 20, vmem // 16)))


def _choose_tile(n_lanes, c_out, itemsize, budget_bytes):
    """Spatial tile T (lanes).  Either the full extent (fits budget / too small
    to tile) or a 128-aligned tile; the trailing block is padded/masked by
    Pallas, so T need not divide n_lanes."""
    if c_out * n_lanes * itemsize <= budget_bytes or n_lanes < 256:
        return n_lanes
    t = (budget_bytes // (c_out * itemsize)) // 128 * 128
    return int(max(128, min(t, ((n_lanes + 127) // 128) * 128)))


def se_block_pallas(feat_small, feat_big, w1t_eff, w2, *, tile_budget_bytes=None):
    """out = feat_big * SE-gate(feat_small), one fused Pallas call."""
    B, C_in, Hs, Ws = feat_small.shape
    Bb, C_out, Hb, Wb = feat_big.shape
    assert B == Bb
    K = C_in * Hs * Ws
    N = Hb * Wb
    assert w1t_eff.shape == (K, C_out)
    assert w2.shape == (C_out, C_out)

    if tile_budget_bytes is None:
        tile_budget_bytes = _default_tile_budget()

    xs = feat_small.reshape(B, K, 1)       # row-major flatten -> column layout
    xb = feat_big.reshape(B, C_out, N)

    itemsize = feat_big.dtype.itemsize
    T = _choose_tile(N, C_out, itemsize, tile_budget_bytes)
    n_tiles = pl.cdiv(N, T)
    grid = (B, n_tiles)

    # Explicit VMEM plan: feat_big in+out double-buffered + resident weights.
    tile_bytes = C_out * T * itemsize
    resident_bytes = (K * xs.dtype.itemsize
                      + K * C_out * w1t_eff.dtype.itemsize
                      + C_out * C_out * w2.dtype.itemsize)
    vmem_limit = int(min(48 << 20,
                         max(32 << 20,
                             4 * tile_bytes + 2 * resident_bytes + (8 << 20))))

    cost = pl.CostEstimate(
        flops=int(B * n_tiles * (2 * K * C_out + 2 * C_out * C_out)
                  + B * C_out * N),
        transcendentals=int(B * n_tiles * 3 * C_out),
        bytes_accessed=int((B * K + K * C_out + C_out * C_out) * 4
                           + 2 * B * C_out * N * itemsize),
    )

    out = pl.pallas_call(
        _se_block_kernel,
        out_shape=jax.ShapeDtypeStruct((B, C_out, N), feat_big.dtype),
        grid_spec=pltpu.PrefetchScalarGridSpec(
            num_scalar_prefetch=0,
            grid=grid,
            in_specs=[
                pl.BlockSpec((1, K, 1), lambda b, j: (b, 0, 0)),       # feat_small
                pl.BlockSpec((K, C_out), lambda b, j: (0, 0)),         # W1_eff^T
                pl.BlockSpec((C_out, C_out), lambda b, j: (0, 0)),     # W2
                pl.BlockSpec((1, C_out, T), lambda b, j: (b, 0, j)),   # feat_big
            ],
            out_specs=pl.BlockSpec((1, C_out, T), lambda b, j: (b, 0, j)),
        ),
        compiler_params=pltpu.CompilerParams(
            dimension_semantics=("parallel", "parallel"),
            vmem_limit_bytes=vmem_limit),
        cost_estimate=cost,
    )(xs, w1t_eff, w2, xb)
    return out.reshape(B, C_out, Hb, Wb)


# ----------------------- host-side weight preparation -----------------------

def _spectral_normalize(w):
    """Forward effect of torch spectral_norm: W / sigma_max(W.reshape(out, -1))."""
    w = np.asarray(w, dtype=np.float64)
    sigma = np.linalg.svd(w.reshape(w.shape[0], -1), compute_uv=False)[0]
    return w / sigma


def _adaptive_pool_matrix(in_size, out_size):
    """Matrix P such that P @ x == AdaptiveAvgPool1d(out_size)(x)."""
    p = np.zeros((out_size, in_size), dtype=np.float64)
    for i in range(out_size):
        s = (i * in_size) // out_size
        e = -(-((i + 1) * in_size) // out_size)   # ceil
        p[i, s:e] = 1.0 / (e - s)
    return p


def fold_se_weights(w1_conv, w2_conv, h_small, w_small):
    """Spectral-normalize both conv weights and fold AdaptiveAvgPool2d(4) +
    the 4x4 valid conv into a single (K, C_out) matrix (transposed for the
    column-layout gate path)."""
    w1_sn = _spectral_normalize(w1_conv)              # (C_out, C_in, 4, 4), f64
    w2_sn = _spectral_normalize(w2_conv)              # (C_out, C_out, 1, 1), f64
    ph = _adaptive_pool_matrix(h_small, 4)
    pw = _adaptive_pool_matrix(w_small, 4)
    w1_eff = np.einsum('ocpq,ph,qw->ochw', w1_sn, ph, pw)
    c_out = w1_sn.shape[0]
    w1t = jnp.asarray(w1_eff.reshape(c_out, -1).T, jnp.float32)   # (K, C_out)
    w2m = jnp.asarray(w2_sn[:, :, 0, 0], jnp.float32)             # (C_out, C_out)
    return w1t, w2m, w1_sn, w2_sn


if __name__ == "__main__":
    key = jax.random.PRNGKey(0)
    k1, k2, k3, k4, k5 = jax.random.split(key, 5)

    B, C_in, C_out = 2, 8, 32
    Hs = Ws = 16          # feat_small spatial (ch_in channels)
    Hb = Wb = 128         # feat_big spatial (ch_out channels)

    feat_small = jax.random.normal(k1, (B, C_in, Hs, Ws), jnp.float32)
    feat_big = jax.random.normal(k2, (B, C_out, Hb, Wb), jnp.float32)
    w1_conv = 0.1 * jax.random.normal(k3, (C_out, C_in, 4, 4), jnp.float32)
    w2_conv = 0.1 * jax.random.normal(k4, (C_out, C_out, 1, 1), jnp.float32)

    w1t_eff, w2_mat, w1_sn, w2_sn = fold_se_weights(
        np.asarray(w1_conv), np.asarray(w2_conv), Hs, Ws)

    out = jax.block_until_ready(se_block_pallas(feat_small, feat_big,
                                                w1t_eff, w2_mat))

    # Exact float64 host reference of the un-fused forward pass:
    # pool -> conv4x4 -> swish -> conv1x1 -> sigmoid -> scale.
    fs = np.asarray(feat_small, np.float64)
    pooled = fs.reshape(B, C_in, 4, Hs // 4, 4, Ws // 4).mean(axis=(3, 5))
    y1 = np.einsum('bchw,ochw->bo', pooled, w1_sn)
    h = y1 / (1.0 + np.exp(-y1))                       # Swish
    y2 = np.einsum('bo,po->bp', h, w2_sn[:, :, 0, 0])
    gate = 1.0 / (1.0 + np.exp(-y2))
    ref = np.asarray(feat_big, np.float64) * gate[:, :, None, None]

    assert out.shape == feat_big.shape and out.dtype == feat_big.dtype
    err = float(np.max(np.abs(np.asarray(out, np.float64) - ref)))
    assert err < 5e-5, f"max abs error vs reference: {err}"

    # Second call with N = 72*72 (not a multiple of 128) and a small budget:
    # exercises the cdiv gridding with a padded/masked trailing block.
    Hb2 = Wb2 = 72
    feat_big2 = jax.random.normal(k5, (B, C_out, Hb2, Wb2), jnp.float32)
    out2 = jax.block_until_ready(
        se_block_pallas(feat_small, feat_big2, w1t_eff, w2_mat,
                        tile_budget_bytes=256 * 1024))
    ref2 = np.asarray(feat_big2, np.float64) * gate[:, :, None, None]
    err2 = float(np.max(np.abs(np.asarray(out2, np.float64) - ref2)))
    assert err2 < 5e-5, f"max abs error vs reference (tiled): {err2}"

    print("KERNEL_OK")
</pallas_src>

<mosaic_0001>
module attributes {stable_mosaic.version = 11 : i64} {
  func.func @_se_block_kernel(%arg0: i32, %arg1: i32, %arg2: memref<1x2048x1xf32, #tpu.memory_space<vmem>>, %arg3: memref<2048x32xf32, #tpu.memory_space<vmem>>, %arg4: memref<32x32xf32, #tpu.memory_space<vmem>>, %arg5: memref<1x32x16384xf32, #tpu.memory_space<vmem>>, %arg6: memref<1x32x16384xf32, #tpu.memory_space<vmem>>) attributes {dimension_semantics = [#tpu.dimension_semantics<parallel>, #tpu.dimension_semantics<parallel>], iteration_bounds = array<i64: 2, 1>, scalar_prefetch = 0 : i64, scratch_operands = 0 : i64, tpu.core_type = #tpu.core_type<tc>, window_params = [{transform_indices = @transform_0, window_bounds = array<i64: 1, 2048, 1>}, {pipeline_mode = #tpu.pipeline_mode<synchronous>, transform_indices = @transform_1, window_bounds = array<i64: 2048, 32>}, {pipeline_mode = #tpu.pipeline_mode<synchronous>, transform_indices = @transform_2, window_bounds = array<i64: 32, 32>}, {transform_indices = @transform_3, window_bounds = array<i64: 1, 32, 16384>}, {transform_indices = @transform_4, window_bounds = array<i64: 1, 32, 16384>}]} {
    %c0 = arith.constant 0 : index
    %c0_0 = arith.constant 0 : index
    %c0_1 = arith.constant 0 : index
    %0 = vector.load %arg2[%c0, %c0_0, %c0_1] : memref<1x2048x1xf32, #tpu.memory_space<vmem>>, vector<1x2048x1xf32>
    %1 = vector.shape_cast %0 : vector<1x2048x1xf32> to vector<2048x1xf32>
    %c0_2 = arith.constant 0 : index
    %c0_3 = arith.constant 0 : index
    %2 = vector.load %arg3[%c0_2, %c0_3] : memref<2048x32xf32, #tpu.memory_space<vmem>>, vector<2048x32xf32>
    %3 = vector.broadcast %1 : vector<2048x1xf32> to vector<2048x32xf32>
    %4 = arith.mulf %2, %3 : vector<2048x32xf32>
    %cst = arith.constant dense<0.000000e+00> : vector<32xf32>
    %5 = vector.multi_reduction <add>, %4, %cst [0] : vector<2048x32xf32> to vector<32xf32>
    %6 = vector.shape_cast %5 : vector<32xf32> to vector<1x32xf32>
    %cst_4 = arith.constant 0.000000e+00 : f32
    %7 = vector.broadcast %cst_4 : f32 to vector<1x32xf32>
    %8 = arith.subf %7, %6 : vector<1x32xf32>
    %9 = math.exp %8 : vector<1x32xf32>
    %cst_5 = arith.constant 1.000000e+00 : f32
    %10 = vector.broadcast %cst_5 : f32 to vector<1x32xf32>
    %11 = arith.addf %10, %9 : vector<1x32xf32>
    %cst_6 = arith.constant 1.000000e+00 : f32
    %12 = vector.broadcast %cst_6 : f32 to vector<1x32xf32>
    %13 = arith.divf %12, %11 : vector<1x32xf32>
    %14 = arith.mulf %6, %13 : vector<1x32xf32>
    %c0_7 = arith.constant 0 : index
    %c0_8 = arith.constant 0 : index
    %15 = vector.load %arg4[%c0_7, %c0_8] : memref<32x32xf32, #tpu.memory_space<vmem>>, vector<32x32xf32>
    %16 = vector.broadcast %14 : vector<1x32xf32> to vector<32x32xf32>
    %17 = arith.mulf %15, %16 : vector<32x32xf32>
    %cst_9 = arith.constant dense<0.000000e+00> : vector<32xf32>
    %18 = vector.multi_reduction <add>, %17, %cst_9 [1] : vector<32x32xf32> to vector<32xf32>
    %19 = vector.shape_cast %18 : vector<32xf32> to vector<32x1xf32>
    %cst_10 = arith.constant 0.000000e+00 : f32
    %20 = vector.broadcast %cst_10 : f32 to vector<32x1xf32>
    %21 = arith.subf %20, %19 : vector<32x1xf32>
    %22 = math.exp %21 : vector<32x1xf32>
    %cst_11 = arith.constant 1.000000e+00 : f32
    %23 = vector.broadcast %cst_11 : f32 to vector<32x1xf32>
    %24 = arith.addf %23, %22 : vector<32x1xf32>
    %cst_12 = arith.constant 1.000000e+00 : f32
    %25 = vector.broadcast %cst_12 : f32 to vector<32x1xf32>
    %26 = arith.divf %25, %24 : vector<32x1xf32>
    %c0_13 = arith.constant 0 : index
    %c0_14 = arith.constant 0 : index
    %c0_15 = arith.constant 0 : index
    %27 = vector.load %arg5[%c0_13, %c0_14, %c0_15] : memref<1x32x16384xf32, #tpu.memory_space<vmem>>, vector<1x32x16384xf32>
    %28 = vector.shape_cast %26 : vector<32x1xf32> to vector<1x32x1xf32>
    %29 = vector.broadcast %28 : vector<1x32x1xf32> to vector<1x32x16384xf32>
    %30 = arith.mulf %27, %29 : vector<1x32x16384xf32>
    %c0_16 = arith.constant 0 : index
    %c0_17 = arith.constant 0 : index
    %c0_18 = arith.constant 0 : index
    %31 = vector.load %arg6[%c0_16, %c0_17, %c0_18] : memref<1x32x16384xf32, #tpu.memory_space<vmem>>, vector<1x32x16384xf32>
    tpu.vector_store %arg6[%c0_16, %c0_17, %c0_18], %30 {strides = array<i32>} : memref<1x32x16384xf32, #tpu.memory_space<vmem>>, vector<1x32x16384xf32>,
    return
  }
  func.func @transform_0(%arg0: i32, %arg1: i32) -> (i32, i32, i32) {
    %c0_i32 = arith.constant 0 : i32
    %c0_i32_0 = arith.constant 0 : i32
    %c0_i32_1 = arith.constant 0 : i32
    return %arg0, %c0_i32, %c0_i32_0 : i32, i32, i32
  }
  func.func @transform_1(%arg0: i32, %arg1: i32) -> (i32, i32) {
    %c0_i32 = arith.constant 0 : i32
    %c0_i32_0 = arith.constant 0 : i32
    %c0_i32_1 = arith.constant 0 : i32
    return %c0_i32, %c0_i32_0 : i32, i32
  }
  func.func @transform_2(%arg0: i32, %arg1: i32) -> (i32, i32) {
    %c0_i32 = arith.constant 0 : i32
    %c0_i32_0 = arith.constant 0 : i32
    %c0_i32_1 = arith.constant 0 : i32
    return %c0_i32, %c0_i32_0 : i32, i32
  }
  func.func @transform_3(%arg0: i32, %arg1: i32) -> (i32, i32, i32) {
    %c0_i32 = arith.constant 0 : i32
    %c0_i32_0 = arith.constant 0 : i32
    return %arg0, %c0_i32, %arg1 : i32, i32, i32
  }
  func.func @transform_4(%arg0: i32, %arg1: i32) -> (i32, i32, i32) {
    %c0_i32 = arith.constant 0 : i32
    %c0_i32_0 = arith.constant 0 : i32
    return %arg0, %c0_i32, %arg1 : i32, i32, i32
  }
}

</mosaic_0001>

<llo_original>
// kernel: tpu_custom_call.1
$region0: #{tpu_custom_call.1}
  #allocation0 [shape = 'u32[]', space=smem, size = 0x4, offset = 0x4, fixed_abs, tag = 'smem constant byte address 0x4 - core index']
  #allocation1 [shape = 'u32[144,128]{1,0:T(1,128)}', space=vmem, size = 0x12000, scoped, tag = 'internal scratch']
  %s0 = inlined_call_operand.vmem [shape: f32[2,2048,1], index: 0, kind: input, shape index: {}]
  %s1 = inlined_call_operand.vmem [shape: f32[2048,32], index: 1, kind: input, shape index: {}]
  %s2 = inlined_call_operand.hbm [shape: f32[32,32], index: 2, kind: input, shape index: {}]
  %s3 = inlined_call_operand.hbm [shape: f32[2,32,16384], index: 3, kind: input, shape index: {}]
  %s4 = inlined_call_operand.hbm [shape: f32[2,32,16384], index: 4, kind: output, shape index: {}]
  %s5 = sld [smem:[#allocation0]]
  $region57: #{tpu_custom_call.1} parent=0
    _
  %s7 = ssub.s32 1, %s5
  %s8 = scalar_select 0, %s7, %s5
  $region1: #{tpu_custom_call.1} parent=0
    #allocation2 [shape = 'u8[16384]{0}', space=vmem, size = 0x4000, scoped, tag = 'input window, operand 2, single buffered']
    #allocation3 [shape = 's32[2]{0}', space=sflag, size = 0x8, scoped, tag = 'scoped memory for tpu_custom_call.1']
    #allocation4 [shape = 's32[2]{0}', space=sflag, size = 0x8, scoped, tag = 'scoped memory for tpu_custom_call.1']
    #allocation5 [shape = 'u8[4194304]{0}', space=vmem, size = 0x400000, scoped, tag = 'input window, operand 3']
    #allocation6 [shape = 's32[2]{0}', space=sflag, size = 0x8, scoped, tag = 'scoped memory for tpu_custom_call.1']
    #allocation7 [shape = 'u8[4194304]{0}', space=vmem, size = 0x400000, scoped, tag = 'output window, operand 0']
    %9 = vsyncpa [#allocation3], 0
    %10 = vsyncpa [#allocation6], 0
    %s11 = scalar_lea.sflag [#allocation6], 1
    %12 = vsyncpa %s11, 0
    %13 = vsyncpa [#allocation4], 0
    %s14 = scalar_lea.sflag [#allocation4], 1
    %15 = vsyncpa %s14, 0
    loop: start=0, step=1, limit=4
    $region2: #{tpu_custom_call.1} parent=1 // loop_pre_header
      _
    $region3: #{tpu_custom_call.1} parent=1 // loop_header
      %s17 = sphi 0, %s21
      %p18 = scmp.ge.s32.totalorder %s17, 4
      %s24 = sphi 0, %s36
      %s25 = sphi 0, %s32
      %s26 = sphi 0, %s24
      %s27 = sphi 0, %s25
      %s28 = sphi 0, %s26
      %s29 = sphi 0, %s27
      %s39 = sphi 0, %s41
      %s42 = sphi 0, %s39
      %s43 = sphi 0, %s42
      %s59 = sphi 0, %s43
      %s63 = sphi 0, %s63
      %s65 = sphi 0, %s63
      %s66 = sphi 0, %s65
      %s80 = sphi 0, %s66
      %s84 = sphi 0, %s84
      %s86 = sphi 0, %s84
      %s87 = sphi 0, %s86
      %s101 = sphi 0, %s87
      %s109 = sphi 0, %s111
      %s112 = sphi 0, %s109
      %s113 = sphi 0, %s112
      %s129 = sphi 0, %s113
      %s137 = sphi 0, %s139
      %s140 = sphi 0, %s137
      %s141 = sphi 0, %s140
      %s157 = sphi 0, %s141
    $region4: #{tpu_custom_call.1} parent=1 // loop_header_branch
      %20 = sbr.rel (%p18) target = $region8
    $region5: #{tpu_custom_call.1} parent=1 // loop_body
      %s22 = ssub.s32 %s17, 1
      %s23 = ssub.s32 %s17, 2
      %s30 = sadd.s32 1, %s25
      %p31 = scmp.ge.s32.totalorder %s30, 1
      %s32 = scalar_select %p31, 0, %s30
      %s33 = sadd.s32 1, %s24
      %s34 = scalar_select %p31, %s33, %s24
      %p35 = scmp.ge.s32.totalorder %s34, 2
      %s36 = scalar_select %p35, 0, %s34
      %s37 = ssub.s32 %s24, %s36
      %p38 = scmp.eq.s32.totalorder %s37, 0
      %s40 = sadd.s32 %s39, 1
      %s41 = scalar_select %p38, %s39, %s40
      %p44 = pneg %p38
      %p45 = scmp.eq.s32.totalorder %s17, 1
      %p46 = por %p44, %p45
      %p47 = scmp.ne.s32.totalorder %s39, %s42
      %p48 = scmp.eq.s32.totalorder %s17, 0
      %p49 = por %p47, %p48
      %p50 = scmp.ne.s32.totalorder %s39, %s42
      %p51 = scmp.eq.s32.totalorder %s22, 1
      %p52 = por %p50, %p51
      %p53 = scmp.ne.s32.totalorder %s42, %s43
      %p54 = scmp.eq.s32.totalorder %s22, 0
      %p55 = por %p53, %p54
      %p56 = scmp.ne.s32.totalorder %s42, %s43
      %p57 = scmp.eq.s32.totalorder %s23, 1
      %p58 = por %p56, %p57
      %p60 = scmp.ne.s32.totalorder %s43, %s59
      %p61 = scmp.eq.s32.totalorder %s23, 0
      %p62 = por %p60, %p61
      %s64 = sadd.s32 %s63, 1
      %p67 = scmp.eq.s32.totalorder %s17, 1
      %p68 = scmp.ne.s32.totalorder %s63, %s65
      %p69 = scmp.eq.s32.totalorder %s17, 0
      %p70 = por %p68, %p69
      %p71 = scmp.ne.s32.totalorder %s63, %s65
      %p72 = scmp.eq.s32.totalorder %s22, 1
      %p73 = por %p71, %p72
      %p74 = scmp.ne.s32.totalorder %s65, %s66
      %p75 = scmp.eq.s32.totalorder %s22, 0
      %p76 = por %p74, %p75
      %p77 = scmp.ne.s32.totalorder %s65, %s66
      %p78 = scmp.eq.s32.totalorder %s23, 1
      %p79 = por %p77, %p78
      %p81 = scmp.ne.s32.totalorder %s66, %s80
      %p82 = scmp.eq.s32.totalorder %s23, 0
      %p83 = por %p81, %p82
      %s85 = sadd.s32 %s84, 1
      %p88 = scmp.eq.s32.totalorder %s17, 1
      %p89 = scmp.ne.s32.totalorder %s84, %s86
      %p90 = scmp.eq.s32.totalorder %s17, 0
      %p91 = por %p89, %p90
      %p92 = scmp.ne.s32.totalorder %s84, %s86
      %p93 = scmp.eq.s32.totalorder %s22, 1
      %p94 = por %p92, %p93
      %p95 = scmp.ne.s32.totalorder %s86, %s87
      %p96 = scmp.eq.s32.totalorder %s22, 0
      %p97 = por %p95, %p96
      %p98 = scmp.ne.s32.totalorder %s86, %s87
      %p99 = scmp.eq.s32.totalorder %s23, 1
      %p100 = por %p98, %p99
      %p102 = scmp.ne.s32.totalorder %s87, %s101
      %p103 = scmp.eq.s32.totalorder %s23, 0
      %p104 = por %p102, %p103
      %s105 = ssub.s32 %s24, %s36
      %s106 = ssub.s32 %s25, %s32
      %s107 = sor.u32 %s105, %s106
      %p108 = scmp.eq.s32.totalorder %s107, 0
      %s110 = sadd.s32 %s109, 1
      %s111 = scalar_select %p108, %s109, %s110
      %p114 = pneg %p108
      %p115 = scmp.eq.s32.totalorder %s17, 1
      %p116 = por %p114, %p115
      %p117 = scmp.ne.s32.totalorder %s109, %s112
      %p118 = scmp.eq.s32.totalorder %s17, 0
      %p119 = por %p117, %p118
      %p120 = scmp.ne.s32.totalorder %s109, %s112
      %p121 = scmp.eq.s32.totalorder %s22, 1
      %p122 = por %p120, %p121
      %p123 = scmp.ne.s32.totalorder %s112, %s113
      %p124 = scmp.eq.s32.totalorder %s22, 0
      %p125 = por %p123, %p124
      %p126 = scmp.ne.s32.totalorder %s112, %s113
      %p127 = scmp.eq.s32.totalorder %s23, 1
      %p128 = por %p126, %p127
      %p130 = scmp.ne.s32.totalorder %s113, %s129
      %p131 = scmp.eq.s32.totalorder %s23, 0
      %p132 = por %p130, %p131
      %s133 = ssub.s32 %s24, %s36
      %s134 = ssub.s32 %s25, %s32
      %s135 = sor.u32 %s133, %s134
      %p136 = scmp.eq.s32.totalorder %s135, 0
      %s138 = sadd.s32 %s137, 1
      %s139 = scalar_select %p136, %s137, %s138
      %p142 = pneg %p136
      %p143 = scmp.eq.s32.totalorder %s17, 1
      %p144 = por %p142, %p143
      %p145 = scmp.ne.s32.totalorder %s137, %s140
      %p146 = scmp.eq.s32.totalorder %s17, 0
      %p147 = por %p145, %p146
      %p148 = scmp.ne.s32.totalorder %s137, %s140
      %p149 = scmp.eq.s32.totalorder %s22, 1
      %p150 = por %p148, %p149
      %p151 = scmp.ne.s32.totalorder %s140, %s141
      %p152 = scmp.eq.s32.totalorder %s22, 0
      %p153 = por %p151, %p152
      %p154 = scmp.ne.s32.totalorder %s140, %s141
      %p155 = scmp.eq.s32.totalorder %s23, 1
      %p156 = por %p154, %p155
      %p158 = scmp.ne.s32.totalorder %s141, %s157
      %p159 = scmp.eq.s32.totalorder %s23, 0
      %p160 = por %p158, %p159
      %p161 = scmp.le.s32.totalorder 1, %s17
      %p162 = scmp.lt.s32.totalorder %s17, 3
      %p163 = pnand %p161, %p162
      %p164 = pneg %p163
      // Predicated region
      $region9: #{tpu_custom_call.1} parent=5 // pred_check
        _
      $region10: #{tpu_custom_call.1} parent=5 // pred_check_branch
        %166 = sbr.rel (%p163) target = $region12
      $region11: #{tpu_custom_call.1} parent=5 // pred_region
        %s167 = ssub.s32 %s17, 1
        // Predicated region
        $region13: #{tpu_custom_call.1} parent=11 // pred_check
          %p168 = pneg %p76
        $region14: #{tpu_custom_call.1} parent=11 // pred_check_branch
          %170 = sbr.rel (%p168) target = $region16
        $region15: #{tpu_custom_call.1} parent=11 // pred_region
          _
        $region16: #{tpu_custom_call.1} parent=11 // pred_fallthru
          _
        // Predicated region
        $region17: #{tpu_custom_call.1} parent=11 // pred_check
          %p171 = pneg %p97
        $region18: #{tpu_custom_call.1} parent=11 // pred_check_branch
          %173 = sbr.rel (%p171) target = $region20
        $region19: #{tpu_custom_call.1} parent=11 // pred_region
          %s175 = ssub.s32 512, 512
          %176 = vsyncadd [#allocation3], %s175
          %s177 = sshll.u32 [#allocation2], 4
          %s178 = int_to_ptr.vmem [resolvable:$true] %s177
          %183 = dma.hbm_to_vmem [thread:$0]  %s2, 512, %s178, [#allocation3], 128, 128, 8
        $region20: #{tpu_custom_call.1} parent=11 // pred_fallthru
          _
      $region12: #{tpu_custom_call.1} parent=5 // pred_fallthru
        _
      %p184 = scmp.lt.s32.totalorder %s17, 2
      // Predicated region
      $region21: #{tpu_custom_call.1} parent=5 // pred_check
        %p185 = pneg %p184
      $region22: #{tpu_custom_call.1} parent=5 // pred_check_branch
        %187 = sbr.rel (%p185) target = $region24
      $region23: #{tpu_custom_call.1} parent=5 // pred_region
        // Predicated region
        $region25: #{tpu_custom_call.1} parent=23 // pred_check
          %p188 = pneg %p49
        $region26: #{tpu_custom_call.1} parent=23 // pred_check_branch
          %190 = sbr.rel (%p188) target = $region28
        $region27: #{tpu_custom_call.1} parent=23 // pred_region
          %p191 = scmp.lt.s32.totalorder %s24, 1
          %s192 = scalar_select %p191, %s24, 1
          %s193 = smul.addr %s192, 256
          %s194 = smul.addr %s193, 8
          %s195 = scalar_lea.vmem %s0, %s194
        $region28: #{tpu_custom_call.1} parent=23 // pred_fallthru
          _
        // Predicated region
        $region29: #{tpu_custom_call.1} parent=23 // pred_check
          %p196 = pneg %p119
        $region30: #{tpu_custom_call.1} parent=23 // pred_check_branch
          %198 = sbr.rel (%p196) target = $region32
        $region31: #{tpu_custom_call.1} parent=23 // pred_region
          %s199 = sand.u32 %s109, 1
          %s200 = scalar_lea.sflag [#allocation6], %s199
          %s201 = sand.u32 %s109, 1
          %s202 = smul.addr %s201, 4096
          %s203 = scalar_lea.vmem [#allocation5], %s202
          %s204 = smul.u32 128, %s25
          %s206 = ssub.s32 65536, 65536
          %207 = vsyncadd %s200, %s206
          %s208 = smul.addr %s24, 512
          %s209 = sadd.s32 %s204, %s208
          %s210 = smul.addr %s209, 128
          %s211 = scalar_lea.hbm %s3, %s210
          %s212 = sshll.u32 %s203, 4
          %s213 = int_to_ptr.vmem [resolvable:$true] %s212
          %218 = dma.hbm_to_vmem [thread:$0]  %s211, 65536, %s213, %s200, 16384, 16384, 1024
        $region32: #{tpu_custom_call.1} parent=23 // pred_fallthru
          _
      $region24: #{tpu_custom_call.1} parent=5 // pred_fallthru
        _
      %p219 = scmp.le.s32.totalorder 1, %s17
      %p220 = scmp.lt.s32.totalorder %s17, 3
      %p221 = pnand %p219, %p220
      %p222 = pneg %p221
      // Predicated region
      $region33: #{tpu_custom_call.1} parent=5 // pred_check
        _
      $region34: #{tpu_custom_call.1} parent=5 // pred_check_branch
        %224 = sbr.rel (%p221) target = $region36
      $region35: #{tpu_custom_call.1} parent=5 // pred_region
        %s225 = ssub.s32 %s17, 1
        // Predicated region
        $region37: #{tpu_custom_call.1} parent=35 // pred_check
          %p226 = pneg %p97
        $region38: #{tpu_custom_call.1} parent=35 // pred_check_branch
          %228 = sbr.rel (%p226) target = $region40
        $region39: #{tpu_custom_call.1} parent=35 // pred_region
          %229 = dma.done [#allocation3], 512
        $region40: #{tpu_custom_call.1} parent=35 // pred_fallthru
          _
        %s230 = sand.u32 %s112, 1
        %s231 = scalar_lea.sflag [#allocation6], %s230
        %s232 = sand.u32 %s112, 1
        %s233 = smul.addr %s232, 4096
        %s234 = scalar_lea.vmem [#allocation5], %s233
        // Predicated region
        $region41: #{tpu_custom_call.1} parent=35 // pred_check
          %p235 = pneg %p125
        $region42: #{tpu_custom_call.1} parent=35 // pred_check_branch
          %237 = sbr.rel (%p235) target = $region44
        $region43: #{tpu_custom_call.1} parent=35 // pred_region
          %238 = dma.done %s231, 65536
        $region44: #{tpu_custom_call.1} parent=35 // pred_fallthru
          _
        %p239 = scmp.lt.s32.totalorder %s26, 1
        %s240 = scalar_select %p239, %s26, 1
        %s241 = smul.addr %s240, 256
        %s242 = smul.addr %s241, 8
        %s243 = scalar_lea.vmem %s0, %s242
        %p244 = pneg %p55
        %p245 = pneg %p52
        %p246 = pneg %p76
        %p247 = pneg %p73
        %p248 = pneg %p97
        %p249 = pneg %p94
        %s250 = sand.u32 %s112, 1
        %s251 = scalar_lea.sflag [#allocation6], %s250
        %s252 = sand.u32 %s112, 1
        %s253 = smul.addr %s252, 4096
        %s254 = scalar_lea.vmem [#allocation5], %s253
        %p255 = pneg %p125
        %p256 = pneg %p122
        %p257 = pneg %p153
        %p258 = pneg %p150
        %s259 = sand.u32 %s140, 1
        %s260 = scalar_lea.sflag [#allocation4], %s259
        %s261 = sand.u32 %s140, 1
        %s262 = smul.addr %s261, 4096
        %s263 = scalar_lea.vmem [#allocation7], %s262
        %p264 = scmp.lt.s32.totalorder %s26, 1
        %s265 = scalar_select %p264, %s26, 1
        %s266 = smul.addr %s265, 256
        %s267 = smul.addr %s266, 8
        %s268 = scalar_lea.vmem %s0, %s267
        %s269 = smul.u32 128, %s27
        %s270 = smul.u32 128, %s27
        %v271 = vld [vmem:[%s268] sm:$0xff]
        %v272 = vld [vmem:[%s268 + $0x8] sm:$0xff]
        %v273 = vld [vmem:[%s268 + $0x10] sm:$0xff]
        %v274 = vld [vmem:[%s268 + $0x18] sm:$0xff]
        %v275 = vld [vmem:[%s268 + $0x20] sm:$0xff]
        %v276 = vld [vmem:[%s268 + $0x28] sm:$0xff]
        %v277 = vld [vmem:[%s268 + $0x30] sm:$0xff]
        %v278 = vld [vmem:[%s268 + $0x38] sm:$0xff]
        %v279 = vld [vmem:[%s268 + $0x40] sm:$0xff]
        %v280 = vld [vmem:[%s268 + $0x48] sm:$0xff]
        %v281 = vld [vmem:[%s268 + $0x50] sm:$0xff]
        %v282 = vld [vmem:[%s268 + $0x58] sm:$0xff]
        %v283 = vld [vmem:[%s268 + $0x60] sm:$0xff]
        %v284 = vld [vmem:[%s268 + $0x68] sm:$0xff]
        %v285 = vld [vmem:[%s268 + $0x70] sm:$0xff]
        %v286 = vld [vmem:[%s268 + $0x78] sm:$0xff]
        %v287 = vld [vmem:[%s268 + $0x80] sm:$0xff]
        %v288 = vld [vmem:[%s268 + $0x88] sm:$0xff]
        %v289 = vld [vmem:[%s268 + $0x90] sm:$0xff]
        %v290 = vld [vmem:[%s268 + $0x98] sm:$0xff]
        %v291 = vld [vmem:[%s268 + $0xa0] sm:$0xff]
        %v292 = vld [vmem:[%s268 + $0xa8] sm:$0xff]
        %v293 = vld [vmem:[%s268 + $0xb0] sm:$0xff]
        %v294 = vld [vmem:[%s268 + $0xb8] sm:$0xff]
        %v295 = vld [vmem:[%s268 + $0xc0] sm:$0xff]
        %v296 = vld [vmem:[%s268 + $0xc8] sm:$0xff]
        %v297 = vld [vmem:[%s268 + $0xd0] sm:$0xff]
        %v298 = vld [vmem:[%s268 + $0xd8] sm:$0xff]
        %v299 = vld [vmem:[%s268 + $0xe0] sm:$0xff]
        %v300 = vld [vmem:[%s268 + $0xe8] sm:$0xff]
        %v301 = vld [vmem:[%s268 + $0xf0] sm:$0xff]
        %v302 = vld [vmem:[%s268 + $0xf8] sm:$0xff]
        %v303 = vld [vmem:[%s268 + $0x100] sm:$0xff]
        %v304 = vld [vmem:[%s268 + $0x108] sm:$0xff]
        %v305 = vld [vmem:[%s268 + $0x110] sm:$0xff]
        %v306 = vld [vmem:[%s268 + $0x118] sm:$0xff]
        %v307 = vld [vmem:[%s268 + $0x120] sm:$0xff]
        %v308 = vld [vmem:[%s268 + $0x128] sm:$0xff]
        %v309 = vld [vmem:[%s268 + $0x130] sm:$0xff]
        %v310 = vld [vmem:[%s268 + $0x138] sm:$0xff]
        %v311 = vld [vmem:[%s268 + $0x140] sm:$0xff]
        %v312 = vld [vmem:[%s268 + $0x148] sm:$0xff]
        %v313 = vld [vmem:[%s268 + $0x150] sm:$0xff]
        %v314 = vld [vmem:[%s268 + $0x158] sm:$0xff]
        %v315 = vld [vmem:[%s268 + $0x160] sm:$0xff]
        %v316 = vld [vmem:[%s268 + $0x168] sm:$0xff]
        %v317 = vld [vmem:[%s268 + $0x170] sm:$0xff]
        %v318 = vld [vmem:[%s268 + $0x178] sm:$0xff]
        %v319 = vld [vmem:[%s268 + $0x180] sm:$0xff]
        %v320 = vld [vmem:[%s268 + $0x188] sm:$0xff]
        %v321 = vld [vmem:[%s268 + $0x190] sm:$0xff]
        %v322 = vld [vmem:[%s268 + $0x198] sm:$0xff]
        %v323 = vld [vmem:[%s268 + $0x1a0] sm:$0xff]
        %v324 = vld [vmem:[%s268 + $0x1a8] sm:$0xff]
        %v325 = vld [vmem:[%s268 + $0x1b0] sm:$0xff]
        %v326 = vld [vmem:[%s268 + $0x1b8] sm:$0xff]
        %v327 = vld [vmem:[%s268 + $0x1c0] sm:$0xff]
        %v328 = vld [vmem:[%s268 + $0x1c8] sm:$0xff]
        %v329 = vld [vmem:[%s268 + $0x1d0] sm:$0xff]
        %v330 = vld [vmem:[%s268 + $0x1d8] sm:$0xff]
        %v331 = vld [vmem:[%s268 + $0x1e0] sm:$0xff]
        %v332 = vld [vmem:[%s268 + $0x1e8] sm:$0xff]
        %v333 = vld [vmem:[%s268 + $0x1f0] sm:$0xff]
        %v334 = vld [vmem:[%s268 + $0x1f8] sm:$0xff]
        %v335 = vld [vmem:[%s268 + $0x200] sm:$0xff]
        %v336 = vld [vmem:[%s268 + $0x208] sm:$0xff]
        %v337 = vld [vmem:[%s268 + $0x210] sm:$0xff]
        %v338 = vld [vmem:[%s268 + $0x218] sm:$0xff]
        %v339 = vld [vmem:[%s268 + $0x220] sm:$0xff]
        %v340 = vld [vmem:[%s268 + $0x228] sm:$0xff]
        %v341 = vld [vmem:[%s268 + $0x230] sm:$0xff]
        %v342 = vld [vmem:[%s268 + $0x238] sm:$0xff]
        %v343 = vld [vmem:[%s268 + $0x240] sm:$0xff]
        %v344 = vld [vmem:[%s268 + $0x248] sm:$0xff]
        %v345 = vld [vmem:[%s268 + $0x250] sm:$0xff]
        %v346 = vld [vmem:[%s268 + $0x258] sm:$0xff]
        %v347 = vld [vmem:[%s268 + $0x260] sm:$0xff]
        %v348 = vld [vmem:[%s268 + $0x268] sm:$0xff]
        %v349 = vld [vmem:[%s268 + $0x270] sm:$0xff]
        %v350 = vld [vmem:[%s268 + $0x278] sm:$0xff]
        %v351 = vld [vmem:[%s268 + $0x280] sm:$0xff]
        %v352 = vld [vmem:[%s268 + $0x288] sm:$0xff]
        %v353 = vld [vmem:[%s268 + $0x290] sm:$0xff]
        %v354 = vld [vmem:[%s268 + $0x298] sm:$0xff]
        %v355 = vld [vmem:[%s268 + $0x2a0] sm:$0xff]
        %v356 = vld [vmem:[%s268 + $0x2a8] sm:$0xff]
        %v357 = vld [vmem:[%s268 + $0x2b0] sm:$0xff]
        %v358 = vld [vmem:[%s268 + $0x2b8] sm:$0xff]
        %v359 = vld [vmem:[%s268 + $0x2c0] sm:$0xff]
        %v360 = vld [vmem:[%s268 + $0x2c8] sm:$0xff]
        %v361 = vld [vmem:[%s268 + $0x2d0] sm:$0xff]
        %v362 = vld [vmem:[%s268 + $0x2d8] sm:$0xff]
        %v363 = vld [vmem:[%s268 + $0x2e0] sm:$0xff]
        %v364 = vld [vmem:[%s268 + $0x2e8] sm:$0xff]
        %v365 = vld [vmem:[%s268 + $0x2f0] sm:$0xff]
        %v366 = vld [vmem:[%s268 + $0x2f8] sm:$0xff]
        %v367 = vld [vmem:[%s268 + $0x300] sm:$0xff]
        %v368 = vld [vmem:[%s268 + $0x308] sm:$0xff]
        %v369 = vld [vmem:[%s268 + $0x310] sm:$0xff]
        %v370 = vld [vmem:[%s268 + $0x318] sm:$0xff]
        %v371 = vld [vmem:[%s268 + $0x320] sm:$0xff]
        %v372 = vld [vmem:[%s268 + $0x328] sm:$0xff]
        %v373 = vld [vmem:[%s268 + $0x330] sm:$0xff]
        %v374 = vld [vmem:[%s268 + $0x338] sm:$0xff]
        %v375 = vld [vmem:[%s268 + $0x340] sm:$0xff]
        %v376 = vld [vmem:[%s268 + $0x348] sm:$0xff]
        %v377 = vld [vmem:[%s268 + $0x350] sm:$0xff]
        %v378 = vld [vmem:[%s268 + $0x358] sm:$0xff]
        %v379 = vld [vmem:[%s268 + $0x360] sm:$0xff]
        %v380 = vld [vmem:[%s268 + $0x368] sm:$0xff]
        %v381 = vld [vmem:[%s268 + $0x370] sm:$0xff]
        %v382 = vld [vmem:[%s268 + $0x378] sm:$0xff]
        %v383 = vld [vmem:[%s268 + $0x380] sm:$0xff]
        %v384 = vld [vmem:[%s268 + $0x388] sm:$0xff]
        %v385 = vld [vmem:[%s268 + $0x390] sm:$0xff]
        %v386 = vld [vmem:[%s268 + $0x398] sm:$0xff]
        %v387 = vld [vmem:[%s268 + $0x3a0] sm:$0xff]
        %v388 = vld [vmem:[%s268 + $0x3a8] sm:$0xff]
        %v389 = vld [vmem:[%s268 + $0x3b0] sm:$0xff]
        %v390 = vld [vmem:[%s268 + $0x3b8] sm:$0xff]
        %v391 = vld [vmem:[%s268 + $0x3c0] sm:$0xff]
        %v392 = vld [vmem:[%s268 + $0x3c8] sm:$0xff]
        %v393 = vld [vmem:[%s268 + $0x3d0] sm:$0xff]
        %v394 = vld [vmem:[%s268 + $0x3d8] sm:$0xff]
        %v395 = vld [vmem:[%s268 + $0x3e0] sm:$0xff]
        %v396 = vld [vmem:[%s268 + $0x3e8] sm:$0xff]
        %v397 = vld [vmem:[%s268 + $0x3f0] sm:$0xff]
        %v398 = vld [vmem:[%s268 + $0x3f8] sm:$0xff]
        %v399 = vld [vmem:[%s268 + $0x400] sm:$0xff]
        %v400 = vld [vmem:[%s268 + $0x408] sm:$0xff]
        %v401 = vld [vmem:[%s268 + $0x410] sm:$0xff]
        %v402 = vld [vmem:[%s268 + $0x418] sm:$0xff]
        %v403 = vld [vmem:[%s268 + $0x420] sm:$0xff]
        %v404 = vld [vmem:[%s268 + $0x428] sm:$0xff]
        %v405 = vld [vmem:[%s268 + $0x430] sm:$0xff]
        %v406 = vld [vmem:[%s268 + $0x438] sm:$0xff]
        %v407 = vld [vmem:[%s268 + $0x440] sm:$0xff]
        %v408 = vld [vmem:[%s268 + $0x448] sm:$0xff]
        %v409 = vld [vmem:[%s268 + $0x450] sm:$0xff]
        %v410 = vld [vmem:[%s268 + $0x458] sm:$0xff]
        %v411 = vld [vmem:[%s268 + $0x460] sm:$0xff]
        %v412 = vld [vmem:[%s268 + $0x468] sm:$0xff]
        %v413 = vld [vmem:[%s268 + $0x470] sm:$0xff]
        %v414 = vld [vmem:[%s268 + $0x478] sm:$0xff]
        %v415 = vld [vmem:[%s268 + $0x480] sm:$0xff]
        %v416 = vld [vmem:[%s268 + $0x488] sm:$0xff]
        %v417 = vld [vmem:[%s268 + $0x490] sm:$0xff]
        %v418 = vld [vmem:[%s268 + $0x498] sm:$0xff]
        %v419 = vld [vmem:[%s268 + $0x4a0] sm:$0xff]
        %v420 = vld [vmem:[%s268 + $0x4a8] sm:$0xff]
        %v421 = vld [vmem:[%s268 + $0x4b0] sm:$0xff]
        %v422 = vld [vmem:[%s268 + $0x4b8] sm:$0xff]
        %v423 = vld [vmem:[%s268 + $0x4c0] sm:$0xff]
        %v424 = vld [vmem:[%s268 + $0x4c8] sm:$0xff]
        %v425 = vld [vmem:[%s268 + $0x4d0] sm:$0xff]
        %v426 = vld [vmem:[%s268 + $0x4d8] sm:$0xff]
        %v427 = vld [vmem:[%s268 + $0x4e0] sm:$0xff]
        %v428 = vld [vmem:[%s268 + $0x4e8] sm:$0xff]
        %v429 = vld [vmem:[%s268 + $0x4f0] sm:$0xff]
        %v430 = vld [vmem:[%s268 + $0x4f8] sm:$0xff]
        %v431 = vld [vmem:[%s268 + $0x500] sm:$0xff]
        %v432 = vld [vmem:[%s268 + $0x508] sm:$0xff]
        %v433 = vld [vmem:[%s268 + $0x510] sm:$0xff]
        %v434 = vld [vmem:[%s268 + $0x518] sm:$0xff]
        %v435 = vld [vmem:[%s268 + $0x520] sm:$0xff]
        %v436 = vld [vmem:[%s268 + $0x528] sm:$0xff]
        %v437 = vld [vmem:[%s268 + $0x530] sm:$0xff]
        %v438 = vld [vmem:[%s268 + $0x538] sm:$0xff]
        %v439 = vld [vmem:[%s268 + $0x540] sm:$0xff]
        %v440 = vld [vmem:[%s268 + $0x548] sm:$0xff]
        %v441 = vld [vmem:[%s268 + $0x550] sm:$0xff]
        %v442 = vld [vmem:[%s268 + $0x558] sm:$0xff]
        %v443 = vld [vmem:[%s268 + $0x560] sm:$0xff]
        %v444 = vld [vmem:[%s268 + $0x568] sm:$0xff]
        %v445 = vld [vmem:[%s268 + $0x570] sm:$0xff]
        %v446 = vld [vmem:[%s268 + $0x578] sm:$0xff]
        %v447 = vld [vmem:[%s268 + $0x580] sm:$0xff]
        %v448 = vld [vmem:[%s268 + $0x588] sm:$0xff]
        %v449 = vld [vmem:[%s268 + $0x590] sm:$0xff]
        %v450 = vld [vmem:[%s268 + $0x598] sm:$0xff]
        %v451 = vld [vmem:[%s268 + $0x5a0] sm:$0xff]
        %v452 = vld [vmem:[%s268 + $0x5a8] sm:$0xff]
        %v453 = vld [vmem:[%s268 + $0x5b0] sm:$0xff]
        %v454 = vld [vmem:[%s268 + $0x5b8] sm:$0xff]
        %v455 = vld [vmem:[%s268 + $0x5c0] sm:$0xff]
        %v456 = vld [vmem:[%s268 + $0x5c8] sm:$0xff]
        %v457 = vld [vmem:[%s268 + $0x5d0] sm:$0xff]
        %v458 = vld [vmem:[%s268 + $0x5d8] sm:$0xff]
        %v459 = vld [vmem:[%s268 + $0x5e0] sm:$0xff]
        %v460 = vld [vmem:[%s268 + $0x5e8] sm:$0xff]
        %v461 = vld [vmem:[%s268 + $0x5f0] sm:$0xff]
        %v462 = vld [vmem:[%s268 + $0x5f8] sm:$0xff]
        %v463 = vld [vmem:[%s268 + $0x600] sm:$0xff]
        %v464 = vld [vmem:[%s268 + $0x608] sm:$0xff]
        %v465 = vld [vmem:[%s268 + $0x610] sm:$0xff]
        %v466 = vld [vmem:[%s268 + $0x618] sm:$0xff]
        %v467 = vld [vmem:[%s268 + $0x620] sm:$0xff]
        %v468 = vld [vmem:[%s268 + $0x628] sm:$0xff]
        %v469 = vld [vmem:[%s268 + $0x630] sm:$0xff]
        %v470 = vld [vmem:[%s268 + $0x638] sm:$0xff]
        %v471 = vld [vmem:[%s268 + $0x640] sm:$0xff]
        %v472 = vld [vmem:[%s268 + $0x648] sm:$0xff]
        %v473 = vld [vmem:[%s268 + $0x650] sm:$0xff]
        %v474 = vld [vmem:[%s268 + $0x658] sm:$0xff]
        %v475 = vld [vmem:[%s268 + $0x660] sm:$0xff]
        %v476 = vld [vmem:[%s268 + $0x668] sm:$0xff]
        %v477 = vld [vmem:[%s268 + $0x670] sm:$0xff]
        %v478 = vld [vmem:[%s268 + $0x678] sm:$0xff]
        %v479 = vld [vmem:[%s268 + $0x680] sm:$0xff]
        %v480 = vld [vmem:[%s268 + $0x688] sm:$0xff]
        %v481 = vld [vmem:[%s268 + $0x690] sm:$0xff]
        %v482 = vld [vmem:[%s268 + $0x698] sm:$0xff]
        %v483 = vld [vmem:[%s268 + $0x6a0] sm:$0xff]
        %v484 = vld [vmem:[%s268 + $0x6a8] sm:$0xff]
        %v485 = vld [vmem:[%s268 + $0x6b0] sm:$0xff]
        %v486 = vld [vmem:[%s268 + $0x6b8] sm:$0xff]
        %v487 = vld [vmem:[%s268 + $0x6c0] sm:$0xff]
        %v488 = vld [vmem:[%s268 + $0x6c8] sm:$0xff]
        %v489 = vld [vmem:[%s268 + $0x6d0] sm:$0xff]
        %v490 = vld [vmem:[%s268 + $0x6d8] sm:$0xff]
        %v491 = vld [vmem:[%s268 + $0x6e0] sm:$0xff]
        %v492 = vld [vmem:[%s268 + $0x6e8] sm:$0xff]
        %v493 = vld [vmem:[%s268 + $0x6f0] sm:$0xff]
        %v494 = vld [vmem:[%s268 + $0x6f8] sm:$0xff]
        %v495 = vld [vmem:[%s268 + $0x700] sm:$0xff]
        %v496 = vld [vmem:[%s268 + $0x708] sm:$0xff]
        %v497 = vld [vmem:[%s268 + $0x710] sm:$0xff]
        %v498 = vld [vmem:[%s268 + $0x718] sm:$0xff]
        %v499 = vld [vmem:[%s268 + $0x720] sm:$0xff]
        %v500 = vld [vmem:[%s268 + $0x728] sm:$0xff]
        %v501 = vld [vmem:[%s268 + $0x730] sm:$0xff]
        %v502 = vld [vmem:[%s268 + $0x738] sm:$0xff]
        %v503 = vld [vmem:[%s268 + $0x740] sm:$0xff]
        %v504 = vld [vmem:[%s268 + $0x748] sm:$0xff]
        %v505 = vld [vmem:[%s268 + $0x750] sm:$0xff]
        %v506 = vld [vmem:[%s268 + $0x758] sm:$0xff]
        %v507 = vld [vmem:[%s268 + $0x760] sm:$0xff]
        %v508 = vld [vmem:[%s268 + $0x768] sm:$0xff]
        %v509 = vld [vmem:[%s268 + $0x770] sm:$0xff]
        %v510 = vld [vmem:[%s268 + $0x778] sm:$0xff]
        %v511 = vld [vmem:[%s268 + $0x780] sm:$0xff]
        %v512 = vld [vmem:[%s268 + $0x788] sm:$0xff]
        %v513 = vld [vmem:[%s268 + $0x790] sm:$0xff]
        %v514 = vld [vmem:[%s268 + $0x798] sm:$0xff]
        %v515 = vld [vmem:[%s268 + $0x7a0] sm:$0xff]
        %v516 = vld [vmem:[%s268 + $0x7a8] sm:$0xff]
        %v517 = vld [vmem:[%s268 + $0x7b0] sm:$0xff]
        %v518 = vld [vmem:[%s268 + $0x7b8] sm:$0xff]
        %v519 = vld [vmem:[%s268 + $0x7c0] sm:$0xff]
        %v520 = vld [vmem:[%s268 + $0x7c8] sm:$0xff]
        %v521 = vld [vmem:[%s268 + $0x7d0] sm:$0xff]
        %v522 = vld [vmem:[%s268 + $0x7d8] sm:$0xff]
        %v523 = vld [vmem:[%s268 + $0x7e0] sm:$0xff]
        %v524 = vld [vmem:[%s268 + $0x7e8] sm:$0xff]
        %v525 = vld [vmem:[%s268 + $0x7f0] sm:$0xff]
        %v526 = vld [vmem:[%s268 + $0x7f8] sm:$0xff]
        %v527 = vld [vmem:[%s1] sm:$0xff]
        %v528 = vld [vmem:[%s1 + $0x8] sm:$0xff]
        %v529 = vld [vmem:[%s1 + $0x10] sm:$0xff]
        %v530 = vld [vmem:[%s1 + $0x18] sm:$0xff]
        %v531 = vld [vmem:[%s1 + $0x20] sm:$0xff]
        %v532 = vld [vmem:[%s1 + $0x28] sm:$0xff]
        %v533 = vld [vmem:[%s1 + $0x30] sm:$0xff]
        %v534 = vld [vmem:[%s1 + $0x38] sm:$0xff]
        %v535 = vld [vmem:[%s1 + $0x40] sm:$0xff]
        %v536 = vld [vmem:[%s1 + $0x48] sm:$0xff]
        %v537 = vld [vmem:[%s1 + $0x50] sm:$0xff]
        %v538 = vld [vmem:[%s1 + $0x58] sm:$0xff]
        %v539 = vld [vmem:[%s1 + $0x60] sm:$0xff]
        %v540 = vld [vmem:[%s1 + $0x68] sm:$0xff]
        %v541 = vld [vmem:[%s1 + $0x70] sm:$0xff]
        %v542 = vld [vmem:[%s1 + $0x78] sm:$0xff]
        %v543 = vld [vmem:[%s1 + $0x80] sm:$0xff]
        %v544 = vld [vmem:[%s1 + $0x88] sm:$0xff]
        %v545 = vld [vmem:[%s1 + $0x90] sm:$0xff]
        %v546 = vld [vmem:[%s1 + $0x98] sm:$0xff]
        %v547 = vld [vmem:[%s1 + $0xa0] sm:$0xff]
        %v548 = vld [vmem:[%s1 + $0xa8] sm:$0xff]
        %v549 = vld [vmem:[%s1 + $0xb0] sm:$0xff]
        %v550 = vld [vmem:[%s1 + $0xb8] sm:$0xff]
        %v551 = vld [vmem:[%s1 + $0xc0] sm:$0xff]
        %v552 = vld [vmem:[%s1 + $0xc8] sm:$0xff]
        %v553 = vld [vmem:[%s1 + $0xd0] sm:$0xff]
        %v554 = vld [vmem:[%s1 + $0xd8] sm:$0xff]
        %v555 = vld [vmem:[%s1 + $0xe0] sm:$0xff]
        %v556 = vld [vmem:[%s1 + $0xe8] sm:$0xff]
        %v557 = vld [vmem:[%s1 + $0xf0] sm:$0xff]
        %v558 = vld [vmem:[%s1 + $0xf8] sm:$0xff]
        %v559 = vld [vmem:[%s1 + $0x100] sm:$0xff]
        %v560 = vld [vmem:[%s1 + $0x108] sm:$0xff]
        %v561 = vld [vmem:[%s1 + $0x110] sm:$0xff]
        %v562 = vld [vmem:[%s1 + $0x118] sm:$0xff]
        %v563 = vld [vmem:[%s1 + $0x120] sm:$0xff]
        %v564 = vld [vmem:[%s1 + $0x128] sm:$0xff]
        %v565 = vld [vmem:[%s1 + $0x130] sm:$0xff]
        %v566 = vld [vmem:[%s1 + $0x138] sm:$0xff]
        %v567 = vld [vmem:[%s1 + $0x140] sm:$0xff]
        %v568 = vld [vmem:[%s1 + $0x148] sm:$0xff]
        %v569 = vld [vmem:[%s1 + $0x150] sm:$0xff]
        %v570 = vld [vmem:[%s1 + $0x158] sm:$0xff]
        %v571 = vld [vmem:[%s1 + $0x160] sm:$0xff]
        %v572 = vld [vmem:[%s1 + $0x168] sm:$0xff]
        %v573 = vld [vmem:[%s1 + $0x170] sm:$0xff]
        %v574 = vld [vmem:[%s1 + $0x178] sm:$0xff]
        %v575 = vld [vmem:[%s1 + $0x180] sm:$0xff]
        %v576 = vld [vmem:[%s1 + $0x188] sm:$0xff]
        %v577 = vld [vmem:[%s1 + $0x190] sm:$0xff]
        %v578 = vld [vmem:[%s1 + $0x198] sm:$0xff]
        %v579 = vld [vmem:[%s1 + $0x1a0] sm:$0xff]
        %v580 = vld [vmem:[%s1 + $0x1a8] sm:$0xff]
        %v581 = vld [vmem:[%s1 + $0x1b0] sm:$0xff]
        %v582 = vld [vmem:[%s1 + $0x1b8] sm:$0xff]
        %v583 = vld [vmem:[%s1 + $0x1c0] sm:$0xff]
        %v584 = vld [vmem:[%s1 + $0x1c8] sm:$0xff]
        %v585 = vld [vmem:[%s1 + $0x1d0] sm:$0xff]
        %v586 = vld [vmem:[%s1 + $0x1d8] sm:$0xff]
        %v587 = vld [vmem:[%s1 + $0x1e0] sm:$0xff]
        %v588 = vld [vmem:[%s1 + $0x1e8] sm:$0xff]
        %v589 = vld [vmem:[%s1 + $0x1f0] sm:$0xff]
        %v590 = vld [vmem:[%s1 + $0x1f8] sm:$0xff]
        %v591 = vld [vmem:[%s1 + $0x200] sm:$0xff]
        %v592 = vld [vmem:[%s1 + $0x208] sm:$0xff]
        %v593 = vld [vmem:[%s1 + $0x210] sm:$0xff]
        %v594 = vld [vmem:[%s1 + $0x218] sm:$0xff]
        %v595 = vld [vmem:[%s1 + $0x220] sm:$0xff]
        %v596 = vld [vmem:[%s1 + $0x228] sm:$0xff]
        %v597 = vld [vmem:[%s1 + $0x230] sm:$0xff]
        %v598 = vld [vmem:[%s1 + $0x238] sm:$0xff]
        %v599 = vld [vmem:[%s1 + $0x240] sm:$0xff]
        %v600 = vld [vmem:[%s1 + $0x248] sm:$0xff]
        %v601 = vld [vmem:[%s1 + $0x250] sm:$0xff]
        %v602 = vld [vmem:[%s1 + $0x258] sm:$0xff]
        %v603 = vld [vmem:[%s1 + $0x260] sm:$0xff]
        %v604 = vld [vmem:[%s1 + $0x268] sm:$0xff]
        %v605 = vld [vmem:[%s1 + $0x270] sm:$0xff]
        %v606 = vld [vmem:[%s1 + $0x278] sm:$0xff]
        %v607 = vld [vmem:[%s1 + $0x280] sm:$0xff]
        %v608 = vld [vmem:[%s1 + $0x288] sm:$0xff]
        %v609 = vld [vmem:[%s1 + $0x290] sm:$0xff]
        %v610 = vld [vmem:[%s1 + $0x298] sm:$0xff]
        %v611 = vld [vmem:[%s1 + $0x2a0] sm:$0xff]
        %v612 = vld [vmem:[%s1 + $0x2a8] sm:$0xff]
        %v613 = vld [vmem:[%s1 + $0x2b0] sm:$0xff]
        %v614 = vld [vmem:[%s1 + $0x2b8] sm:$0xff]
        %v615 = vld [vmem:[%s1 + $0x2c0] sm:$0xff]
        %v616 = vld [vmem:[%s1 + $0x2c8] sm:$0xff]
        %v617 = vld [vmem:[%s1 + $0x2d0] sm:$0xff]
        %v618 = vld [vmem:[%s1 + $0x2d8] sm:$0xff]
        %v619 = vld [vmem:[%s1 + $0x2e0] sm:$0xff]
        %v620 = vld [vmem:[%s1 + $0x2e8] sm:$0xff]
        %v621 = vld [vmem:[%s1 + $0x2f0] sm:$0xff]
        %v622 = vld [vmem:[%s1 + $0x2f8] sm:$0xff]
        %v623 = vld [vmem:[%s1 + $0x300] sm:$0xff]
        %v624 = vld [vmem:[%s1 + $0x308] sm:$0xff]
        %v625 = vld [vmem:[%s1 + $0x310] sm:$0xff]
        %v626 = vld [vmem:[%s1 + $0x318] sm:$0xff]
        %v627 = vld [vmem:[%s1 + $0x320] sm:$0xff]
        %v628 = vld [vmem:[%s1 + $0x328] sm:$0xff]
        %v629 = vld [vmem:[%s1 + $0x330] sm:$0xff]
        %v630 = vld [vmem:[%s1 + $0x338] sm:$0xff]
        %v631 = vld [vmem:[%s1 + $0x340] sm:$0xff]
        %v632 = vld [vmem:[%s1 + $0x348] sm:$0xff]
        %v633 = vld [vmem:[%s1 + $0x350] sm:$0xff]
        %v634 = vld [vmem:[%s1 + $0x358] sm:$0xff]
        %v635 = vld [vmem:[%s1 + $0x360] sm:$0xff]
        %v636 = vld [vmem:[%s1 + $0x368] sm:$0xff]
        %v637 = vld [vmem:[%s1 + $0x370] sm:$0xff]
        %v638 = vld [vmem:[%s1 + $0x378] sm:$0xff]
        %v639 = vld [vmem:[%s1 + $0x380] sm:$0xff]
        %v640 = vld [vmem:[%s1 + $0x388] sm:$0xff]
        %v641 = vld [vmem:[%s1 + $0x390] sm:$0xff]
        %v642 = vld [vmem:[%s1 + $0x398] sm:$0xff]
        %v643 = vld [vmem:[%s1 + $0x3a0] sm:$0xff]
        %v644 = vld [vmem:[%s1 + $0x3a8] sm:$0xff]
        %v645 = vld [vmem:[%s1 + $0x3b0] sm:$0xff]
        %v646 = vld [vmem:[%s1 + $0x3b8] sm:$0xff]
        %v647 = vld [vmem:[%s1 + $0x3c0] sm:$0xff]
        %v648 = vld [vmem:[%s1 + $0x3c8] sm:$0xff]
        %v649 = vld [vmem:[%s1 + $0x3d0] sm:$0xff]
        %v650 = vld [vmem:[%s1 + $0x3d8] sm:$0xff]
        %v651 = vld [vmem:[%s1 + $0x3e0] sm:$0xff]
        %v652 = vld [vmem:[%s1 + $0x3e8] sm:$0xff]
        %v653 = vld [vmem:[%s1 + $0x3f0] sm:$0xff]
        %v654 = vld [vmem:[%s1 + $0x3f8] sm:$0xff]
        %v655 = vld [vmem:[%s1 + $0x400] sm:$0xff]
        %v656 = vld [vmem:[%s1 + $0x408] sm:$0xff]
        %v657 = vld [vmem:[%s1 + $0x410] sm:$0xff]
        %v658 = vld [vmem:[%s1 + $0x418] sm:$0xff]
        %v659 = vld [vmem:[%s1 + $0x420] sm:$0xff]
        %v660 = vld [vmem:[%s1 + $0x428] sm:$0xff]
        %v661 = vld [vmem:[%s1 + $0x430] sm:$0xff]
        %v662 = vld [vmem:[%s1 + $0x438] sm:$0xff]
        %v663 = vld [vmem:[%s1 + $0x440] sm:$0xff]
        %v664 = vld [vmem:[%s1 + $0x448] sm:$0xff]
        %v665 = vld [vmem:[%s1 + $0x450] sm:$0xff]
        %v666 = vld [vmem:[%s1 + $0x458] sm:$0xff]
        %v667 = vld [vmem:[%s1 + $0x460] sm:$0xff]
        %v668 = vld [vmem:[%s1 + $0x468] sm:$0xff]
        %v669 = vld [vmem:[%s1 + $0x470] sm:$0xff]
        %v670 = vld [vmem:[%s1 + $0x478] sm:$0xff]
        %v671 = vld [vmem:[%s1 + $0x480] sm:$0xff]
        %v672 = vld [vmem:[%s1 + $0x488] sm:$0xff]
        %v673 = vld [vmem:[%s1 + $0x490] sm:$0xff]
        %v674 = vld [vmem:[%s1 + $0x498] sm:$0xff]
        %v675 = vld [vmem:[%s1 + $0x4a0] sm:$0xff]
        %v676 = vld [vmem:[%s1 + $0x4a8] sm:$0xff]
        %v677 = vld [vmem:[%s1 + $0x4b0] sm:$0xff]
        %v678 = vld [vmem:[%s1 + $0x4b8] sm:$0xff]
        %v679 = vld [vmem:[%s1 + $0x4c0] sm:$0xff]
        %v680 = vld [vmem:[%s1 + $0x4c8] sm:$0xff]
        %v681 = vld [vmem:[%s1 + $0x4d0] sm:$0xff]
        %v682 = vld [vmem:[%s1 + $0x4d8] sm:$0xff]
        %v683 = vld [vmem:[%s1 + $0x4e0] sm:$0xff]
        %v684 = vld [vmem:[%s1 + $0x4e8] sm:$0xff]
        %v685 = vld [vmem:[%s1 + $0x4f0] sm:$0xff]
        %v686 = vld [vmem:[%s1 + $0x4f8] sm:$0xff]
        %v687 = vld [vmem:[%s1 + $0x500] sm:$0xff]
        %v688 = vld [vmem:[%s1 + $0x508] sm:$0xff]
        %v689 = vld [vmem:[%s1 + $0x510] sm:$0xff]
        %v690 = vld [vmem:[%s1 + $0x518] sm:$0xff]
        %v691 = vld [vmem:[%s1 + $0x520] sm:$0xff]
        %v692 = vld [vmem:[%s1 + $0x528] sm:$0xff]
        %v693 = vld [vmem:[%s1 + $0x530] sm:$0xff]
        %v694 = vld [vmem:[%s1 + $0x538] sm:$0xff]
        %v695 = vld [vmem:[%s1 + $0x540] sm:$0xff]
        %v696 = vld [vmem:[%s1 + $0x548] sm:$0xff]
        %v697 = vld [vmem:[%s1 + $0x550] sm:$0xff]
        %v698 = vld [vmem:[%s1 + $0x558] sm:$0xff]
        %v699 = vld [vmem:[%s1 + $0x560] sm:$0xff]
        %v700 = vld [vmem:[%s1 + $0x568] sm:$0xff]
        %v701 = vld [vmem:[%s1 + $0x570] sm:$0xff]
        %v702 = vld [vmem:[%s1 + $0x578] sm:$0xff]
        %v703 = vld [vmem:[%s1 + $0x580] sm:$0xff]
        %v704 = vld [vmem:[%s1 + $0x588] sm:$0xff]
        %v705 = vld [vmem:[%s1 + $0x590] sm:$0xff]
        %v706 = vld [vmem:[%s1 + $0x598] sm:$0xff]
        %v707 = vld [vmem:[%s1 + $0x5a0] sm:$0xff]
        %v708 = vld [vmem:[%s1 + $0x5a8] sm:$0xff]
        %v709 = vld [vmem:[%s1 + $0x5b0] sm:$0xff]
        %v710 = vld [vmem:[%s1 + $0x5b8] sm:$0xff]
        %v711 = vld [vmem:[%s1 + $0x5c0] sm:$0xff]
        %v712 = vld [vmem:[%s1 + $0x5c8] sm:$0xff]
        %v713 = vld [vmem:[%s1 + $0x5d0] sm:$0xff]
        %v714 = vld [vmem:[%s1 + $0x5d8] sm:$0xff]
        %v715 = vld [vmem:[%s1 + $0x5e0] sm:$0xff]
        %v716 = vld [vmem:[%s1 + $0x5e8] sm:$0xff]
        %v717 = vld [vmem:[%s1 + $0x5f0] sm:$0xff]
        %v718 = vld [vmem:[%s1 + $0x5f8] sm:$0xff]
        %v719 = vld [vmem:[%s1 + $0x600] sm:$0xff]
        %v720 = vld [vmem:[%s1 + $0x608] sm:$0xff]
        %v721 = vld [vmem:[%s1 + $0x610] sm:$0xff]
        %v722 = vld [vmem:[%s1 + $0x618] sm:$0xff]
        %v723 = vld [vmem:[%s1 + $0x620] sm:$0xff]
        %v724 = vld [vmem:[%s1 + $0x628] sm:$0xff]
        %v725 = vld [vmem:[%s1 + $0x630] sm:$0xff]
        %v726 = vld [vmem:[%s1 + $0x638] sm:$0xff]
        %v727 = vld [vmem:[%s1 + $0x640] sm:$0xff]
        %v728 = vld [vmem:[%s1 + $0x648] sm:$0xff]
        %v729 = vld [vmem:[%s1 + $0x650] sm:$0xff]
        %v730 = vld [vmem:[%s1 + $0x658] sm:$0xff]
        %v731 = vld [vmem:[%s1 + $0x660] sm:$0xff]
        %v732 = vld [vmem:[%s1 + $0x668] sm:$0xff]
        %v733 = vld [vmem:[%s1 + $0x670] sm:$0xff]
        %v734 = vld [vmem:[%s1 + $0x678] sm:$0xff]
        %v735 = vld [vmem:[%s1 + $0x680] sm:$0xff]
        %v736 = vld [vmem:[%s1 + $0x688] sm:$0xff]
        %v737 = vld [vmem:[%s1 + $0x690] sm:$0xff]
        %v738 = vld [vmem:[%s1 + $0x698] sm:$0xff]
        %v739 = vld [vmem:[%s1 + $0x6a0] sm:$0xff]
        %v740 = vld [vmem:[%s1 + $0x6a8] sm:$0xff]
        %v741 = vld [vmem:[%s1 + $0x6b0] sm:$0xff]
        %v742 = vld [vmem:[%s1 + $0x6b8] sm:$0xff]
        %v743 = vld [vmem:[%s1 + $0x6c0] sm:$0xff]
        %v744 = vld [vmem:[%s1 + $0x6c8] sm:$0xff]
        %v745 = vld [vmem:[%s1 + $0x6d0] sm:$0xff]
        %v746 = vld [vmem:[%s1 + $0x6d8] sm:$0xff]
        %v747 = vld [vmem:[%s1 + $0x6e0] sm:$0xff]
        %v748 = vld [vmem:[%s1 + $0x6e8] sm:$0xff]
        %v749 = vld [vmem:[%s1 + $0x6f0] sm:$0xff]
        %v750 = vld [vmem:[%s1 + $0x6f8] sm:$0xff]
        %v751 = vld [vmem:[%s1 + $0x700] sm:$0xff]
        %v752 = vld [vmem:[%s1 + $0x708] sm:$0xff]
        %v753 = vld [vmem:[%s1 + $0x710] sm:$0xff]
        %v754 = vld [vmem:[%s1 + $0x718] sm:$0xff]
        %v755 = vld [vmem:[%s1 + $0x720] sm:$0xff]
        %v756 = vld [vmem:[%s1 + $0x728] sm:$0xff]
        %v757 = vld [vmem:[%s1 + $0x730] sm:$0xff]
        %v758 = vld [vmem:[%s1 + $0x738] sm:$0xff]
        %v759 = vld [vmem:[%s1 + $0x740] sm:$0xff]
        %v760 = vld [vmem:[%s1 + $0x748] sm:$0xff]
        %v761 = vld [vmem:[%s1 + $0x750] sm:$0xff]
        %v762 = vld [vmem:[%s1 + $0x758] sm:$0xff]
        %v763 = vld [vmem:[%s1 + $0x760] sm:$0xff]
        %v764 = vld [vmem:[%s1 + $0x768] sm:$0xff]
        %v765 = vld [vmem:[%s1 + $0x770] sm:$0xff]
        %v766 = vld [vmem:[%s1 + $0x778] sm:$0xff]
        %v767 = vld [vmem:[%s1 + $0x780] sm:$0xff]
        %v768 = vld [vmem:[%s1 + $0x788] sm:$0xff]
        %v769 = vld [vmem:[%s1 + $0x790] sm:$0xff]
        %v770 = vld [vmem:[%s1 + $0x798] sm:$0xff]
        %v771 = vld [vmem:[%s1 + $0x7a0] sm:$0xff]
        %v772 = vld [vmem:[%s1 + $0x7a8] sm:$0xff]
        %v773 = vld [vmem:[%s1 + $0x7b0] sm:$0xff]
        %v774 = vld [vmem:[%s1 + $0x7b8] sm:$0xff]
        %v775 = vld [vmem:[%s1 + $0x7c0] sm:$0xff]
        %v776 = vld [vmem:[%s1 + $0x7c8] sm:$0xff]
        %v777 = vld [vmem:[%s1 + $0x7d0] sm:$0xff]
        %v778 = vld [vmem:[%s1 + $0x7d8] sm:$0xff]
        %v779 = vld [vmem:[%s1 + $0x7e0] sm:$0xff]
        %v780 = vld [vmem:[%s1 + $0x7e8] sm:$0xff]
        %v781 = vld [vmem:[%s1 + $0x7f0] sm:$0xff]
        %v782 = vld [vmem:[%s1 + $0x7f8] sm:$0xff]
        %784 = vset.pattern.permute.xlu0 0
        %785 = vperm.xlu0 %784, %v271
        %v786 = vpop.permute.xlu0 %785
        %789 = vset.pattern.permute.xlu0 0
        %790 = vperm.xlu0 %789, %v272
        %v791 = vpop.permute.xlu0 %790
        %794 = vset.pattern.permute.xlu0 0
        %795 = vperm.xlu0 %794, %v273
        %v796 = vpop.permute.xlu0 %795
        %799 = vset.pattern.permute.xlu0 0
        %800 = vperm.xlu0 %799, %v274
        %v801 = vpop.permute.xlu0 %800
        %804 = vset.pattern.permute.xlu0 0
        %805 = vperm.xlu0 %804, %v275
        %v806 = vpop.permute.xlu0 %805
        %809 = vset.pattern.permute.xlu0 0
        %810 = vperm.xlu0 %809, %v276
        %v811 = vpop.permute.xlu0 %810
        %814 = vset.pattern.permute.xlu0 0
        %815 = vperm.xlu0 %814, %v277
        %v816 = vpop.permute.xlu0 %815
        %819 = vset.pattern.permute.xlu0 0
        %820 = vperm.xlu0 %819, %v278
        %v821 = vpop.permute.xlu0 %820
        %824 = vset.pattern.permute.xlu0 0
        %825 = vperm.xlu0 %824, %v279
        %v826 = vpop.permute.xlu0 %825
        %829 = vset.pattern.permute.xlu0 0
        %830 = vperm.xlu0 %829, %v280
        %v831 = vpop.permute.xlu0 %830
        %834 = vset.pattern.permute.xlu0 0
        %835 = vperm.xlu0 %834, %v281
        %v836 = vpop.permute.xlu0 %835
        %839 = vset.pattern.permute.xlu0 0
        %840 = vperm.xlu0 %839, %v282
        %v841 = vpop.permute.xlu0 %840
        %844 = vset.pattern.permute.xlu0 0
        %845 = vperm.xlu0 %844, %v283
        %v846 = vpop.permute.xlu0 %845
        %849 = vset.pattern.permute.xlu0 0
        %850 = vperm.xlu0 %849, %v284
        %v851 = vpop.permute.xlu0 %850
        %854 = vset.pattern.permute.xlu0 0
        %855 = vperm.xlu0 %854, %v285
        %v856 = vpop.permute.xlu0 %855
        %859 = vset.pattern.permute.xlu0 0
        %860 = vperm.xlu0 %859, %v286
        %v861 = vpop.permute.xlu0 %860
        %864 = vset.pattern.permute.xlu0 0
        %865 = vperm.xlu0 %864, %v287
        %v866 = vpop.permute.xlu0 %865
        %869 = vset.pattern.permute.xlu0 0
        %870 = vperm.xlu0 %869, %v288
        %v871 = vpop.permute.xlu0 %870
        %874 = vset.pattern.permute.xlu0 0
        %875 = vperm.xlu0 %874, %v289
        %v876 = vpop.permute.xlu0 %875
        %879 = vset.pattern.permute.xlu0 0
        %880 = vperm.xlu0 %879, %v290
        %v881 = vpop.permute.xlu0 %880
        %884 = vset.pattern.permute.xlu0 0
        %885 = vperm.xlu0 %884, %v291
        %v886 = vpop.permute.xlu0 %885
        %889 = vset.pattern.permute.xlu0 0
        %890 = vperm.xlu0 %889, %v292
        %v891 = vpop.permute.xlu0 %890
        %894 = vset.pattern.permute.xlu0 0
        %895 = vperm.xlu0 %894, %v293
        %v896 = vpop.permute.xlu0 %895
        %899 = vset.pattern.permute.xlu0 0
        %900 = vperm.xlu0 %899, %v294
        %v901 = vpop.permute.xlu0 %900
        %904 = vset.pattern.permute.xlu0 0
        %905 = vperm.xlu0 %904, %v295
        %v906 = vpop.permute.xlu0 %905
        %909 = vset.pattern.permute.xlu0 0
        %910 = vperm.xlu0 %909, %v296
        %v911 = vpop.permute.xlu0 %910
        %914 = vset.pattern.permute.xlu0 0
        %915 = vperm.xlu0 %914, %v297
        %v916 = vpop.permute.xlu0 %915
        %919 = vset.pattern.permute.xlu0 0
        %920 = vperm.xlu0 %919, %v298
        %v921 = vpop.permute.xlu0 %920
        %924 = vset.pattern.permute.xlu0 0
        %925 = vperm.xlu0 %924, %v299
        %v926 = vpop.permute.xlu0 %925
        %929 = vset.pattern.permute.xlu0 0
        %930 = vperm.xlu0 %929, %v300
        %v931 = vpop.permute.xlu0 %930
        %934 = vset.pattern.permute.xlu0 0
        %935 = vperm.xlu0 %934, %v301
        %v936 = vpop.permute.xlu0 %935
        %939 = vset.pattern.permute.xlu0 0
        %940 = vperm.xlu0 %939, %v302
        %v941 = vpop.permute.xlu0 %940
        %944 = vset.pattern.permute.xlu0 0
        %945 = vperm.xlu0 %944, %v303
        %v946 = vpop.permute.xlu0 %945
        %949 = vset.pattern.permute.xlu0 0
        %950 = vperm.xlu0 %949, %v304
        %v951 = vpop.permute.xlu0 %950
        %954 = vset.pattern.permute.xlu0 0
        %955 = vperm.xlu0 %954, %v305
        %v956 = vpop.permute.xlu0 %955
        %959 = vset.pattern.permute.xlu0 0
        %960 = vperm.xlu0 %959, %v306
        %v961 = vpop.permute.xlu0 %960
        %964 = vset.pattern.permute.xlu0 0
        %965 = vperm.xlu0 %964, %v307
        %v966 = vpop.permute.xlu0 %965
        %969 = vset.pattern.permute.xlu0 0
        %970 = vperm.xlu0 %969, %v308
        %v971 = vpop.permute.xlu0 %970
        %974 = vset.pattern.permute.xlu0 0
        %975 = vperm.xlu0 %974, %v309
        %v976 = vpop.permute.xlu0 %975
        %979 = vset.pattern.permute.xlu0 0
        %980 = vperm.xlu0 %979, %v310
        %v981 = vpop.permute.xlu0 %980
        %984 = vset.pattern.permute.xlu0 0
        %985 = vperm.xlu0 %984, %v311
        %v986 = vpop.permute.xlu0 %985
        %989 = vset.pattern.permute.xlu0 0
        %990 = vperm.xlu0 %989, %v312
        %v991 = vpop.permute.xlu0 %990
        %994 = vset.pattern.permute.xlu0 0
        %995 = vperm.xlu0 %994, %v313
        %v996 = vpop.permute.xlu0 %995
        %999 = vset.pattern.permute.xlu0 0
        %1000 = vperm.xlu0 %999, %v314
        %v1001 = vpop.permute.xlu0 %1000
        %1004 = vset.pattern.permute.xlu0 0
        %1005 = vperm.xlu0 %1004, %v315
        %v1006 = vpop.permute.xlu0 %1005
        %1009 = vset.pattern.permute.xlu0 0
        %1010 = vperm.xlu0 %1009, %v316
        %v1011 = vpop.permute.xlu0 %1010
        %1014 = vset.pattern.permute.xlu0 0
        %1015 = vperm.xlu0 %1014, %v317
        %v1016 = vpop.permute.xlu0 %1015
        %1019 = vset.pattern.permute.xlu0 0
        %1020 = vperm.xlu0 %1019, %v318
        %v1021 = vpop.permute.xlu0 %1020
        %1024 = vset.pattern.permute.xlu0 0
        %1025 = vperm.xlu0 %1024, %v319
        %v1026 = vpop.permute.xlu0 %1025
        %1029 = vset.pattern.permute.xlu0 0
        %1030 = vperm.xlu0 %1029, %v320
        %v1031 = vpop.permute.xlu0 %1030
        %1034 = vset.pattern.permute.xlu0 0
        %1035 = vperm.xlu0 %1034, %v321
        %v1036 = vpop.permute.xlu0 %1035
        %1039 = vset.pattern.permute.xlu0 0
        %1040 = vperm.xlu0 %1039, %v322
        %v1041 = vpop.permute.xlu0 %1040
        %1044 = vset.pattern.permute.xlu0 0
        %1045 = vperm.xlu0 %1044, %v323
        %v1046 = vpop.permute.xlu0 %1045
        %1049 = vset.pattern.permute.xlu0 0
        %1050 = vperm.xlu0 %1049, %v324
        %v1051 = vpop.permute.xlu0 %1050
        %1054 = vset.pattern.permute.xlu0 0
        %1055 = vperm.xlu0 %1054, %v325
        %v1056 = vpop.permute.xlu0 %1055
        %1059 = vset.pattern.permute.xlu0 0
        %1060 = vperm.xlu0 %1059, %v326
        %v1061 = vpop.permute.xlu0 %1060
        %1064 = vset.pattern.permute.xlu0 0
        %1065 = vperm.xlu0 %1064, %v327
        %v1066 = vpop.permute.xlu0 %1065
        %1069 = vset.pattern.permute.xlu0 0
        %1070 = vperm.xlu0 %1069, %v328
        %v1071 = vpop.permute.xlu0 %1070
        %1074 = vset.pattern.permute.xlu0 0
        %1075 = vperm.xlu0 %1074, %v329
        %v1076 = vpop.permute.xlu0 %1075
        %1079 = vset.pattern.permute.xlu0 0
        %1080 = vperm.xlu0 %1079, %v330
        %v1081 = vpop.permute.xlu0 %1080
        %1084 = vset.pattern.permute.xlu0 0
        %1085 = vperm.xlu0 %1084, %v331
        %v1086 = vpop.permute.xlu0 %1085
        %1089 = vset.pattern.permute.xlu0 0
        %1090 = vperm.xlu0 %1089, %v332
        %v1091 = vpop.permute.xlu0 %1090
        %1094 = vset.pattern.permute.xlu0 0
        %1095 = vperm.xlu0 %1094, %v333
        %v1096 = vpop.permute.xlu0 %1095
        %1099 = vset.pattern.permute.xlu0 0
        %1100 = vperm.xlu0 %1099, %v334
        %v1101 = vpop.permute.xlu0 %1100
        %1104 = vset.pattern.permute.xlu0 0
        %1105 = vperm.xlu0 %1104, %v335
        %v1106 = vpop.permute.xlu0 %1105
        %1109 = vset.pattern.permute.xlu0 0
        %1110 = vperm.xlu0 %1109, %v336
        %v1111 = vpop.permute.xlu0 %1110
        %1114 = vset.pattern.permute.xlu0 0
        %1115 = vperm.xlu0 %1114, %v337
        %v1116 = vpop.permute.xlu0 %1115
        %1119 = vset.pattern.permute.xlu0 0
        %1120 = vperm.xlu0 %1119, %v338
        %v1121 = vpop.permute.xlu0 %1120
        %1124 = vset.pattern.permute.xlu0 0
        %1125 = vperm.xlu0 %1124, %v339
        %v1126 = vpop.permute.xlu0 %1125
        %1129 = vset.pattern.permute.xlu0 0
        %1130 = vperm.xlu0 %1129, %v340
        %v1131 = vpop.permute.xlu0 %1130
        %1134 = vset.pattern.permute.xlu0 0
        %1135 = vperm.xlu0 %1134, %v341
        %v1136 = vpop.permute.xlu0 %1135
        %1139 = vset.pattern.permute.xlu0 0
        %1140 = vperm.xlu0 %1139, %v342
        %v1141 = vpop.permute.xlu0 %1140
        %1144 = vset.pattern.permute.xlu0 0
        %1145 = vperm.xlu0 %1144, %v343
        %v1146 = vpop.permute.xlu0 %1145
        %1149 = vset.pattern.permute.xlu0 0
        %1150 = vperm.xlu0 %1149, %v344
        %v1151 = vpop.permute.xlu0 %1150
        %1154 = vset.pattern.permute.xlu0 0
        %1155 = vperm.xlu0 %1154, %v345
        %v1156 = vpop.permute.xlu0 %1155
        %1159 = vset.pattern.permute.xlu0 0
        %1160 = vperm.xlu0 %1159, %v346
        %v1161 = vpop.permute.xlu0 %1160
        %1164 = vset.pattern.permute.xlu0 0
        %1165 = vperm.xlu0 %1164, %v347
        %v1166 = vpop.permute.xlu0 %1165
        %1169 = vset.pattern.permute.xlu0 0
        %1170 = vperm.xlu0 %1169, %v348
        %v1171 = vpop.permute.xlu0 %1170
        %1174 = vset.pattern.permute.xlu0 0
        %1175 = vperm.xlu0 %1174, %v349
        %v1176 = vpop.permute.xlu0 %1175
        %1179 = vset.pattern.permute.xlu0 0
        %1180 = vperm.xlu0 %1179, %v350
        %v1181 = vpop.permute.xlu0 %1180
        %1184 = vset.pattern.permute.xlu0 0
        %1185 = vperm.xlu0 %1184, %v351
        %v1186 = vpop.permute.xlu0 %1185
        %1189 = vset.pattern.permute.xlu0 0
        %1190 = vperm.xlu0 %1189, %v352
        %v1191 = vpop.permute.xlu0 %1190
        %1194 = vset.pattern.permute.xlu0 0
        %1195 = vperm.xlu0 %1194, %v353
        %v1196 = vpop.permute.xlu0 %1195
        %1199 = vset.pattern.permute.xlu0 0
        %1200 = vperm.xlu0 %1199, %v354
        %v1201 = vpop.permute.xlu0 %1200
        %1204 = vset.pattern.permute.xlu0 0
        %1205 = vperm.xlu0 %1204, %v355
        %v1206 = vpop.permute.xlu0 %1205
        %1209 = vset.pattern.permute.xlu0 0
        %1210 = vperm.xlu0 %1209, %v356
        %v1211 = vpop.permute.xlu0 %1210
        %1214 = vset.pattern.permute.xlu0 0
        %1215 = vperm.xlu0 %1214, %v357
        %v1216 = vpop.permute.xlu0 %1215
        %1219 = vset.pattern.permute.xlu0 0
        %1220 = vperm.xlu0 %1219, %v358
        %v1221 = vpop.permute.xlu0 %1220
        %1224 = vset.pattern.permute.xlu0 0
        %1225 = vperm.xlu0 %1224, %v359
        %v1226 = vpop.permute.xlu0 %1225
        %1229 = vset.pattern.permute.xlu0 0
        %1230 = vperm.xlu0 %1229, %v360
        %v1231 = vpop.permute.xlu0 %1230
        %1234 = vset.pattern.permute.xlu0 0
        %1235 = vperm.xlu0 %1234, %v361
        %v1236 = vpop.permute.xlu0 %1235
        %1239 = vset.pattern.permute.xlu0 0
        %1240 = vperm.xlu0 %1239, %v362
        %v1241 = vpop.permute.xlu0 %1240
        %1244 = vset.pattern.permute.xlu0 0
        %1245 = vperm.xlu0 %1244, %v363
        %v1246 = vpop.permute.xlu0 %1245
        %1249 = vset.pattern.permute.xlu0 0
        %1250 = vperm.xlu0 %1249, %v364
        %v1251 = vpop.permute.xlu0 %1250
        %1254 = vset.pattern.permute.xlu0 0
        %1255 = vperm.xlu0 %1254, %v365
        %v1256 = vpop.permute.xlu0 %1255
        %1259 = vset.pattern.permute.xlu0 0
        %1260 = vperm.xlu0 %1259, %v366
        %v1261 = vpop.permute.xlu0 %1260
        %1264 = vset.pattern.permute.xlu0 0
        %1265 = vperm.xlu0 %1264, %v367
        %v1266 = vpop.permute.xlu0 %1265
        %1269 = vset.pattern.permute.xlu0 0
        %1270 = vperm.xlu0 %1269, %v368
        %v1271 = vpop.permute.xlu0 %1270
        %1274 = vset.pattern.permute.xlu0 0
        %1275 = vperm.xlu0 %1274, %v369
        %v1276 = vpop.permute.xlu0 %1275
        %1279 = vset.pattern.permute.xlu0 0
        %1280 = vperm.xlu0 %1279, %v370
        %v1281 = vpop.permute.xlu0 %1280
        %1284 = vset.pattern.permute.xlu0 0
        %1285 = vperm.xlu0 %1284, %v371
        %v1286 = vpop.permute.xlu0 %1285
        %1289 = vset.pattern.permute.xlu0 0
        %1290 = vperm.xlu0 %1289, %v372
        %v1291 = vpop.permute.xlu0 %1290
        %1294 = vset.pattern.permute.xlu0 0
        %1295 = vperm.xlu0 %1294, %v373
        %v1296 = vpop.permute.xlu0 %1295
        %1299 = vset.pattern.permute.xlu0 0
        %1300 = vperm.xlu0 %1299, %v374
        %v1301 = vpop.permute.xlu0 %1300
        %1304 = vset.pattern.permute.xlu0 0
        %1305 = vperm.xlu0 %1304, %v375
        %v1306 = vpop.permute.xlu0 %1305
        %1309 = vset.pattern.permute.xlu0 0
        %1310 = vperm.xlu0 %1309, %v376
        %v1311 = vpop.permute.xlu0 %1310
        %1314 = vset.pattern.permute.xlu0 0
        %1315 = vperm.xlu0 %1314, %v377
        %v1316 = vpop.permute.xlu0 %1315
        %1319 = vset.pattern.permute.xlu0 0
        %1320 = vperm.xlu0 %1319, %v378
        %v1321 = vpop.permute.xlu0 %1320
        %1324 = vset.pattern.permute.xlu0 0
        %1325 = vperm.xlu0 %1324, %v379
        %v1326 = vpop.permute.xlu0 %1325
        %1329 = vset.pattern.permute.xlu0 0
        %1330 = vperm.xlu0 %1329, %v380
        %v1331 = vpop.permute.xlu0 %1330
        %1334 = vset.pattern.permute.xlu0 0
        %1335 = vperm.xlu0 %1334, %v381
        %v1336 = vpop.permute.xlu0 %1335
        %1339 = vset.pattern.permute.xlu0 0
        %1340 = vperm.xlu0 %1339, %v382
        %v1341 = vpop.permute.xlu0 %1340
        %1344 = vset.pattern.permute.xlu0 0
        %1345 = vperm.xlu0 %1344, %v383
        %v1346 = vpop.permute.xlu0 %1345
        %1349 = vset.pattern.permute.xlu0 0
        %1350 = vperm.xlu0 %1349, %v384
        %v1351 = vpop.permute.xlu0 %1350
        %1354 = vset.pattern.permute.xlu0 0
        %1355 = vperm.xlu0 %1354, %v385
        %v1356 = vpop.permute.xlu0 %1355
        %1359 = vset.pattern.permute.xlu0 0
        %1360 = vperm.xlu0 %1359, %v386
        %v1361 = vpop.permute.xlu0 %1360
        %1364 = vset.pattern.permute.xlu0 0
        %1365 = vperm.xlu0 %1364, %v387
        %v1366 = vpop.permute.xlu0 %1365
        %1369 = vset.pattern.permute.xlu0 0
        %1370 = vperm.xlu0 %1369, %v388
        %v1371 = vpop.permute.xlu0 %1370
        %1374 = vset.pattern.permute.xlu0 0
        %1375 = vperm.xlu0 %1374, %v389
        %v1376 = vpop.permute.xlu0 %1375
        %1379 = vset.pattern.permute.xlu0 0
        %1380 = vperm.xlu0 %1379, %v390
        %v1381 = vpop.permute.xlu0 %1380
        %1384 = vset.pattern.permute.xlu0 0
        %1385 = vperm.xlu0 %1384, %v391
        %v1386 = vpop.permute.xlu0 %1385
        %1389 = vset.pattern.permute.xlu0 0
        %1390 = vperm.xlu0 %1389, %v392
        %v1391 = vpop.permute.xlu0 %1390
        %1394 = vset.pattern.permute.xlu0 0
        %1395 = vperm.xlu0 %1394, %v393
        %v1396 = vpop.permute.xlu0 %1395
        %1399 = vset.pattern.permute.xlu0 0
        %1400 = vperm.xlu0 %1399, %v394
        %v1401 = vpop.permute.xlu0 %1400
        %1404 = vset.pattern.permute.xlu0 0
        %1405 = vperm.xlu0 %1404, %v395
        %v1406 = vpop.permute.xlu0 %1405
        %1409 = vset.pattern.permute.xlu0 0
        %1410 = vperm.xlu0 %1409, %v396
        %v1411 = vpop.permute.xlu0 %1410
        %1414 = vset.pattern.permute.xlu0 0
        %1415 = vperm.xlu0 %1414, %v397
        %v1416 = vpop.permute.xlu0 %1415
        %1419 = vset.pattern.permute.xlu0 0
        %1420 = vperm.xlu0 %1419, %v398
        %v1421 = vpop.permute.xlu0 %1420
        %1424 = vset.pattern.permute.xlu0 0
        %1425 = vperm.xlu0 %1424, %v399
        %v1426 = vpop.permute.xlu0 %1425
        %1429 = vset.pattern.permute.xlu0 0
        %1430 = vperm.xlu0 %1429, %v400
        %v1431 = vpop.permute.xlu0 %1430
        %1434 = vset.pattern.permute.xlu0 0
        %1435 = vperm.xlu0 %1434, %v401
        %v1436 = vpop.permute.xlu0 %1435
        %1439 = vset.pattern.permute.xlu0 0
        %1440 = vperm.xlu0 %1439, %v402
        %v1441 = vpop.permute.xlu0 %1440
        %1444 = vset.pattern.permute.xlu0 0
        %1445 = vperm.xlu0 %1444, %v403
        %v1446 = vpop.permute.xlu0 %1445
        %1449 = vset.pattern.permute.xlu0 0
        %1450 = vperm.xlu0 %1449, %v404
        %v1451 = vpop.permute.xlu0 %1450
        %1454 = vset.pattern.permute.xlu0 0
        %1455 = vperm.xlu0 %1454, %v405
        %v1456 = vpop.permute.xlu0 %1455
        %1459 = vset.pattern.permute.xlu0 0
        %1460 = vperm.xlu0 %1459, %v406
        %v1461 = vpop.permute.xlu0 %1460
        %1464 = vset.pattern.permute.xlu0 0
        %1465 = vperm.xlu0 %1464, %v407
        %v1466 = vpop.permute.xlu0 %1465
        %1469 = vset.pattern.permute.xlu0 0
        %1470 = vperm.xlu0 %1469, %v408
        %v1471 = vpop.permute.xlu0 %1470
        %1474 = vset.pattern.permute.xlu0 0
        %1475 = vperm.xlu0 %1474, %v409
        %v1476 = vpop.permute.xlu0 %1475
        %1479 = vset.pattern.permute.xlu0 0
        %1480 = vperm.xlu0 %1479, %v410
        %v1481 = vpop.permute.xlu0 %1480
        %1484 = vset.pattern.permute.xlu0 0
        %1485 = vperm.xlu0 %1484, %v411
        %v1486 = vpop.permute.xlu0 %1485
        %1489 = vset.pattern.permute.xlu0 0
        %1490 = vperm.xlu0 %1489, %v412
        %v1491 = vpop.permute.xlu0 %1490
        %1494 = vset.pattern.permute.xlu0 0
        %1495 = vperm.xlu0 %1494, %v413
        %v1496 = vpop.permute.xlu0 %1495
        %1499 = vset.pattern.permute.xlu0 0
        %1500 = vperm.xlu0 %1499, %v414
        %v1501 = vpop.permute.xlu0 %1500
        %1504 = vset.pattern.permute.xlu0 0
        %1505 = vperm.xlu0 %1504, %v415
        %v1506 = vpop.permute.xlu0 %1505
        %1509 = vset.pattern.permute.xlu0 0
        %1510 = vperm.xlu0 %1509, %v416
        %v1511 = vpop.permute.xlu0 %1510
        %1514 = vset.pattern.permute.xlu0 0
        %1515 = vperm.xlu0 %1514, %v417
        %v1516 = vpop.permute.xlu0 %1515
        %1519 = vset.pattern.permute.xlu0 0
        %1520 = vperm.xlu0 %1519, %v418
        %v1521 = vpop.permute.xlu0 %1520
        %1524 = vset.pattern.permute.xlu0 0
        %1525 = vperm.xlu0 %1524, %v419
        %v1526 = vpop.permute.xlu0 %1525
        %1529 = vset.pattern.permute.xlu0 0
        %1530 = vperm.xlu0 %1529, %v420
        %v1531 = vpop.permute.xlu0 %1530
        %1534 = vset.pattern.permute.xlu0 0
        %1535 = vperm.xlu0 %1534, %v421
        %v1536 = vpop.permute.xlu0 %1535
        %1539 = vset.pattern.permute.xlu0 0
        %1540 = vperm.xlu0 %1539, %v422
        %v1541 = vpop.permute.xlu0 %1540
        %1544 = vset.pattern.permute.xlu0 0
        %1545 = vperm.xlu0 %1544, %v423
        %v1546 = vpop.permute.xlu0 %1545
        %1549 = vset.pattern.permute.xlu0 0
        %1550 = vperm.xlu0 %1549, %v424
        %v1551 = vpop.permute.xlu0 %1550
        %1554 = vset.pattern.permute.xlu0 0
        %1555 = vperm.xlu0 %1554, %v425
        %v1556 = vpop.permute.xlu0 %1555
        %1559 = vset.pattern.permute.xlu0 0
        %1560 = vperm.xlu0 %1559, %v426
        %v1561 = vpop.permute.xlu0 %1560
        %1564 = vset.pattern.permute.xlu0 0
        %1565 = vperm.xlu0 %1564, %v427
        %v1566 = vpop.permute.xlu0 %1565
        %1569 = vset.pattern.permute.xlu0 0
        %1570 = vperm.xlu0 %1569, %v428
        %v1571 = vpop.permute.xlu0 %1570
        %1574 = vset.pattern.permute.xlu0 0
        %1575 = vperm.xlu0 %1574, %v429
        %v1576 = vpop.permute.xlu0 %1575
        %1579 = vset.pattern.permute.xlu0 0
        %1580 = vperm.xlu0 %1579, %v430
        %v1581 = vpop.permute.xlu0 %1580
        %1584 = vset.pattern.permute.xlu0 0
        %1585 = vperm.xlu0 %1584, %v431
        %v1586 = vpop.permute.xlu0 %1585
        %1589 = vset.pattern.permute.xlu0 0
        %1590 = vperm.xlu0 %1589, %v432
        %v1591 = vpop.permute.xlu0 %1590
        %1594 = vset.pattern.permute.xlu0 0
        %1595 = vperm.xlu0 %1594, %v433
        %v1596 = vpop.permute.xlu0 %1595
        %1599 = vset.pattern.permute.xlu0 0
        %1600 = vperm.xlu0 %1599, %v434
        %v1601 = vpop.permute.xlu0 %1600
        %1604 = vset.pattern.permute.xlu0 0
        %1605 = vperm.xlu0 %1604, %v435
        %v1606 = vpop.permute.xlu0 %1605
        %1609 = vset.pattern.permute.xlu0 0
        %1610 = vperm.xlu0 %1609, %v436
        %v1611 = vpop.permute.xlu0 %1610
        %1614 = vset.pattern.permute.xlu0 0
        %1615 = vperm.xlu0 %1614, %v437
        %v1616 = vpop.permute.xlu0 %1615
        %1619 = vset.pattern.permute.xlu0 0
        %1620 = vperm.xlu0 %1619, %v438
        %v1621 = vpop.permute.xlu0 %1620
        %1624 = vset.pattern.permute.xlu0 0
        %1625 = vperm.xlu0 %1624, %v439
        %v1626 = vpop.permute.xlu0 %1625
        %1629 = vset.pattern.permute.xlu0 0
        %1630 = vperm.xlu0 %1629, %v440
        %v1631 = vpop.permute.xlu0 %1630
        %1634 = vset.pattern.permute.xlu0 0
        %1635 = vperm.xlu0 %1634, %v441
        %v1636 = vpop.permute.xlu0 %1635
        %1639 = vset.pattern.permute.xlu0 0
        %1640 = vperm.xlu0 %1639, %v442
        %v1641 = vpop.permute.xlu0 %1640
        %1644 = vset.pattern.permute.xlu0 0
        %1645 = vperm.xlu0 %1644, %v443
        %v1646 = vpop.permute.xlu0 %1645
        %1649 = vset.pattern.permute.xlu0 0
        %1650 = vperm.xlu0 %1649, %v444
        %v1651 = vpop.permute.xlu0 %1650
        %1654 = vset.pattern.permute.xlu0 0
        %1655 = vperm.xlu0 %1654, %v445
        %v1656 = vpop.permute.xlu0 %1655
        %1659 = vset.pattern.permute.xlu0 0
        %1660 = vperm.xlu0 %1659, %v446
        %v1661 = vpop.permute.xlu0 %1660
        %1664 = vset.pattern.permute.xlu0 0
        %1665 = vperm.xlu0 %1664, %v447
        %v1666 = vpop.permute.xlu0 %1665
        %1669 = vset.pattern.permute.xlu0 0
        %1670 = vperm.xlu0 %1669, %v448
        %v1671 = vpop.permute.xlu0 %1670
        %1674 = vset.pattern.permute.xlu0 0
        %1675 = vperm.xlu0 %1674, %v449
        %v1676 = vpop.permute.xlu0 %1675
        %1679 = vset.pattern.permute.xlu0 0
        %1680 = vperm.xlu0 %1679, %v450
        %v1681 = vpop.permute.xlu0 %1680
        %1684 = vset.pattern.permute.xlu0 0
        %1685 = vperm.xlu0 %1684, %v451
        %v1686 = vpop.permute.xlu0 %1685
        %1689 = vset.pattern.permute.xlu0 0
        %1690 = vperm.xlu0 %1689, %v452
        %v1691 = vpop.permute.xlu0 %1690
        %1694 = vset.pattern.permute.xlu0 0
        %1695 = vperm.xlu0 %1694, %v453
        %v1696 = vpop.permute.xlu0 %1695
        %1699 = vset.pattern.permute.xlu0 0
        %1700 = vperm.xlu0 %1699, %v454
        %v1701 = vpop.permute.xlu0 %1700
        %1704 = vset.pattern.permute.xlu0 0
        %1705 = vperm.xlu0 %1704, %v455
        %v1706 = vpop.permute.xlu0 %1705
        %1709 = vset.pattern.permute.xlu0 0
        %1710 = vperm.xlu0 %1709, %v456
        %v1711 = vpop.permute.xlu0 %1710
        %1714 = vset.pattern.permute.xlu0 0
        %1715 = vperm.xlu0 %1714, %v457
        %v1716 = vpop.permute.xlu0 %1715
        %1719 = vset.pattern.permute.xlu0 0
        %1720 = vperm.xlu0 %1719, %v458
        %v1721 = vpop.permute.xlu0 %1720
        %1724 = vset.pattern.permute.xlu0 0
        %1725 = vperm.xlu0 %1724, %v459
        %v1726 = vpop.permute.xlu0 %1725
        %1729 = vset.pattern.permute.xlu0 0
        %1730 = vperm.xlu0 %1729, %v460
        %v1731 = vpop.permute.xlu0 %1730
        %1734 = vset.pattern.permute.xlu0 0
        %1735 = vperm.xlu0 %1734, %v461
        %v1736 = vpop.permute.xlu0 %1735
        %1739 = vset.pattern.permute.xlu0 0
        %1740 = vperm.xlu0 %1739, %v462
        %v1741 = vpop.permute.xlu0 %1740
        %1744 = vset.pattern.permute.xlu0 0
        %1745 = vperm.xlu0 %1744, %v463
        %v1746 = vpop.permute.xlu0 %1745
        %1749 = vset.pattern.permute.xlu0 0
        %1750 = vperm.xlu0 %1749, %v464
        %v1751 = vpop.permute.xlu0 %1750
        %1754 = vset.pattern.permute.xlu0 0
        %1755 = vperm.xlu0 %1754, %v465
        %v1756 = vpop.permute.xlu0 %1755
        %1759 = vset.pattern.permute.xlu0 0
        %1760 = vperm.xlu0 %1759, %v466
        %v1761 = vpop.permute.xlu0 %1760
        %1764 = vset.pattern.permute.xlu0 0
        %1765 = vperm.xlu0 %1764, %v467
        %v1766 = vpop.permute.xlu0 %1765
        %1769 = vset.pattern.permute.xlu0 0
        %1770 = vperm.xlu0 %1769, %v468
        %v1771 = vpop.permute.xlu0 %1770
        %1774 = vset.pattern.permute.xlu0 0
        %1775 = vperm.xlu0 %1774, %v469
        %v1776 = vpop.permute.xlu0 %1775
        %1779 = vset.pattern.permute.xlu0 0
        %1780 = vperm.xlu0 %1779, %v470
        %v1781 = vpop.permute.xlu0 %1780
        %1784 = vset.pattern.permute.xlu0 0
        %1785 = vperm.xlu0 %1784, %v471
        %v1786 = vpop.permute.xlu0 %1785
        %1789 = vset.pattern.permute.xlu0 0
        %1790 = vperm.xlu0 %1789, %v472
        %v1791 = vpop.permute.xlu0 %1790
        %1794 = vset.pattern.permute.xlu0 0
        %1795 = vperm.xlu0 %1794, %v473
        %v1796 = vpop.permute.xlu0 %1795
        %1799 = vset.pattern.permute.xlu0 0
        %1800 = vperm.xlu0 %1799, %v474
        %v1801 = vpop.permute.xlu0 %1800
        %1804 = vset.pattern.permute.xlu0 0
        %1805 = vperm.xlu0 %1804, %v475
        %v1806 = vpop.permute.xlu0 %1805
        %1809 = vset.pattern.permute.xlu0 0
        %1810 = vperm.xlu0 %1809, %v476
        %v1811 = vpop.permute.xlu0 %1810
        %1814 = vset.pattern.permute.xlu0 0
        %1815 = vperm.xlu0 %1814, %v477
        %v1816 = vpop.permute.xlu0 %1815
        %1819 = vset.pattern.permute.xlu0 0
        %1820 = vperm.xlu0 %1819, %v478
        %v1821 = vpop.permute.xlu0 %1820
        %1824 = vset.pattern.permute.xlu0 0
        %1825 = vperm.xlu0 %1824, %v479
        %v1826 = vpop.permute.xlu0 %1825
        %1829 = vset.pattern.permute.xlu0 0
        %1830 = vperm.xlu0 %1829, %v480
        %v1831 = vpop.permute.xlu0 %1830
        %1834 = vset.pattern.permute.xlu0 0
        %1835 = vperm.xlu0 %1834, %v481
        %v1836 = vpop.permute.xlu0 %1835
        %1839 = vset.pattern.permute.xlu0 0
        %1840 = vperm.xlu0 %1839, %v482
        %v1841 = vpop.permute.xlu0 %1840
        %1844 = vset.pattern.permute.xlu0 0
        %1845 = vperm.xlu0 %1844, %v483
        %v1846 = vpop.permute.xlu0 %1845
        %1849 = vset.pattern.permute.xlu0 0
        %1850 = vperm.xlu0 %1849, %v484
        %v1851 = vpop.permute.xlu0 %1850
        %1854 = vset.pattern.permute.xlu0 0
        %1855 = vperm.xlu0 %1854, %v485
        %v1856 = vpop.permute.xlu0 %1855
        %1859 = vset.pattern.permute.xlu0 0
        %1860 = vperm.xlu0 %1859, %v486
        %v1861 = vpop.permute.xlu0 %1860
        %1864 = vset.pattern.permute.xlu0 0
        %1865 = vperm.xlu0 %1864, %v487
        %v1866 = vpop.permute.xlu0 %1865
        %1869 = vset.pattern.permute.xlu0 0
        %1870 = vperm.xlu0 %1869, %v488
        %v1871 = vpop.permute.xlu0 %1870
        %1874 = vset.pattern.permute.xlu0 0
        %1875 = vperm.xlu0 %1874, %v489
        %v1876 = vpop.permute.xlu0 %1875
        %1879 = vset.pattern.permute.xlu0 0
        %1880 = vperm.xlu0 %1879, %v490
        %v1881 = vpop.permute.xlu0 %1880
        %1884 = vset.pattern.permute.xlu0 0
        %1885 = vperm.xlu0 %1884, %v491
        %v1886 = vpop.permute.xlu0 %1885
        %1889 = vset.pattern.permute.xlu0 0
        %1890 = vperm.xlu0 %1889, %v492
        %v1891 = vpop.permute.xlu0 %1890
        %1894 = vset.pattern.permute.xlu0 0
        %1895 = vperm.xlu0 %1894, %v493
        %v1896 = vpop.permute.xlu0 %1895
        %1899 = vset.pattern.permute.xlu0 0
        %1900 = vperm.xlu0 %1899, %v494
        %v1901 = vpop.permute.xlu0 %1900
        %1904 = vset.pattern.permute.xlu0 0
        %1905 = vperm.xlu0 %1904, %v495
        %v1906 = vpop.permute.xlu0 %1905
        %1909 = vset.pattern.permute.xlu0 0
        %1910 = vperm.xlu0 %1909, %v496
        %v1911 = vpop.permute.xlu0 %1910
        %1914 = vset.pattern.permute.xlu0 0
        %1915 = vperm.xlu0 %1914, %v497
        %v1916 = vpop.permute.xlu0 %1915
        %1919 = vset.pattern.permute.xlu0 0
        %1920 = vperm.xlu0 %1919, %v498
        %v1921 = vpop.permute.xlu0 %1920
        %1924 = vset.pattern.permute.xlu0 0
        %1925 = vperm.xlu0 %1924, %v499
        %v1926 = vpop.permute.xlu0 %1925
        %1929 = vset.pattern.permute.xlu0 0
        %1930 = vperm.xlu0 %1929, %v500
        %v1931 = vpop.permute.xlu0 %1930
        %1934 = vset.pattern.permute.xlu0 0
        %1935 = vperm.xlu0 %1934, %v501
        %v1936 = vpop.permute.xlu0 %1935
        %1939 = vset.pattern.permute.xlu0 0
        %1940 = vperm.xlu0 %1939, %v502
        %v1941 = vpop.permute.xlu0 %1940
        %1944 = vset.pattern.permute.xlu0 0
        %1945 = vperm.xlu0 %1944, %v503
        %v1946 = vpop.permute.xlu0 %1945
        %1949 = vset.pattern.permute.xlu0 0
        %1950 = vperm.xlu0 %1949, %v504
        %v1951 = vpop.permute.xlu0 %1950
        %1954 = vset.pattern.permute.xlu0 0
        %1955 = vperm.xlu0 %1954, %v505
        %v1956 = vpop.permute.xlu0 %1955
        %1959 = vset.pattern.permute.xlu0 0
        %1960 = vperm.xlu0 %1959, %v506
        %v1961 = vpop.permute.xlu0 %1960
        %1964 = vset.pattern.permute.xlu0 0
        %1965 = vperm.xlu0 %1964, %v507
        %v1966 = vpop.permute.xlu0 %1965
        %1969 = vset.pattern.permute.xlu0 0
        %1970 = vperm.xlu0 %1969, %v508
        %v1971 = vpop.permute.xlu0 %1970
        %1974 = vset.pattern.permute.xlu0 0
        %1975 = vperm.xlu0 %1974, %v509
        %v1976 = vpop.permute.xlu0 %1975
        %1979 = vset.pattern.permute.xlu0 0
        %1980 = vperm.xlu0 %1979, %v510
        %v1981 = vpop.permute.xlu0 %1980
        %1984 = vset.pattern.permute.xlu0 0
        %1985 = vperm.xlu0 %1984, %v511
        %v1986 = vpop.permute.xlu0 %1985
        %1989 = vset.pattern.permute.xlu0 0
        %1990 = vperm.xlu0 %1989, %v512
        %v1991 = vpop.permute.xlu0 %1990
        %1994 = vset.pattern.permute.xlu0 0
        %1995 = vperm.xlu0 %1994, %v513
        %v1996 = vpop.permute.xlu0 %1995
        %1999 = vset.pattern.permute.xlu0 0
        %2000 = vperm.xlu0 %1999, %v514
        %v2001 = vpop.permute.xlu0 %2000
        %2004 = vset.pattern.permute.xlu0 0
        %2005 = vperm.xlu0 %2004, %v515
        %v2006 = vpop.permute.xlu0 %2005
        %2009 = vset.pattern.permute.xlu0 0
        %2010 = vperm.xlu0 %2009, %v516
        %v2011 = vpop.permute.xlu0 %2010
        %2014 = vset.pattern.permute.xlu0 0
        %2015 = vperm.xlu0 %2014, %v517
        %v2016 = vpop.permute.xlu0 %2015
        %2019 = vset.pattern.permute.xlu0 0
        %2020 = vperm.xlu0 %2019, %v518
        %v2021 = vpop.permute.xlu0 %2020
        %2024 = vset.pattern.permute.xlu0 0
        %2025 = vperm.xlu0 %2024, %v519
        %v2026 = vpop.permute.xlu0 %2025
        %2029 = vset.pattern.permute.xlu0 0
        %2030 = vperm.xlu0 %2029, %v520
        %v2031 = vpop.permute.xlu0 %2030
        %2034 = vset.pattern.permute.xlu0 0
        %2035 = vperm.xlu0 %2034, %v521
        %v2036 = vpop.permute.xlu0 %2035
        %2039 = vset.pattern.permute.xlu0 0
        %2040 = vperm.xlu0 %2039, %v522
        %v2041 = vpop.permute.xlu0 %2040
        %2044 = vset.pattern.permute.xlu0 0
        %2045 = vperm.xlu0 %2044, %v523
        %v2046 = vpop.permute.xlu0 %2045
        %2049 = vset.pattern.permute.xlu0 0
        %2050 = vperm.xlu0 %2049, %v524
        %v2051 = vpop.permute.xlu0 %2050
        %2054 = vset.pattern.permute.xlu0 0
        %2055 = vperm.xlu0 %2054, %v525
        %v2056 = vpop.permute.xlu0 %2055
        %2059 = vset.pattern.permute.xlu0 0
        %2060 = vperm.xlu0 %2059, %v526
        %v2061 = vpop.permute.xlu0 %2060
        %v2063 = vmul.f32 %v527, %v786
        %v2064 = vmul.f32 %v528, %v791
        %v2065 = vmul.f32 %v529, %v796
        %v2066 = vmul.f32 %v530, %v801
        %v2067 = vmul.f32 %v531, %v806
        %v2068 = vmul.f32 %v532, %v811
        %v2069 = vmul.f32 %v533, %v816
        %v2070 = vmul.f32 %v534, %v821
        %v2071 = vmul.f32 %v535, %v826
        %v2072 = vmul.f32 %v536, %v831
        %v2073 = vmul.f32 %v537, %v836
        %v2074 = vmul.f32 %v538, %v841
        %v2075 = vmul.f32 %v539, %v846
        %v2076 = vmul.f32 %v540, %v851
        %v2077 = vmul.f32 %v541, %v856
        %v2078 = vmul.f32 %v542, %v861
        %v2079 = vmul.f32 %v543, %v866
        %v2080 = vmul.f32 %v544, %v871
        %v2081 = vmul.f32 %v545, %v876
        %v2082 = vmul.f32 %v546, %v881
        %v2083 = vmul.f32 %v547, %v886
        %v2084 = vmul.f32 %v548, %v891
        %v2085 = vmul.f32 %v549, %v896
        %v2086 = vmul.f32 %v550, %v901
        %v2087 = vmul.f32 %v551, %v906
        %v2088 = vmul.f32 %v552, %v911
        %v2089 = vmul.f32 %v553, %v916
        %v2090 = vmul.f32 %v554, %v921
        %v2091 = vmul.f32 %v555, %v926
        %v2092 = vmul.f32 %v556, %v931
        %v2093 = vmul.f32 %v557, %v936
        %v2094 = vmul.f32 %v558, %v941
        %v2095 = vmul.f32 %v559, %v946
        %v2096 = vmul.f32 %v560, %v951
        %v2097 = vmul.f32 %v561, %v956
        %v2098 = vmul.f32 %v562, %v961
        %v2099 = vmul.f32 %v563, %v966
        %v2100 = vmul.f32 %v564, %v971
        %v2101 = vmul.f32 %v565, %v976
        %v2102 = vmul.f32 %v566, %v981
        %v2103 = vmul.f32 %v567, %v986
        %v2104 = vmul.f32 %v568, %v991
        %v2105 = vmul.f32 %v569, %v996
        %v2106 = vmul.f32 %v570, %v1001
        %v2107 = vmul.f32 %v571, %v1006
        %v2108 = vmul.f32 %v572, %v1011
        %v2109 = vmul.f32 %v573, %v1016
        %v2110 = vmul.f32 %v574, %v1021
        %v2111 = vmul.f32 %v575, %v1026
        %v2112 = vmul.f32 %v576, %v1031
        %v2113 = vmul.f32 %v577, %v1036
        %v2114 = vmul.f32 %v578, %v1041
        %v2115 = vmul.f32 %v579, %v1046
        %v2116 = vmul.f32 %v580, %v1051
        %v2117 = vmul.f32 %v581, %v1056
        %v2118 = vmul.f32 %v582, %v1061
        %v2119 = vmul.f32 %v583, %v1066
        %v2120 = vmul.f32 %v584, %v1071
        %v2121 = vmul.f32 %v585, %v1076
        %v2122 = vmul.f32 %v586, %v1081
        %v2123 = vmul.f32 %v587, %v1086
        %v2124 = vmul.f32 %v588, %v1091
        %v2125 = vmul.f32 %v589, %v1096
        %v2126 = vmul.f32 %v590, %v1101
        %v2127 = vmul.f32 %v591, %v1106
        %v2128 = vmul.f32 %v592, %v1111
        %v2129 = vmul.f32 %v593, %v1116
        %v2130 = vmul.f32 %v594, %v1121
        %v2131 = vmul.f32 %v595, %v1126
        %v2132 = vmul.f32 %v596, %v1131
        %v2133 = vmul.f32 %v597, %v1136
        %v2134 = vmul.f32 %v598, %v1141
        %v2135 = vmul.f32 %v599, %v1146
        %v2136 = vmul.f32 %v600, %v1151
        %v2137 = vmul.f32 %v601, %v1156
        %v2138 = vmul.f32 %v602, %v1161
        %v2139 = vmul.f32 %v603, %v1166
        %v2140 = vmul.f32 %v604, %v1171
        %v2141 = vmul.f32 %v605, %v1176
        %v2142 = vmul.f32 %v606, %v1181
        %v2143 = vmul.f32 %v607, %v1186
        %v2144 = vmul.f32 %v608, %v1191
        %v2145 = vmul.f32 %v609, %v1196
        %v2146 = vmul.f32 %v610, %v1201
        %v2147 = vmul.f32 %v611, %v1206
        %v2148 = vmul.f32 %v612, %v1211
        %v2149 = vmul.f32 %v613, %v1216
        %v2150 = vmul.f32 %v614, %v1221
        %v2151 = vmul.f32 %v615, %v1226
        %v2152 = vmul.f32 %v616, %v1231
        %v2153 = vmul.f32 %v617, %v1236
        %v2154 = vmul.f32 %v618, %v1241
        %v2155 = vmul.f32 %v619, %v1246
        %v2156 = vmul.f32 %v620, %v1251
        %v2157 = vmul.f32 %v621, %v1256
        %v2158 = vmul.f32 %v622, %v1261
        %v2159 = vmul.f32 %v623, %v1266
        %v2160 = vmul.f32 %v624, %v1271
        %v2161 = vmul.f32 %v625, %v1276
        %v2162 = vmul.f32 %v626, %v1281
        %v2163 = vmul.f32 %v627, %v1286
        %v2164 = vmul.f32 %v628, %v1291
        %v2165 = vmul.f32 %v629, %v1296
        %v2166 = vmul.f32 %v630, %v1301
        %v2167 = vmul.f32 %v631, %v1306
        %v2168 = vmul.f32 %v632, %v1311
        %v2169 = vmul.f32 %v633, %v1316
        %v2170 = vmul.f32 %v634, %v1321
        %v2171 = vmul.f32 %v635, %v1326
        %v2172 = vmul.f32 %v636, %v1331
        %v2173 = vmul.f32 %v637, %v1336
        %v2174 = vmul.f32 %v638, %v1341
        %v2175 = vmul.f32 %v639, %v1346
        %v2176 = vmul.f32 %v640, %v1351
        %v2177 = vmul.f32 %v641, %v1356
        %v2178 = vmul.f32 %v642, %v1361
        %v2179 = vmul.f32 %v643, %v1366
        %v2180 = vmul.f32 %v644, %v1371
        %v2181 = vmul.f32 %v645, %v1376
        %v2182 = vmul.f32 %v646, %v1381
        %v2183 = vmul.f32 %v647, %v1386
        %v2184 = vmul.f32 %v648, %v1391
        %v2185 = vmul.f32 %v649, %v1396
        %v2186 = vmul.f32 %v650, %v1401
        %v2187 = vmul.f32 %v651, %v1406
        %v2188 = vmul.f32 %v652, %v1411
        %v2189 = vmul.f32 %v653, %v1416
        %v2190 = vmul.f32 %v654, %v1421
        %v2191 = vmul.f32 %v655, %v1426
        %v2192 = vmul.f32 %v656, %v1431
        %v2193 = vmul.f32 %v657, %v1436
        %v2194 = vmul.f32 %v658, %v1441
        %v2195 = vmul.f32 %v659, %v1446
        %v2196 = vmul.f32 %v660, %v1451
        %v2197 = vmul.f32 %v661, %v1456
        %v2198 = vmul.f32 %v662, %v1461
        %v2199 = vmul.f32 %v663, %v1466
        %v2200 = vmul.f32 %v664, %v1471
        %v2201 = vmul.f32 %v665, %v1476
        %v2202 = vmul.f32 %v666, %v1481
        %v2203 = vmul.f32 %v667, %v1486
        %v2204 = vmul.f32 %v668, %v1491
        %v2205 = vmul.f32 %v669, %v1496
        %v2206 = vmul.f32 %v670, %v1501
        %v2207 = vmul.f32 %v671, %v1506
        %v2208 = vmul.f32 %v672, %v1511
        %v2209 = vmul.f32 %v673, %v1516
        %v2210 = vmul.f32 %v674, %v1521
        %v2211 = vmul.f32 %v675, %v1526
        %v2212 = vmul.f32 %v676, %v1531
        %v2213 = vmul.f32 %v677, %v1536
        %v2214 = vmul.f32 %v678, %v1541
        %v2215 = vmul.f32 %v679, %v1546
        %v2216 = vmul.f32 %v680, %v1551
        %v2217 = vmul.f32 %v681, %v1556
        %v2218 = vmul.f32 %v682, %v1561
        %v2219 = vmul.f32 %v683, %v1566
        %v2220 = vmul.f32 %v684, %v1571
        %v2221 = vmul.f32 %v685, %v1576
        %v2222 = vmul.f32 %v686, %v1581
        %v2223 = vmul.f32 %v687, %v1586
        %v2224 = vmul.f32 %v688, %v1591
        %v2225 = vmul.f32 %v689, %v1596
        %v2226 = vmul.f32 %v690, %v1601
        %v2227 = vmul.f32 %v691, %v1606
        %v2228 = vmul.f32 %v692, %v1611
        %v2229 = vmul.f32 %v693, %v1616
        %v2230 = vmul.f32 %v694, %v1621
        %v2231 = vmul.f32 %v695, %v1626
        %v2232 = vmul.f32 %v696, %v1631
        %v2233 = vmul.f32 %v697, %v1636
        %v2234 = vmul.f32 %v698, %v1641
        %v2235 = vmul.f32 %v699, %v1646
        %v2236 = vmul.f32 %v700, %v1651
        %v2237 = vmul.f32 %v701, %v1656
        %v2238 = vmul.f32 %v702, %v1661
        %v2239 = vmul.f32 %v703, %v1666
        %v2240 = vmul.f32 %v704, %v1671
        %v2241 = vmul.f32 %v705, %v1676
        %v2242 = vmul.f32 %v706, %v1681
        %v2243 = vmul.f32 %v707, %v1686
        %v2244 = vmul.f32 %v708, %v1691
        %v2245 = vmul.f32 %v709, %v1696
        %v2246 = vmul.f32 %v710, %v1701
        %v2247 = vmul.f32 %v711, %v1706
        %v2248 = vmul.f32 %v712, %v1711
        %v2249 = vmul.f32 %v713, %v1716
        %v2250 = vmul.f32 %v714, %v1721
        %v2251 = vmul.f32 %v715, %v1726
        %v2252 = vmul.f32 %v716, %v1731
        %v2253 = vmul.f32 %v717, %v1736
        %v2254 = vmul.f32 %v718, %v1741
        %v2255 = vmul.f32 %v719, %v1746
        %v2256 = vmul.f32 %v720, %v1751
        %v2257 = vmul.f32 %v721, %v1756
        %v2258 = vmul.f32 %v722, %v1761
        %v2259 = vmul.f32 %v723, %v1766
        %v2260 = vmul.f32 %v724, %v1771
        %v2261 = vmul.f32 %v725, %v1776
        %v2262 = vmul.f32 %v726, %v1781
        %v2263 = vmul.f32 %v727, %v1786
        %v2264 = vmul.f32 %v728, %v1791
        %v2265 = vmul.f32 %v729, %v1796
        %v2266 = vmul.f32 %v730, %v1801
        %v2267 = vmul.f32 %v731, %v1806
        %v2268 = vmul.f32 %v732, %v1811
        %v2269 = vmul.f32 %v733, %v1816
        %v2270 = vmul.f32 %v734, %v1821
        %v2271 = vmul.f32 %v735, %v1826
        %v2272 = vmul.f32 %v736, %v1831
        %v2273 = vmul.f32 %v737, %v1836
        %v2274 = vmul.f32 %v738, %v1841
        %v2275 = vmul.f32 %v739, %v1846
        %v2276 = vmul.f32 %v740, %v1851
        %v2277 = vmul.f32 %v741, %v1856
        %v2278 = vmul.f32 %v742, %v1861
        %v2279 = vmul.f32 %v743, %v1866
        %v2280 = vmul.f32 %v744, %v1871
        %v2281 = vmul.f32 %v745, %v1876
        %v2282 = vmul.f32 %v746, %v1881
        %v2283 = vmul.f32 %v747, %v1886
        %v2284 = vmul.f32 %v748, %v1891
        %v2285 = vmul.f32 %v749, %v1896
        %v2286 = vmul.f32 %v750, %v1901
        %v2287 = vmul.f32 %v751, %v1906
        %v2288 = vmul.f32 %v752, %v1911
        %v2289 = vmul.f32 %v753, %v1916
        %v2290 = vmul.f32 %v754, %v1921
        %v2291 = vmul.f32 %v755, %v1926
        %v2292 = vmul.f32 %v756, %v1931
        %v2293 = vmul.f32 %v757, %v1936
        %v2294 = vmul.f32 %v758, %v1941
        %v2295 = vmul.f32 %v759, %v1946
        %v2296 = vmul.f32 %v760, %v1951
        %v2297 = vmul.f32 %v761, %v1956
        %v2298 = vmul.f32 %v762, %v1961
        %v2299 = vmul.f32 %v763, %v1966
        %v2300 = vmul.f32 %v764, %v1971
        %v2301 = vmul.f32 %v765, %v1976
        %v2302 = vmul.f32 %v766, %v1981
        %v2303 = vmul.f32 %v767, %v1986
        %v2304 = vmul.f32 %v768, %v1991
        %v2305 = vmul.f32 %v769, %v1996
        %v2306 = vmul.f32 %v770, %v2001
        %v2307 = vmul.f32 %v771, %v2006
        %v2308 = vmul.f32 %v772, %v2011
        %v2309 = vmul.f32 %v773, %v2016
        %v2310 = vmul.f32 %v774, %v2021
        %v2311 = vmul.f32 %v775, %v2026
        %v2312 = vmul.f32 %v776, %v2031
        %v2313 = vmul.f32 %v777, %v2036
        %v2314 = vmul.f32 %v778, %v2041
        %v2315 = vmul.f32 %v779, %v2046
        %v2316 = vmul.f32 %v780, %v2051
        %v2317 = vmul.f32 %v781, %v2056
        %v2318 = vmul.f32 %v782, %v2061
        %vm2319 = vcmask 261120
        %v2320 = vsel %vm2319, %v2063, 0.0
        %v2321 = vsel %vm2319, %v2064, 0.0
        %v2322 = vadd.f32 %v2320, %v2321
        %v2323 = vsel %vm2319, %v2065, 0.0
        %v2324 = vadd.f32 %v2322, %v2323
        %v2325 = vsel %vm2319, %v2066, 0.0
        %v2326 = vadd.f32 %v2324, %v2325
        %v2327 = vsel %vm2319, %v2067, 0.0
        %v2328 = vadd.f32 %v2326, %v2327
        %v2329 = vsel %vm2319, %v2068, 0.0
        %v2330 = vadd.f32 %v2328, %v2329
        %v2331 = vsel %vm2319, %v2069, 0.0
        %v2332 = vadd.f32 %v2330, %v2331
        %v2333 = vsel %vm2319, %v2070, 0.0
        %v2334 = vadd.f32 %v2332, %v2333
        %v2335 = vsel %vm2319, %v2071, 0.0
        %v2336 = vadd.f32 %v2334, %v2335
        %v2337 = vsel %vm2319, %v2072, 0.0
        %v2338 = vadd.f32 %v2336, %v2337
        %v2339 = vsel %vm2319, %v2073, 0.0
        %v2340 = vadd.f32 %v2338, %v2339
        %v2341 = vsel %vm2319, %v2074, 0.0
        %v2342 = vadd.f32 %v2340, %v2341
        %v2343 = vsel %vm2319, %v2075, 0.0
        %v2344 = vadd.f32 %v2342, %v2343
        %v2345 = vsel %vm2319, %v2076, 0.0
        %v2346 = vadd.f32 %v2344, %v2345
        %v2347 = vsel %vm2319, %v2077, 0.0
        %v2348 = vadd.f32 %v2346, %v2347
        %v2349 = vsel %vm2319, %v2078, 0.0
        %v2350 = vadd.f32 %v2348, %v2349
        %v2351 = vsel %vm2319, %v2079, 0.0
        %v2352 = vadd.f32 %v2350, %v2351
        %v2353 = vsel %vm2319, %v2080, 0.0
        %v2354 = vadd.f32 %v2352, %v2353
        %v2355 = vsel %vm2319, %v2081, 0.0
        %v2356 = vadd.f32 %v2354, %v2355
        %v2357 = vsel %vm2319, %v2082, 0.0
        %v2358 = vadd.f32 %v2356, %v2357
        %v2359 = vsel %vm2319, %v2083, 0.0
        %v2360 = vadd.f32 %v2358, %v2359
        %v2361 = vsel %vm2319, %v2084, 0.0
        %v2362 = vadd.f32 %v2360, %v2361
        %v2363 = vsel %vm2319, %v2085, 0.0
        %v2364 = vadd.f32 %v2362, %v2363
        %v2365 = vsel %vm2319, %v2086, 0.0
        %v2366 = vadd.f32 %v2364, %v2365
        %v2367 = vsel %vm2319, %v2087, 0.0
        %v2368 = vadd.f32 %v2366, %v2367
        %v2369 = vsel %vm2319, %v2088, 0.0
        %v2370 = vadd.f32 %v2368, %v2369
        %v2371 = vsel %vm2319, %v2089, 0.0
        %v2372 = vadd.f32 %v2370, %v2371
        %v2373 = vsel %vm2319, %v2090, 0.0
        %v2374 = vadd.f32 %v2372, %v2373
        %v2375 = vsel %vm2319, %v2091, 0.0
        %v2376 = vadd.f32 %v2374, %v2375
        %v2377 = vsel %vm2319, %v2092, 0.0
        %v2378 = vadd.f32 %v2376, %v2377
        %v2379 = vsel %vm2319, %v2093, 0.0
        %v2380 = vadd.f32 %v2378, %v2379
        %v2381 = vsel %vm2319, %v2094, 0.0
        %v2382 = vadd.f32 %v2380, %v2381
        %v2383 = vsel %vm2319, %v2095, 0.0
        %v2384 = vadd.f32 %v2382, %v2383
        %v2385 = vsel %vm2319, %v2096, 0.0
        %v2386 = vadd.f32 %v2384, %v2385
        %v2387 = vsel %vm2319, %v2097, 0.0
        %v2388 = vadd.f32 %v2386, %v2387
        %v2389 = vsel %vm2319, %v2098, 0.0
        %v2390 = vadd.f32 %v2388, %v2389
        %v2391 = vsel %vm2319, %v2099, 0.0
        %v2392 = vadd.f32 %v2390, %v2391
        %v2393 = vsel %vm2319, %v2100, 0.0
        %v2394 = vadd.f32 %v2392, %v2393
        %v2395 = vsel %vm2319, %v2101, 0.0
        %v2396 = vadd.f32 %v2394, %v2395
        %v2397 = vsel %vm2319, %v2102, 0.0
        %v2398 = vadd.f32 %v2396, %v2397
        %v2399 = vsel %vm2319, %v2103, 0.0
        %v2400 = vadd.f32 %v2398, %v2399
        %v2401 = vsel %vm2319, %v2104, 0.0
        %v2402 = vadd.f32 %v2400, %v2401
        %v2403 = vsel %vm2319, %v2105, 0.0
        %v2404 = vadd.f32 %v2402, %v2403
        %v2405 = vsel %vm2319, %v2106, 0.0
        %v2406 = vadd.f32 %v2404, %v2405
        %v2407 = vsel %vm2319, %v2107, 0.0
        %v2408 = vadd.f32 %v2406, %v2407
        %v2409 = vsel %vm2319, %v2108, 0.0
        %v2410 = vadd.f32 %v2408, %v2409
        %v2411 = vsel %vm2319, %v2109, 0.0
        %v2412 = vadd.f32 %v2410, %v2411
        %v2413 = vsel %vm2319, %v2110, 0.0
        %v2414 = vadd.f32 %v2412, %v2413
        %v2415 = vsel %vm2319, %v2111, 0.0
        %v2416 = vadd.f32 %v2414, %v2415
        %v2417 = vsel %vm2319, %v2112, 0.0
        %v2418 = vadd.f32 %v2416, %v2417
        %v2419 = vsel %vm2319, %v2113, 0.0
        %v2420 = vadd.f32 %v2418, %v2419
        %v2421 = vsel %vm2319, %v2114, 0.0
        %v2422 = vadd.f32 %v2420, %v2421
        %v2423 = vsel %vm2319, %v2115, 0.0
        %v2424 = vadd.f32 %v2422, %v2423
        %v2425 = vsel %vm2319, %v2116, 0.0
        %v2426 = vadd.f32 %v2424, %v2425
        %v2427 = vsel %vm2319, %v2117, 0.0
        %v2428 = vadd.f32 %v2426, %v2427
        %v2429 = vsel %vm2319, %v2118, 0.0
        %v2430 = vadd.f32 %v2428, %v2429
        %v2431 = vsel %vm2319, %v2119, 0.0
        %v2432 = vadd.f32 %v2430, %v2431
        %v2433 = vsel %vm2319, %v2120, 0.0
        %v2434 = vadd.f32 %v2432, %v2433
        %v2435 = vsel %vm2319, %v2121, 0.0
        %v2436 = vadd.f32 %v2434, %v2435
        %v2437 = vsel %vm2319, %v2122, 0.0
        %v2438 = vadd.f32 %v2436, %v2437
        %v2439 = vsel %vm2319, %v2123, 0.0
        %v2440 = vadd.f32 %v2438, %v2439
        %v2441 = vsel %vm2319, %v2124, 0.0
        %v2442 = vadd.f32 %v2440, %v2441
        %v2443 = vsel %vm2319, %v2125, 0.0
        %v2444 = vadd.f32 %v2442, %v2443
        %v2445 = vsel %vm2319, %v2126, 0.0
        %v2446 = vadd.f32 %v2444, %v2445
        %v2447 = vsel %vm2319, %v2127, 0.0
        %v2448 = vadd.f32 %v2446, %v2447
        %v2449 = vsel %vm2319, %v2128, 0.0
        %v2450 = vadd.f32 %v2448, %v2449
        %v2451 = vsel %vm2319, %v2129, 0.0
        %v2452 = vadd.f32 %v2450, %v2451
        %v2453 = vsel %vm2319, %v2130, 0.0
        %v2454 = vadd.f32 %v2452, %v2453
        %v2455 = vsel %vm2319, %v2131, 0.0
        %v2456 = vadd.f32 %v2454, %v2455
        %v2457 = vsel %vm2319, %v2132, 0.0
        %v2458 = vadd.f32 %v2456, %v2457
        %v2459 = vsel %vm2319, %v2133, 0.0
        %v2460 = vadd.f32 %v2458, %v2459
        %v2461 = vsel %vm2319, %v2134, 0.0
        %v2462 = vadd.f32 %v2460, %v2461
        %v2463 = vsel %vm2319, %v2135, 0.0
        %v2464 = vadd.f32 %v2462, %v2463
        %v2465 = vsel %vm2319, %v2136, 0.0
        %v2466 = vadd.f32 %v2464, %v2465
        %v2467 = vsel %vm2319, %v2137, 0.0
        %v2468 = vadd.f32 %v2466, %v2467
        %v2469 = vsel %vm2319, %v2138, 0.0
        %v2470 = vadd.f32 %v2468, %v2469
        %v2471 = vsel %vm2319, %v2139, 0.0
        %v2472 = vadd.f32 %v2470, %v2471
        %v2473 = vsel %vm2319, %v2140, 0.0
        %v2474 = vadd.f32 %v2472, %v2473
        %v2475 = vsel %vm2319, %v2141, 0.0
        %v2476 = vadd.f32 %v2474, %v2475
        %v2477 = vsel %vm2319, %v2142, 0.0
        %v2478 = vadd.f32 %v2476, %v2477
        %v2479 = vsel %vm2319, %v2143, 0.0
        %v2480 = vadd.f32 %v2478, %v2479
        %v2481 = vsel %vm2319, %v2144, 0.0
        %v2482 = vadd.f32 %v2480, %v2481
        %v2483 = vsel %vm2319, %v2145, 0.0
        %v2484 = vadd.f32 %v2482, %v2483
        %v2485 = vsel %vm2319, %v2146, 0.0
        %v2486 = vadd.f32 %v2484, %v2485
        %v2487 = vsel %vm2319, %v2147, 0.0
        %v2488 = vadd.f32 %v2486, %v2487
        %v2489 = vsel %vm2319, %v2148, 0.0
        %v2490 = vadd.f32 %v2488, %v2489
        %v2491 = vsel %vm2319, %v2149, 0.0
        %v2492 = vadd.f32 %v2490, %v2491
        %v2493 = vsel %vm2319, %v2150, 0.0
        %v2494 = vadd.f32 %v2492, %v2493
        %v2495 = vsel %vm2319, %v2151, 0.0
        %v2496 = vadd.f32 %v2494, %v2495
        %v2497 = vsel %vm2319, %v2152, 0.0
        %v2498 = vadd.f32 %v2496, %v2497
        %v2499 = vsel %vm2319, %v2153, 0.0
        %v2500 = vadd.f32 %v2498, %v2499
        %v2501 = vsel %vm2319, %v2154, 0.0
        %v2502 = vadd.f32 %v2500, %v2501
        %v2503 = vsel %vm2319, %v2155, 0.0
        %v2504 = vadd.f32 %v2502, %v2503
        %v2505 = vsel %vm2319, %v2156, 0.0
        %v2506 = vadd.f32 %v2504, %v2505
        %v2507 = vsel %vm2319, %v2157, 0.0
        %v2508 = vadd.f32 %v2506, %v2507
        %v2509 = vsel %vm2319, %v2158, 0.0
        %v2510 = vadd.f32 %v2508, %v2509
        %v2511 = vsel %vm2319, %v2159, 0.0
        %v2512 = vadd.f32 %v2510, %v2511
        %v2513 = vsel %vm2319, %v2160, 0.0
        %v2514 = vadd.f32 %v2512, %v2513
        %v2515 = vsel %vm2319, %v2161, 0.0
        %v2516 = vadd.f32 %v2514, %v2515
        %v2517 = vsel %vm2319, %v2162, 0.0
        %v2518 = vadd.f32 %v2516, %v2517
        %v2519 = vsel %vm2319, %v2163, 0.0
        %v2520 = vadd.f32 %v2518, %v2519
        %v2521 = vsel %vm2319, %v2164, 0.0
        %v2522 = vadd.f32 %v2520, %v2521
        %v2523 = vsel %vm2319, %v2165, 0.0
        %v2524 = vadd.f32 %v2522, %v2523
        %v2525 = vsel %vm2319, %v2166, 0.0
        %v2526 = vadd.f32 %v2524, %v2525
        %v2527 = vsel %vm2319, %v2167, 0.0
        %v2528 = vadd.f32 %v2526, %v2527
        %v2529 = vsel %vm2319, %v2168, 0.0
        %v2530 = vadd.f32 %v2528, %v2529
        %v2531 = vsel %vm2319, %v2169, 0.0
        %v2532 = vadd.f32 %v2530, %v2531
        %v2533 = vsel %vm2319, %v2170, 0.0
        %v2534 = vadd.f32 %v2532, %v2533
        %v2535 = vsel %vm2319, %v2171, 0.0
        %v2536 = vadd.f32 %v2534, %v2535
        %v2537 = vsel %vm2319, %v2172, 0.0
        %v2538 = vadd.f32 %v2536, %v2537
        %v2539 = vsel %vm2319, %v2173, 0.0
        %v2540 = vadd.f32 %v2538, %v2539
        %v2541 = vsel %vm2319, %v2174, 0.0
        %v2542 = vadd.f32 %v2540, %v2541
        %v2543 = vsel %vm2319, %v2175, 0.0
        %v2544 = vadd.f32 %v2542, %v2543
        %v2545 = vsel %vm2319, %v2176, 0.0
        %v2546 = vadd.f32 %v2544, %v2545
        %v2547 = vsel %vm2319, %v2177, 0.0
        %v2548 = vadd.f32 %v2546, %v2547
        %v2549 = vsel %vm2319, %v2178, 0.0
        %v2550 = vadd.f32 %v2548, %v2549
        %v2551 = vsel %vm2319, %v2179, 0.0
        %v2552 = vadd.f32 %v2550, %v2551
        %v2553 = vsel %vm2319, %v2180, 0.0
        %v2554 = vadd.f32 %v2552, %v2553
        %v2555 = vsel %vm2319, %v2181, 0.0
        %v2556 = vadd.f32 %v2554, %v2555
        %v2557 = vsel %vm2319, %v2182, 0.0
        %v2558 = vadd.f32 %v2556, %v2557
        %v2559 = vsel %vm2319, %v2183, 0.0
        %v2560 = vadd.f32 %v2558, %v2559
        %v2561 = vsel %vm2319, %v2184, 0.0
        %v2562 = vadd.f32 %v2560, %v2561
        %v2563 = vsel %vm2319, %v2185, 0.0
        %v2564 = vadd.f32 %v2562, %v2563
        %v2565 = vsel %vm2319, %v2186, 0.0
        %v2566 = vadd.f32 %v2564, %v2565
        %v2567 = vsel %vm2319, %v2187, 0.0
        %v2568 = vadd.f32 %v2566, %v2567
        %v2569 = vsel %vm2319, %v2188, 0.0
        %v2570 = vadd.f32 %v2568, %v2569
        %v2571 = vsel %vm2319, %v2189, 0.0
        %v2572 = vadd.f32 %v2570, %v2571
        %v2573 = vsel %vm2319, %v2190, 0.0
        %v2574 = vadd.f32 %v2572, %v2573
        %v2575 = vsel %vm2319, %v2191, 0.0
        %v2576 = vadd.f32 %v2574, %v2575
        %v2577 = vsel %vm2319, %v2192, 0.0
        %v2578 = vadd.f32 %v2576, %v2577
        %v2579 = vsel %vm2319, %v2193, 0.0
        %v2580 = vadd.f32 %v2578, %v2579
        %v2581 = vsel %vm2319, %v2194, 0.0
        %v2582 = vadd.f32 %v2580, %v2581
        %v2583 = vsel %vm2319, %v2195, 0.0
        %v2584 = vadd.f32 %v2582, %v2583
        %v2585 = vsel %vm2319, %v2196, 0.0
        %v2586 = vadd.f32 %v2584, %v2585
        %v2587 = vsel %vm2319, %v2197, 0.0
        %v2588 = vadd.f32 %v2586, %v2587
        %v2589 = vsel %vm2319, %v2198, 0.0
        %v2590 = vadd.f32 %v2588, %v2589
        %v2591 = vsel %vm2319, %v2199, 0.0
        %v2592 = vadd.f32 %v2590, %v2591
        %v2593 = vsel %vm2319, %v2200, 0.0
        %v2594 = vadd.f32 %v2592, %v2593
        %v2595 = vsel %vm2319, %v2201, 0.0
        %v2596 = vadd.f32 %v2594, %v2595
        %v2597 = vsel %vm2319, %v2202, 0.0
        %v2598 = vadd.f32 %v2596, %v2597
        %v2599 = vsel %vm2319, %v2203, 0.0
        %v2600 = vadd.f32 %v2598, %v2599
        %v2601 = vsel %vm2319, %v2204, 0.0
        %v2602 = vadd.f32 %v2600, %v2601
        %v2603 = vsel %vm2319, %v2205, 0.0
        %v2604 = vadd.f32 %v2602, %v2603
        %v2605 = vsel %vm2319, %v2206, 0.0
        %v2606 = vadd.f32 %v2604, %v2605
        %v2607 = vsel %vm2319, %v2207, 0.0
        %v2608 = vadd.f32 %v2606, %v2607
        %v2609 = vsel %vm2319, %v2208, 0.0
        %v2610 = vadd.f32 %v2608, %v2609
        %v2611 = vsel %vm2319, %v2209, 0.0
        %v2612 = vadd.f32 %v2610, %v2611
        %v2613 = vsel %vm2319, %v2210, 0.0
        %v2614 = vadd.f32 %v2612, %v2613
        %v2615 = vsel %vm2319, %v2211, 0.0
        %v2616 = vadd.f32 %v2614, %v2615
        %v2617 = vsel %vm2319, %v2212, 0.0
        %v2618 = vadd.f32 %v2616, %v2617
        %v2619 = vsel %vm2319, %v2213, 0.0
        %v2620 = vadd.f32 %v2618, %v2619
        %v2621 = vsel %vm2319, %v2214, 0.0
        %v2622 = vadd.f32 %v2620, %v2621
        %v2623 = vsel %vm2319, %v2215, 0.0
        %v2624 = vadd.f32 %v2622, %v2623
        %v2625 = vsel %vm2319, %v2216, 0.0
        %v2626 = vadd.f32 %v2624, %v2625
        %v2627 = vsel %vm2319, %v2217, 0.0
        %v2628 = vadd.f32 %v2626, %v2627
        %v2629 = vsel %vm2319, %v2218, 0.0
        %v2630 = vadd.f32 %v2628, %v2629
        %v2631 = vsel %vm2319, %v2219, 0.0
        %v2632 = vadd.f32 %v2630, %v2631
        %v2633 = vsel %vm2319, %v2220, 0.0
        %v2634 = vadd.f32 %v2632, %v2633
        %v2635 = vsel %vm2319, %v2221, 0.0
        %v2636 = vadd.f32 %v2634, %v2635
        %v2637 = vsel %vm2319, %v2222, 0.0
        %v2638 = vadd.f32 %v2636, %v2637
        %v2639 = vsel %vm2319, %v2223, 0.0
        %v2640 = vadd.f32 %v2638, %v2639
        %v2641 = vsel %vm2319, %v2224, 0.0
        %v2642 = vadd.f32 %v2640, %v2641
        %v2643 = vsel %vm2319, %v2225, 0.0
        %v2644 = vadd.f32 %v2642, %v2643
        %v2645 = vsel %vm2319, %v2226, 0.0
        %v2646 = vadd.f32 %v2644, %v2645
        %v2647 = vsel %vm2319, %v2227, 0.0
        %v2648 = vadd.f32 %v2646, %v2647
        %v2649 = vsel %vm2319, %v2228, 0.0
        %v2650 = vadd.f32 %v2648, %v2649
        %v2651 = vsel %vm2319, %v2229, 0.0
        %v2652 = vadd.f32 %v2650, %v2651
        %v2653 = vsel %vm2319, %v2230, 0.0
        %v2654 = vadd.f32 %v2652, %v2653
        %v2655 = vsel %vm2319, %v2231, 0.0
        %v2656 = vadd.f32 %v2654, %v2655
        %v2657 = vsel %vm2319, %v2232, 0.0
        %v2658 = vadd.f32 %v2656, %v2657
        %v2659 = vsel %vm2319, %v2233, 0.0
        %v2660 = vadd.f32 %v2658, %v2659
        %v2661 = vsel %vm2319, %v2234, 0.0
        %v2662 = vadd.f32 %v2660, %v2661
        %v2663 = vsel %vm2319, %v2235, 0.0
        %v2664 = vadd.f32 %v2662, %v2663
        %v2665 = vsel %vm2319, %v2236, 0.0
        %v2666 = vadd.f32 %v2664, %v2665
        %v2667 = vsel %vm2319, %v2237, 0.0
        %v2668 = vadd.f32 %v2666, %v2667
        %v2669 = vsel %vm2319, %v2238, 0.0
        %v2670 = vadd.f32 %v2668, %v2669
        %v2671 = vsel %vm2319, %v2239, 0.0
        %v2672 = vadd.f32 %v2670, %v2671
        %v2673 = vsel %vm2319, %v2240, 0.0
        %v2674 = vadd.f32 %v2672, %v2673
        %v2675 = vsel %vm2319, %v2241, 0.0
        %v2676 = vadd.f32 %v2674, %v2675
        %v2677 = vsel %vm2319, %v2242, 0.0
        %v2678 = vadd.f32 %v2676, %v2677
        %v2679 = vsel %vm2319, %v2243, 0.0
        %v2680 = vadd.f32 %v2678, %v2679
        %v2681 = vsel %vm2319, %v2244, 0.0
        %v2682 = vadd.f32 %v2680, %v2681
        %v2683 = vsel %vm2319, %v2245, 0.0
        %v2684 = vadd.f32 %v2682, %v2683
        %v2685 = vsel %vm2319, %v2246, 0.0
        %v2686 = vadd.f32 %v2684, %v2685
        %v2687 = vsel %vm2319, %v2247, 0.0
        %v2688 = vadd.f32 %v2686, %v2687
        %v2689 = vsel %vm2319, %v2248, 0.0
        %v2690 = vadd.f32 %v2688, %v2689
        %v2691 = vsel %vm2319, %v2249, 0.0
        %v2692 = vadd.f32 %v2690, %v2691
        %v2693 = vsel %vm2319, %v2250, 0.0
        %v2694 = vadd.f32 %v2692, %v2693
        %v2695 = vsel %vm2319, %v2251, 0.0
        %v2696 = vadd.f32 %v2694, %v2695
        %v2697 = vsel %vm2319, %v2252, 0.0
        %v2698 = vadd.f32 %v2696, %v2697
        %v2699 = vsel %vm2319, %v2253, 0.0
        %v2700 = vadd.f32 %v2698, %v2699
        %v2701 = vsel %vm2319, %v2254, 0.0
        %v2702 = vadd.f32 %v2700, %v2701
        %v2703 = vsel %vm2319, %v2255, 0.0
        %v2704 = vadd.f32 %v2702, %v2703
        %v2705 = vsel %vm2319, %v2256, 0.0
        %v2706 = vadd.f32 %v2704, %v2705
        %v2707 = vsel %vm2319, %v2257, 0.0
        %v2708 = vadd.f32 %v2706, %v2707
        %v2709 = vsel %vm2319, %v2258, 0.0
        %v2710 = vadd.f32 %v2708, %v2709
        %v2711 = vsel %vm2319, %v2259, 0.0
        %v2712 = vadd.f32 %v2710, %v2711
        %v2713 = vsel %vm2319, %v2260, 0.0
        %v2714 = vadd.f32 %v2712, %v2713
        %v2715 = vsel %vm2319, %v2261, 0.0
        %v2716 = vadd.f32 %v2714, %v2715
        %v2717 = vsel %vm2319, %v2262, 0.0
        %v2718 = vadd.f32 %v2716, %v2717
        %v2719 = vsel %vm2319, %v2263, 0.0
        %v2720 = vadd.f32 %v2718, %v2719
        %v2721 = vsel %vm2319, %v2264, 0.0
        %v2722 = vadd.f32 %v2720, %v2721
        %v2723 = vsel %vm2319, %v2265, 0.0
        %v2724 = vadd.f32 %v2722, %v2723
        %v2725 = vsel %vm2319, %v2266, 0.0
        %v2726 = vadd.f32 %v2724, %v2725
        %v2727 = vsel %vm2319, %v2267, 0.0
        %v2728 = vadd.f32 %v2726, %v2727
        %v2729 = vsel %vm2319, %v2268, 0.0
        %v2730 = vadd.f32 %v2728, %v2729
        %v2731 = vsel %vm2319, %v2269, 0.0
        %v2732 = vadd.f32 %v2730, %v2731
        %v2733 = vsel %vm2319, %v2270, 0.0
        %v2734 = vadd.f32 %v2732, %v2733
        %v2735 = vsel %vm2319, %v2271, 0.0
        %v2736 = vadd.f32 %v2734, %v2735
        %v2737 = vsel %vm2319, %v2272, 0.0
        %v2738 = vadd.f32 %v2736, %v2737
        %v2739 = vsel %vm2319, %v2273, 0.0
        %v2740 = vadd.f32 %v2738, %v2739
        %v2741 = vsel %vm2319, %v2274, 0.0
        %v2742 = vadd.f32 %v2740, %v2741
        %v2743 = vsel %vm2319, %v2275, 0.0
        %v2744 = vadd.f32 %v2742, %v2743
        %v2745 = vsel %vm2319, %v2276, 0.0
        %v2746 = vadd.f32 %v2744, %v2745
        %v2747 = vsel %vm2319, %v2277, 0.0
        %v2748 = vadd.f32 %v2746, %v2747
        %v2749 = vsel %vm2319, %v2278, 0.0
        %v2750 = vadd.f32 %v2748, %v2749
        %v2751 = vsel %vm2319, %v2279, 0.0
        %v2752 = vadd.f32 %v2750, %v2751
        %v2753 = vsel %vm2319, %v2280, 0.0
        %v2754 = vadd.f32 %v2752, %v2753
        %v2755 = vsel %vm2319, %v2281, 0.0
        %v2756 = vadd.f32 %v2754, %v2755
        %v2757 = vsel %vm2319, %v2282, 0.0
        %v2758 = vadd.f32 %v2756, %v2757
        %v2759 = vsel %vm2319, %v2283, 0.0
        %v2760 = vadd.f32 %v2758, %v2759
        %v2761 = vsel %vm2319, %v2284, 0.0
        %v2762 = vadd.f32 %v2760, %v2761
        %v2763 = vsel %vm2319, %v2285, 0.0
        %v2764 = vadd.f32 %v2762, %v2763
        %v2765 = vsel %vm2319, %v2286, 0.0
        %v2766 = vadd.f32 %v2764, %v2765
        %v2767 = vsel %vm2319, %v2287, 0.0
        %v2768 = vadd.f32 %v2766, %v2767
        %v2769 = vsel %vm2319, %v2288, 0.0
        %v2770 = vadd.f32 %v2768, %v2769
        %v2771 = vsel %vm2319, %v2289, 0.0
        %v2772 = vadd.f32 %v2770, %v2771
        %v2773 = vsel %vm2319, %v2290, 0.0
        %v2774 = vadd.f32 %v2772, %v2773
        %v2775 = vsel %vm2319, %v2291, 0.0
        %v2776 = vadd.f32 %v2774, %v2775
        %v2777 = vsel %vm2319, %v2292, 0.0
        %v2778 = vadd.f32 %v2776, %v2777
        %v2779 = vsel %vm2319, %v2293, 0.0
        %v2780 = vadd.f32 %v2778, %v2779
        %v2781 = vsel %vm2319, %v2294, 0.0
        %v2782 = vadd.f32 %v2780, %v2781
        %v2783 = vsel %vm2319, %v2295, 0.0
        %v2784 = vadd.f32 %v2782, %v2783
        %v2785 = vsel %vm2319, %v2296, 0.0
        %v2786 = vadd.f32 %v2784, %v2785
        %v2787 = vsel %vm2319, %v2297, 0.0
        %v2788 = vadd.f32 %v2786, %v2787
        %v2789 = vsel %vm2319, %v2298, 0.0
        %v2790 = vadd.f32 %v2788, %v2789
        %v2791 = vsel %vm2319, %v2299, 0.0
        %v2792 = vadd.f32 %v2790, %v2791
        %v2793 = vsel %vm2319, %v2300, 0.0
        %v2794 = vadd.f32 %v2792, %v2793
        %v2795 = vsel %vm2319, %v2301, 0.0
        %v2796 = vadd.f32 %v2794, %v2795
        %v2797 = vsel %vm2319, %v2302, 0.0
        %v2798 = vadd.f32 %v2796, %v2797
        %v2799 = vsel %vm2319, %v2303, 0.0
        %v2800 = vadd.f32 %v2798, %v2799
        %v2801 = vsel %vm2319, %v2304, 0.0
        %v2802 = vadd.f32 %v2800, %v2801
        %v2803 = vsel %vm2319, %v2305, 0.0
        %v2804 = vadd.f32 %v2802, %v2803
        %v2805 = vsel %vm2319, %v2306, 0.0
        %v2806 = vadd.f32 %v2804, %v2805
        %v2807 = vsel %vm2319, %v2307, 0.0
        %v2808 = vadd.f32 %v2806, %v2807
        %v2809 = vsel %vm2319, %v2308, 0.0
        %v2810 = vadd.f32 %v2808, %v2809
        %v2811 = vsel %vm2319, %v2309, 0.0
        %v2812 = vadd.f32 %v2810, %v2811
        %v2813 = vsel %vm2319, %v2310, 0.0
        %v2814 = vadd.f32 %v2812, %v2813
        %v2815 = vsel %vm2319, %v2311, 0.0
        %v2816 = vadd.f32 %v2814, %v2815
        %v2817 = vsel %vm2319, %v2312, 0.0
        %v2818 = vadd.f32 %v2816, %v2817
        %v2819 = vsel %vm2319, %v2313, 0.0
        %v2820 = vadd.f32 %v2818, %v2819
        %v2821 = vsel %vm2319, %v2314, 0.0
        %v2822 = vadd.f32 %v2820, %v2821
        %v2823 = vsel %vm2319, %v2315, 0.0
        %v2824 = vadd.f32 %v2822, %v2823
        %v2825 = vsel %vm2319, %v2316, 0.0
        %v2826 = vadd.f32 %v2824, %v2825
        %v2827 = vsel %vm2319, %v2317, 0.0
        %v2828 = vadd.f32 %v2826, %v2827
        %v2829 = vsel %vm2319, %v2318, 0.0
        %v2830 = vadd.f32 %v2828, %v2829
        %v2831 = vrot.slane %v2830, 4
        %v2832 = vadd.f32 %v2830, %v2831
        %v2833 = vrot.slane %v2832, 2
        %v2834 = vadd.f32 %v2832, %v2833
        %v2835 = vrot.slane %v2834, 1
        %v2836 = vadd.f32 %v2834, %v2835
        %v2837 = vsub.f32 0.0, %v2836
        %v2838 = vmul.f32 %v2837, 1.442695
        %v2839 = vpow.pop %v2838
        %v2840 = vadd.f32 %v2839, 1.0
        %v2841 = vrcp.pop %v2840
        %v2842 = vmul.f32 1.0, %v2841
        %v2843 = vmul.f32 %v2836, %v2842
        %v2844 = vld [vmem:[#allocation2] sm:$0xff]
        %v2845 = vld [vmem:[#allocation2 + $0x8] sm:$0xff]
        %v2846 = vld [vmem:[#allocation2 + $0x10] sm:$0xff]
        %v2847 = vld [vmem:[#allocation2 + $0x18] sm:$0xff]
        %v2848 = vmul.f32 %v2844, %v2843
        %v2849 = vmul.f32 %v2845, %v2843
        %v2850 = vmul.f32 %v2846, %v2843
        %v2851 = vmul.f32 %v2847, %v2843
        %v2852 = vsel %vm2319, %v2848, 0.0
        %2853 = vadd.xlane.f32.xlu0 %v2852
        %v2854 = vpop.xlane.xlu0 %2853
        %v2855 = vsel %vm2319, %v2849, 0.0
        %2856 = vadd.xlane.f32.xlu0 %v2855
        %v2857 = vpop.xlane.xlu0 %2856
        %v2858 = vsel %vm2319, %v2850, 0.0
        %2859 = vadd.xlane.f32.xlu0 %v2858
        %v2860 = vpop.xlane.xlu0 %2859
        %v2861 = vsel %vm2319, %v2851, 0.0
        %2862 = vadd.xlane.f32.xlu0 %v2861
        %v2863 = vpop.xlane.xlu0 %2862
        %v2864 = vsub.f32 0.0, %v2854
        %v2865 = vsub.f32 0.0, %v2857
        %v2866 = vsub.f32 0.0, %v2860
        %v2867 = vsub.f32 0.0, %v2863
        %v2868 = vmul.f32 %v2864, 1.442695
        %v2869 = vpow.pop %v2868
        %v2870 = vmul.f32 %v2865, 1.442695
        %v2871 = vpow.pop %v2870
        %v2872 = vmul.f32 %v2866, 1.442695
        %v2873 = vpow.pop %v2872
        %v2874 = vmul.f32 %v2867, 1.442695
        %v2875 = vpow.pop %v2874
        %v2876 = vadd.f32 %v2869, 1.0
        %v2877 = vadd.f32 %v2871, 1.0
        %v2878 = vadd.f32 %v2873, 1.0
        %v2879 = vadd.f32 %v2875, 1.0
        %v2880 = vrcp.pop %v2876
        %v2881 = vmul.f32 1.0, %v2880
        %v2882 = vrcp.pop %v2877
        %v2883 = vmul.f32 1.0, %v2882
        %v2884 = vrcp.pop %v2878
        %v2885 = vmul.f32 1.0, %v2884
        %v2886 = vrcp.pop %v2879
        %v2887 = vmul.f32 1.0, %v2886
        %v2888 = vld [vmem:[%s234] sm:$0xff]
        %v2889 = vld [vmem:[%s234 + $0x8] sm:$0xff]
        %v2890 = vld [vmem:[%s234 + $0x10] sm:$0xff]
        %v2891 = vld [vmem:[%s234 + $0x18] sm:$0xff]
        %v2892 = vld [vmem:[%s234 + $0x20] sm:$0xff]
        %v2893 = vld [vmem:[%s234 + $0x28] sm:$0xff]
        %v2894 = vld [vmem:[%s234 + $0x30] sm:$0xff]
        %v2895 = vld [vmem:[%s234 + $0x38] sm:$0xff]
        %v2896 = vld [vmem:[%s234 + $0x40] sm:$0xff]
        %v2897 = vld [vmem:[%s234 + $0x48] sm:$0xff]
        %v2898 = vld [vmem:[%s234 + $0x50] sm:$0xff]
        %v2899 = vld [vmem:[%s234 + $0x58] sm:$0xff]
        %v2900 = vld [vmem:[%s234 + $0x60] sm:$0xff]
        %v2901 = vld [vmem:[%s234 + $0x68] sm:$0xff]
        %v2902 = vld [vmem:[%s234 + $0x70] sm:$0xff]
        %v2903 = vld [vmem:[%s234 + $0x78] sm:$0xff]
        %v2904 = vld [vmem:[%s234 + $0x80] sm:$0xff]
        %v2905 = vld [vmem:[%s234 + $0x88] sm:$0xff]
        %v2906 = vld [vmem:[%s234 + $0x90] sm:$0xff]
        %v2907 = vld [vmem:[%s234 + $0x98] sm:$0xff]
        %v2908 = vld [vmem:[%s234 + $0xa0] sm:$0xff]
        %v2909 = vld [vmem:[%s234 + $0xa8] sm:$0xff]
        %v2910 = vld [vmem:[%s234 + $0xb0] sm:$0xff]
        %v2911 = vld [vmem:[%s234 + $0xb8] sm:$0xff]
        %v2912 = vld [vmem:[%s234 + $0xc0] sm:$0xff]
        %v2913 = vld [vmem:[%s234 + $0xc8] sm:$0xff]
        %v2914 = vld [vmem:[%s234 + $0xd0] sm:$0xff]
        %v2915 = vld [vmem:[%s234 + $0xd8] sm:$0xff]
        %v2916 = vld [vmem:[%s234 + $0xe0] sm:$0xff]
        %v2917 = vld [vmem:[%s234 + $0xe8] sm:$0xff]
        %v2918 = vld [vmem:[%s234 + $0xf0] sm:$0xff]
        %v2919 = vld [vmem:[%s234 + $0xf8] sm:$0xff]
        %v2920 = vld [vmem:[%s234 + $0x100] sm:$0xff]
        %v2921 = vld [vmem:[%s234 + $0x108] sm:$0xff]
        %v2922 = vld [vmem:[%s234 + $0x110] sm:$0xff]
        %v2923 = vld [vmem:[%s234 + $0x118] sm:$0xff]
        %v2924 = vld [vmem:[%s234 + $0x120] sm:$0xff]
        %v2925 = vld [vmem:[%s234 + $0x128] sm:$0xff]
        %v2926 = vld [vmem:[%s234 + $0x130] sm:$0xff]
        %v2927 = vld [vmem:[%s234 + $0x138] sm:$0xff]
        %v2928 = vld [vmem:[%s234 + $0x140] sm:$0xff]
        %v2929 = vld [vmem:[%s234 + $0x148] sm:$0xff]
        %v2930 = vld [vmem:[%s234 + $0x150] sm:$0xff]
        %v2931 = vld [vmem:[%s234 + $0x158] sm:$0xff]
        %v2932 = vld [vmem:[%s234 + $0x160] sm:$0xff]
        %v2933 = vld [vmem:[%s234 + $0x168] sm:$0xff]
        %v2934 = vld [vmem:[%s234 + $0x170] sm:$0xff]
        %v2935 = vld [vmem:[%s234 + $0x178] sm:$0xff]
        %v2936 = vld [vmem:[%s234 + $0x180] sm:$0xff]
        %v2937 = vld [vmem:[%s234 + $0x188] sm:$0xff]
        %v2938 = vld [vmem:[%s234 + $0x190] sm:$0xff]
        %v2939 = vld [vmem:[%s234 + $0x198] sm:$0xff]
        %v2940 = vld [vmem:[%s234 + $0x1a0] sm:$0xff]
        %v2941 = vld [vmem:[%s234 + $0x1a8] sm:$0xff]
        %v2942 = vld [vmem:[%s234 + $0x1b0] sm:$0xff]
        %v2943 = vld [vmem:[%s234 + $0x1b8] sm:$0xff]
        %v2944 = vld [vmem:[%s234 + $0x1c0] sm:$0xff]
        %v2945 = vld [vmem:[%s234 + $0x1c8] sm:$0xff]
        %v2946 = vld [vmem:[%s234 + $0x1d0] sm:$0xff]
        %v2947 = vld [vmem:[%s234 + $0x1d8] sm:$0xff]
        %v2948 = vld [vmem:[%s234 + $0x1e0] sm:$0xff]
        %v2949 = vld [vmem:[%s234 + $0x1e8] sm:$0xff]
        %v2950 = vld [vmem:[%s234 + $0x1f0] sm:$0xff]
        %v2951 = vld [vmem:[%s234 + $0x1f8] sm:$0xff]
        %v2952 = vld [vmem:[%s234 + $0x200] sm:$0xff]
        %v2953 = vld [vmem:[%s234 + $0x208] sm:$0xff]
        %v2954 = vld [vmem:[%s234 + $0x210] sm:$0xff]
        %v2955 = vld [vmem:[%s234 + $0x218] sm:$0xff]
        %v2956 = vld [vmem:[%s234 + $0x220] sm:$0xff]
        %v2957 = vld [vmem:[%s234 + $0x228] sm:$0xff]
        %v2958 = vld [vmem:[%s234 + $0x230] sm:$0xff]
        %v2959 = vld [vmem:[%s234 + $0x238] sm:$0xff]
        %v2960 = vld [vmem:[%s234 + $0x240] sm:$0xff]
        %v2961 = vld [vmem:[%s234 + $0x248] sm:$0xff]
        %v2962 = vld [vmem:[%s234 + $0x250] sm:$0xff]
        %v2963 = vld [vmem:[%s234 + $0x258] sm:$0xff]
        %v2964 = vld [vmem:[%s234 + $0x260] sm:$0xff]
        %v2965 = vld [vmem:[%s234 + $0x268] sm:$0xff]
        %v2966 = vld [vmem:[%s234 + $0x270] sm:$0xff]
        %v2967 = vld [vmem:[%s234 + $0x278] sm:$0xff]
        %v2968 = vld [vmem:[%s234 + $0x280] sm:$0xff]
        %v2969 = vld [vmem:[%s234 + $0x288] sm:$0xff]
        %v2970 = vld [vmem:[%s234 + $0x290] sm:$0xff]
        %v2971 = vld [vmem:[%s234 + $0x298] sm:$0xff]
        %v2972 = vld [vmem:[%s234 + $0x2a0] sm:$0xff]
        %v2973 = vld [vmem:[%s234 + $0x2a8] sm:$0xff]
        %v2974 = vld [vmem:[%s234 + $0x2b0] sm:$0xff]
        %v2975 = vld [vmem:[%s234 + $0x2b8] sm:$0xff]
        %v2976 = vld [vmem:[%s234 + $0x2c0] sm:$0xff]
        %v2977 = vld [vmem:[%s234 + $0x2c8] sm:$0xff]
        %v2978 = vld [vmem:[%s234 + $0x2d0] sm:$0xff]
        %v2979 = vld [vmem:[%s234 + $0x2d8] sm:$0xff]
        %v2980 = vld [vmem:[%s234 + $0x2e0] sm:$0xff]
        %v2981 = vld [vmem:[%s234 + $0x2e8] sm:$0xff]
        %v2982 = vld [vmem:[%s234 + $0x2f0] sm:$0xff]
        %v2983 = vld [vmem:[%s234 + $0x2f8] sm:$0xff]
        %v2984 = vld [vmem:[%s234 + $0x300] sm:$0xff]
        %v2985 = vld [vmem:[%s234 + $0x308] sm:$0xff]
        %v2986 = vld [vmem:[%s234 + $0x310] sm:$0xff]
        %v2987 = vld [vmem:[%s234 + $0x318] sm:$0xff]
        %v2988 = vld [vmem:[%s234 + $0x320] sm:$0xff]
        %v2989 = vld [vmem:[%s234 + $0x328] sm:$0xff]
        %v2990 = vld [vmem:[%s234 + $0x330] sm:$0xff]
        %v2991 = vld [vmem:[%s234 + $0x338] sm:$0xff]
        %v2992 = vld [vmem:[%s234 + $0x340] sm:$0xff]
        %v2993 = vld [vmem:[%s234 + $0x348] sm:$0xff]
        %v2994 = vld [vmem:[%s234 + $0x350] sm:$0xff]
        %v2995 = vld [vmem:[%s234 + $0x358] sm:$0xff]
        %v2996 = vld [vmem:[%s234 + $0x360] sm:$0xff]
        %v2997 = vld [vmem:[%s234 + $0x368] sm:$0xff]
        %v2998 = vld [vmem:[%s234 + $0x370] sm:$0xff]
        %v2999 = vld [vmem:[%s234 + $0x378] sm:$0xff]
        %v3000 = vld [vmem:[%s234 + $0x380] sm:$0xff]
        %v3001 = vld [vmem:[%s234 + $0x388] sm:$0xff]
        %v3002 = vld [vmem:[%s234 + $0x390] sm:$0xff]
        %v3003 = vld [vmem:[%s234 + $0x398] sm:$0xff]
        %v3004 = vld [vmem:[%s234 + $0x3a0] sm:$0xff]
        %v3005 = vld [vmem:[%s234 + $0x3a8] sm:$0xff]
        %v3006 = vld [vmem:[%s234 + $0x3b0] sm:$0xff]
        %v3007 = vld [vmem:[%s234 + $0x3b8] sm:$0xff]
        %v3008 = vld [vmem:[%s234 + $0x3c0] sm:$0xff]
        %v3009 = vld [vmem:[%s234 + $0x3c8] sm:$0xff]
        %v3010 = vld [vmem:[%s234 + $0x3d0] sm:$0xff]
        %v3011 = vld [vmem:[%s234 + $0x3d8] sm:$0xff]
        %v3012 = vld [vmem:[%s234 + $0x3e0] sm:$0xff]
        %v3013 = vld [vmem:[%s234 + $0x3e8] sm:$0xff]
        %v3014 = vld [vmem:[%s234 + $0x3f0] sm:$0xff]
        %v3015 = vld [vmem:[%s234 + $0x3f8] sm:$0xff]
        %v3016 = vld [vmem:[%s234 + $0x400] sm:$0xff]
        %v3017 = vld [vmem:[%s234 + $0x408] sm:$0xff]
        %v3018 = vld [vmem:[%s234 + $0x410] sm:$0xff]
        %v3019 = vld [vmem:[%s234 + $0x418] sm:$0xff]
        %v3020 = vld [vmem:[%s234 + $0x420] sm:$0xff]
        %v3021 = vld [vmem:[%s234 + $0x428] sm:$0xff]
        %v3022 = vld [vmem:[%s234 + $0x430] sm:$0xff]
        %v3023 = vld [vmem:[%s234 + $0x438] sm:$0xff]
        %v3024 = vld [vmem:[%s234 + $0x440] sm:$0xff]
        %v3025 = vld [vmem:[%s234 + $0x448] sm:$0xff]
        %v3026 = vld [vmem:[%s234 + $0x450] sm:$0xff]
        %v3027 = vld [vmem:[%s234 + $0x458] sm:$0xff]
        %v3028 = vld [vmem:[%s234 + $0x460] sm:$0xff]
        %v3029 = vld [vmem:[%s234 + $0x468] sm:$0xff]
        %v3030 = vld [vmem:[%s234 + $0x470] sm:$0xff]
        %v3031 = vld [vmem:[%s234 + $0x478] sm:$0xff]
        %v3032 = vld [vmem:[%s234 + $0x480] sm:$0xff]
        %v3033 = vld [vmem:[%s234 + $0x488] sm:$0xff]
        %v3034 = vld [vmem:[%s234 + $0x490] sm:$0xff]
        %v3035 = vld [vmem:[%s234 + $0x498] sm:$0xff]
        %v3036 = vld [vmem:[%s234 + $0x4a0] sm:$0xff]
        %v3037 = vld [vmem:[%s234 + $0x4a8] sm:$0xff]
        %v3038 = vld [vmem:[%s234 + $0x4b0] sm:$0xff]
        %v3039 = vld [vmem:[%s234 + $0x4b8] sm:$0xff]
        %v3040 = vld [vmem:[%s234 + $0x4c0] sm:$0xff]
        %v3041 = vld [vmem:[%s234 + $0x4c8] sm:$0xff]
        %v3042 = vld [vmem:[%s234 + $0x4d0] sm:$0xff]
        %v3043 = vld [vmem:[%s234 + $0x4d8] sm:$0xff]
        %v3044 = vld [vmem:[%s234 + $0x4e0] sm:$0xff]
        %v3045 = vld [vmem:[%s234 + $0x4e8] sm:$0xff]
        %v3046 = vld [vmem:[%s234 + $0x4f0] sm:$0xff]
        %v3047 = vld [vmem:[%s234 + $0x4f8] sm:$0xff]
        %v3048 = vld [vmem:[%s234 + $0x500] sm:$0xff]
        %v3049 = vld [vmem:[%s234 + $0x508] sm:$0xff]
        %v3050 = vld [vmem:[%s234 + $0x510] sm:$0xff]
        %v3051 = vld [vmem:[%s234 + $0x518] sm:$0xff]
        %v3052 = vld [vmem:[%s234 + $0x520] sm:$0xff]
        %v3053 = vld [vmem:[%s234 + $0x528] sm:$0xff]
        %v3054 = vld [vmem:[%s234 + $0x530] sm:$0xff]
        %v3055 = vld [vmem:[%s234 + $0x538] sm:$0xff]
        %v3056 = vld [vmem:[%s234 + $0x540] sm:$0xff]
        %v3057 = vld [vmem:[%s234 + $0x548] sm:$0xff]
        %v3058 = vld [vmem:[%s234 + $0x550] sm:$0xff]
        %v3059 = vld [vmem:[%s234 + $0x558] sm:$0xff]
        %v3060 = vld [vmem:[%s234 + $0x560] sm:$0xff]
        %v3061 = vld [vmem:[%s234 + $0x568] sm:$0xff]
        %v3062 = vld [vmem:[%s234 + $0x570] sm:$0xff]
        %v3063 = vld [vmem:[%s234 + $0x578] sm:$0xff]
        %v3064 = vld [vmem:[%s234 + $0x580] sm:$0xff]
        %v3065 = vld [vmem:[%s234 + $0x588] sm:$0xff]
        %v3066 = vld [vmem:[%s234 + $0x590] sm:$0xff]
        %v3067 = vld [vmem:[%s234 + $0x598] sm:$0xff]
        %v3068 = vld [vmem:[%s234 + $0x5a0] sm:$0xff]
        %v3069 = vld [vmem:[%s234 + $0x5a8] sm:$0xff]
        %v3070 = vld [vmem:[%s234 + $0x5b0] sm:$0xff]
        %v3071 = vld [vmem:[%s234 + $0x5b8] sm:$0xff]
        %v3072 = vld [vmem:[%s234 + $0x5c0] sm:$0xff]
        %v3073 = vld [vmem:[%s234 + $0x5c8] sm:$0xff]
        %v3074 = vld [vmem:[%s234 + $0x5d0] sm:$0xff]
        %v3075 = vld [vmem:[%s234 + $0x5d8] sm:$0xff]
        %v3076 = vld [vmem:[%s234 + $0x5e0] sm:$0xff]
        %v3077 = vld [vmem:[%s234 + $0x5e8] sm:$0xff]
        %v3078 = vld [vmem:[%s234 + $0x5f0] sm:$0xff]
        %v3079 = vld [vmem:[%s234 + $0x5f8] sm:$0xff]
        %v3080 = vld [vmem:[%s234 + $0x600] sm:$0xff]
        %v3081 = vld [vmem:[%s234 + $0x608] sm:$0xff]
        %v3082 = vld [vmem:[%s234 + $0x610] sm:$0xff]
        %v3083 = vld [vmem:[%s234 + $0x618] sm:$0xff]
        %v3084 = vld [vmem:[%s234 + $0x620] sm:$0xff]
        %v3085 = vld [vmem:[%s234 + $0x628] sm:$0xff]
        %v3086 = vld [vmem:[%s234 + $0x630] sm:$0xff]
        %v3087 = vld [vmem:[%s234 + $0x638] sm:$0xff]
        %v3088 = vld [vmem:[%s234 + $0x640] sm:$0xff]
        %v3089 = vld [vmem:[%s234 + $0x648] sm:$0xff]
        %v3090 = vld [vmem:[%s234 + $0x650] sm:$0xff]
        %v3091 = vld [vmem:[%s234 + $0x658] sm:$0xff]
        %v3092 = vld [vmem:[%s234 + $0x660] sm:$0xff]
        %v3093 = vld [vmem:[%s234 + $0x668] sm:$0xff]
        %v3094 = vld [vmem:[%s234 + $0x670] sm:$0xff]
        %v3095 = vld [vmem:[%s234 + $0x678] sm:$0xff]
        %v3096 = vld [vmem:[%s234 + $0x680] sm:$0xff]
        %v3097 = vld [vmem:[%s234 + $0x688] sm:$0xff]
        %v3098 = vld [vmem:[%s234 + $0x690] sm:$0xff]
        %v3099 = vld [vmem:[%s234 + $0x698] sm:$0xff]
        %v3100 = vld [vmem:[%s234 + $0x6a0] sm:$0xff]
        %v3101 = vld [vmem:[%s234 + $0x6a8] sm:$0xff]
        %v3102 = vld [vmem:[%s234 + $0x6b0] sm:$0xff]
        %v3103 = vld [vmem:[%s234 + $0x6b8] sm:$0xff]
        %v3104 = vld [vmem:[%s234 + $0x6c0] sm:$0xff]
        %v3105 = vld [vmem:[%s234 + $0x6c8] sm:$0xff]
        %v3106 = vld [vmem:[%s234 + $0x6d0] sm:$0xff]
        %v3107 = vld [vmem:[%s234 + $0x6d8] sm:$0xff]
        %v3108 = vld [vmem:[%s234 + $0x6e0] sm:$0xff]
        %v3109 = vld [vmem:[%s234 + $0x6e8] sm:$0xff]
        %v3110 = vld [vmem:[%s234 + $0x6f0] sm:$0xff]
        %v3111 = vld [vmem:[%s234 + $0x6f8] sm:$0xff]
        %v3112 = vld [vmem:[%s234 + $0x700] sm:$0xff]
        %v3113 = vld [vmem:[%s234 + $0x708] sm:$0xff]
        %v3114 = vld [vmem:[%s234 + $0x710] sm:$0xff]
        %v3115 = vld [vmem:[%s234 + $0x718] sm:$0xff]
        %v3116 = vld [vmem:[%s234 + $0x720] sm:$0xff]
        %v3117 = vld [vmem:[%s234 + $0x728] sm:$0xff]
        %v3118 = vld [vmem:[%s234 + $0x730] sm:$0xff]
        %v3119 = vld [vmem:[%s234 + $0x738] sm:$0xff]
        %v3120 = vld [vmem:[%s234 + $0x740] sm:$0xff]
        %v3121 = vld [vmem:[%s234 + $0x748] sm:$0xff]
        %v3122 = vld [vmem:[%s234 + $0x750] sm:$0xff]
        %v3123 = vld [vmem:[%s234 + $0x758] sm:$0xff]
        %v3124 = vld [vmem:[%s234 + $0x760] sm:$0xff]
        %v3125 = vld [vmem:[%s234 + $0x768] sm:$0xff]
        %v3126 = vld [vmem:[%s234 + $0x770] sm:$0xff]
        %v3127 = vld [vmem:[%s234 + $0x778] sm:$0xff]
        %v3128 = vld [vmem:[%s234 + $0x780] sm:$0xff]
        %v3129 = vld [vmem:[%s234 + $0x788] sm:$0xff]
        %v3130 = vld [vmem:[%s234 + $0x790] sm:$0xff]
        %v3131 = vld [vmem:[%s234 + $0x798] sm:$0xff]
        %v3132 = vld [vmem:[%s234 + $0x7a0] sm:$0xff]
        %v3133 = vld [vmem:[%s234 + $0x7a8] sm:$0xff]
        %v3134 = vld [vmem:[%s234 + $0x7b0] sm:$0xff]
        %v3135 = vld [vmem:[%s234 + $0x7b8] sm:$0xff]
        %v3136 = vld [vmem:[%s234 + $0x7c0] sm:$0xff]
        %v3137 = vld [vmem:[%s234 + $0x7c8] sm:$0xff]
        %v3138 = vld [vmem:[%s234 + $0x7d0] sm:$0xff]
        %v3139 = vld [vmem:[%s234 + $0x7d8] sm:$0xff]
        %v3140 = vld [vmem:[%s234 + $0x7e0] sm:$0xff]
        %v3141 = vld [vmem:[%s234 + $0x7e8] sm:$0xff]
        %v3142 = vld [vmem:[%s234 + $0x7f0] sm:$0xff]
        %v3143 = vld [vmem:[%s234 + $0x7f8] sm:$0xff]
        %v3144 = vld [vmem:[%s234 + $0x800] sm:$0xff]
        %v3145 = vld [vmem:[%s234 + $0x808] sm:$0xff]
        %v3146 = vld [vmem:[%s234 + $0x810] sm:$0xff]
        %v3147 = vld [vmem:[%s234 + $0x818] sm:$0xff]
        %v3148 = vld [vmem:[%s234 + $0x820] sm:$0xff]
        %v3149 = vld [vmem:[%s234 + $0x828] sm:$0xff]
        %v3150 = vld [vmem:[%s234 + $0x830] sm:$0xff]
        %v3151 = vld [vmem:[%s234 + $0x838] sm:$0xff]
        %v3152 = vld [vmem:[%s234 + $0x840] sm:$0xff]
        %v3153 = vld [vmem:[%s234 + $0x848] sm:$0xff]
        %v3154 = vld [vmem:[%s234 + $0x850] sm:$0xff]
        %v3155 = vld [vmem:[%s234 + $0x858] sm:$0xff]
        %v3156 = vld [vmem:[%s234 + $0x860] sm:$0xff]
        %v3157 = vld [vmem:[%s234 + $0x868] sm:$0xff]
        %v3158 = vld [vmem:[%s234 + $0x870] sm:$0xff]
        %v3159 = vld [vmem:[%s234 + $0x878] sm:$0xff]
        %v3160 = vld [vmem:[%s234 + $0x880] sm:$0xff]
        %v3161 = vld [vmem:[%s234 + $0x888] sm:$0xff]
        %v3162 = vld [vmem:[%s234 + $0x890] sm:$0xff]
        %v3163 = vld [vmem:[%s234 + $0x898] sm:$0xff]
        %v3164 = vld [vmem:[%s234 + $0x8a0] sm:$0xff]
        %v3165 = vld [vmem:[%s234 + $0x8a8] sm:$0xff]
        %v3166 = vld [vmem:[%s234 + $0x8b0] sm:$0xff]
        %v3167 = vld [vmem:[%s234 + $0x8b8] sm:$0xff]
        %v3168 = vld [vmem:[%s234 + $0x8c0] sm:$0xff]
        %v3169 = vld [vmem:[%s234 + $0x8c8] sm:$0xff]
        %v3170 = vld [vmem:[%s234 + $0x8d0] sm:$0xff]
        %v3171 = vld [vmem:[%s234 + $0x8d8] sm:$0xff]
        %v3172 = vld [vmem:[%s234 + $0x8e0] sm:$0xff]
        %v3173 = vld [vmem:[%s234 + $0x8e8] sm:$0xff]
        %v3174 = vld [vmem:[%s234 + $0x8f0] sm:$0xff]
        %v3175 = vld [vmem:[%s234 + $0x8f8] sm:$0xff]
        %v3176 = vld [vmem:[%s234 + $0x900] sm:$0xff]
        %v3177 = vld [vmem:[%s234 + $0x908] sm:$0xff]
        %v3178 = vld [vmem:[%s234 + $0x910] sm:$0xff]
        %v3179 = vld [vmem:[%s234 + $0x918] sm:$0xff]
        %v3180 = vld [vmem:[%s234 + $0x920] sm:$0xff]
        %v3181 = vld [vmem:[%s234 + $0x928] sm:$0xff]
        %v3182 = vld [vmem:[%s234 + $0x930] sm:$0xff]
        %v3183 = vld [vmem:[%s234 + $0x938] sm:$0xff]
        %v3184 = vld [vmem:[%s234 + $0x940] sm:$0xff]
        %v3185 = vld [vmem:[%s234 + $0x948] sm:$0xff]
        %v3186 = vld [vmem:[%s234 + $0x950] sm:$0xff]
        %v3187 = vld [vmem:[%s234 + $0x958] sm:$0xff]
        %v3188 = vld [vmem:[%s234 + $0x960] sm:$0xff]
        %v3189 = vld [vmem:[%s234 + $0x968] sm:$0xff]
        %v3190 = vld [vmem:[%s234 + $0x970] sm:$0xff]
        %v3191 = vld [vmem:[%s234 + $0x978] sm:$0xff]
        %v3192 = vld [vmem:[%s234 + $0x980] sm:$0xff]
        %v3193 = vld [vmem:[%s234 + $0x988] sm:$0xff]
        %v3194 = vld [vmem:[%s234 + $0x990] sm:$0xff]
        %v3195 = vld [vmem:[%s234 + $0x998] sm:$0xff]
        %v3196 = vld [vmem:[%s234 + $0x9a0] sm:$0xff]
        %v3197 = vld [vmem:[%s234 + $0x9a8] sm:$0xff]
        %v3198 = vld [vmem:[%s234 + $0x9b0] sm:$0xff]
        %v3199 = vld [vmem:[%s234 + $0x9b8] sm:$0xff]
        %v3200 = vld [vmem:[%s234 + $0x9c0] sm:$0xff]
        %v3201 = vld [vmem:[%s234 + $0x9c8] sm:$0xff]
        %v3202 = vld [vmem:[%s234 + $0x9d0] sm:$0xff]
        %v3203 = vld [vmem:[%s234 + $0x9d8] sm:$0xff]
        %v3204 = vld [vmem:[%s234 + $0x9e0] sm:$0xff]
        %v3205 = vld [vmem:[%s234 + $0x9e8] sm:$0xff]
        %v3206 = vld [vmem:[%s234 + $0x9f0] sm:$0xff]
        %v3207 = vld [vmem:[%s234 + $0x9f8] sm:$0xff]
        %v3208 = vld [vmem:[%s234 + $0xa00] sm:$0xff]
        %v3209 = vld [vmem:[%s234 + $0xa08] sm:$0xff]
        %v3210 = vld [vmem:[%s234 + $0xa10] sm:$0xff]
        %v3211 = vld [vmem:[%s234 + $0xa18] sm:$0xff]
        %v3212 = vld [vmem:[%s234 + $0xa20] sm:$0xff]
        %v3213 = vld [vmem:[%s234 + $0xa28] sm:$0xff]
        %v3214 = vld [vmem:[%s234 + $0xa30] sm:$0xff]
        %v3215 = vld [vmem:[%s234 + $0xa38] sm:$0xff]
        %v3216 = vld [vmem:[%s234 + $0xa40] sm:$0xff]
        %v3217 = vld [vmem:[%s234 + $0xa48] sm:$0xff]
        %v3218 = vld [vmem:[%s234 + $0xa50] sm:$0xff]
        %v3219 = vld [vmem:[%s234 + $0xa58] sm:$0xff]
        %v3220 = vld [vmem:[%s234 + $0xa60] sm:$0xff]
        %v3221 = vld [vmem:[%s234 + $0xa68] sm:$0xff]
        %v3222 = vld [vmem:[%s234 + $0xa70] sm:$0xff]
        %v3223 = vld [vmem:[%s234 + $0xa78] sm:$0xff]
        %v3224 = vld [vmem:[%s234 + $0xa80] sm:$0xff]
        %v3225 = vld [vmem:[%s234 + $0xa88] sm:$0xff]
        %v3226 = vld [vmem:[%s234 + $0xa90] sm:$0xff]
        %v3227 = vld [vmem:[%s234 + $0xa98] sm:$0xff]
        %v3228 = vld [vmem:[%s234 + $0xaa0] sm:$0xff]
        %v3229 = vld [vmem:[%s234 + $0xaa8] sm:$0xff]
        %v3230 = vld [vmem:[%s234 + $0xab0] sm:$0xff]
        %v3231 = vld [vmem:[%s234 + $0xab8] sm:$0xff]
        %v3232 = vld [vmem:[%s234 + $0xac0] sm:$0xff]
        %v3233 = vld [vmem:[%s234 + $0xac8] sm:$0xff]
        %v3234 = vld [vmem:[%s234 + $0xad0] sm:$0xff]
        %v3235 = vld [vmem:[%s234 + $0xad8] sm:$0xff]
        %v3236 = vld [vmem:[%s234 + $0xae0] sm:$0xff]
        %v3237 = vld [vmem:[%s234 + $0xae8] sm:$0xff]
        %v3238 = vld [vmem:[%s234 + $0xaf0] sm:$0xff]
        %v3239 = vld [vmem:[%s234 + $0xaf8] sm:$0xff]
        %v3240 = vld [vmem:[%s234 + $0xb00] sm:$0xff]
        %v3241 = vld [vmem:[%s234 + $0xb08] sm:$0xff]
        %v3242 = vld [vmem:[%s234 + $0xb10] sm:$0xff]
        %v3243 = vld [vmem:[%s234 + $0xb18] sm:$0xff]
        %v3244 = vld [vmem:[%s234 + $0xb20] sm:$0xff]
        %v3245 = vld [vmem:[%s234 + $0xb28] sm:$0xff]
        %v3246 = vld [vmem:[%s234 + $0xb30] sm:$0xff]
        %v3247 = vld [vmem:[%s234 + $0xb38] sm:$0xff]
        %v3248 = vld [vmem:[%s234 + $0xb40] sm:$0xff]
        %v3249 = vld [vmem:[%s234 + $0xb48] sm:$0xff]
        %v3250 = vld [vmem:[%s234 + $0xb50] sm:$0xff]
        %v3251 = vld [vmem:[%s234 + $0xb58] sm:$0xff]
        %v3252 = vld [vmem:[%s234 + $0xb60] sm:$0xff]
        %v3253 = vld [vmem:[%s234 + $0xb68] sm:$0xff]
        %v3254 = vld [vmem:[%s234 + $0xb70] sm:$0xff]
        %v3255 = vld [vmem:[%s234 + $0xb78] sm:$0xff]
        %v3256 = vld [vmem:[%s234 + $0xb80] sm:$0xff]
        %v3257 = vld [vmem:[%s234 + $0xb88] sm:$0xff]
        %v3258 = vld [vmem:[%s234 + $0xb90] sm:$0xff]
        %v3259 = vld [vmem:[%s234 + $0xb98] sm:$0xff]
        %v3260 = vld [vmem:[%s234 + $0xba0] sm:$0xff]
        %v3261 = vld [vmem:[%s234 + $0xba8] sm:$0xff]
        %v3262 = vld [vmem:[%s234 + $0xbb0] sm:$0xff]
        %v3263 = vld [vmem:[%s234 + $0xbb8] sm:$0xff]
        %v3264 = vld [vmem:[%s234 + $0xbc0] sm:$0xff]
        %v3265 = vld [vmem:[%s234 + $0xbc8] sm:$0xff]
        %v3266 = vld [vmem:[%s234 + $0xbd0] sm:$0xff]
        %v3267 = vld [vmem:[%s234 + $0xbd8] sm:$0xff]
        %v3268 = vld [vmem:[%s234 + $0xbe0] sm:$0xff]
        %v3269 = vld [vmem:[%s234 + $0xbe8] sm:$0xff]
        %v3270 = vld [vmem:[%s234 + $0xbf0] sm:$0xff]
        %v3271 = vld [vmem:[%s234 + $0xbf8] sm:$0xff]
        %v3272 = vld [vmem:[%s234 + $0xc00] sm:$0xff]
        %v3273 = vld [vmem:[%s234 + $0xc08] sm:$0xff]
        %v3274 = vld [vmem:[%s234 + $0xc10] sm:$0xff]
        %v3275 = vld [vmem:[%s234 + $0xc18] sm:$0xff]
        %v3276 = vld [vmem:[%s234 + $0xc20] sm:$0xff]
        %v3277 = vld [vmem:[%s234 + $0xc28] sm:$0xff]
        %v3278 = vld [vmem:[%s234 + $0xc30] sm:$0xff]
        %v3279 = vld [vmem:[%s234 + $0xc38] sm:$0xff]
        %v3280 = vld [vmem:[%s234 + $0xc40] sm:$0xff]
        %v3281 = vld [vmem:[%s234 + $0xc48] sm:$0xff]
        %v3282 = vld [vmem:[%s234 + $0xc50] sm:$0xff]
        %v3283 = vld [vmem:[%s234 + $0xc58] sm:$0xff]
        %v3284 = vld [vmem:[%s234 + $0xc60] sm:$0xff]
        %v3285 = vld [vmem:[%s234 + $0xc68] sm:$0xff]
        %v3286 = vld [vmem:[%s234 + $0xc70] sm:$0xff]
        %v3287 = vld [vmem:[%s234 + $0xc78] sm:$0xff]
        %v3288 = vld [vmem:[%s234 + $0xc80] sm:$0xff]
        %v3289 = vld [vmem:[%s234 + $0xc88] sm:$0xff]
        %v3290 = vld [vmem:[%s234 + $0xc90] sm:$0xff]
        %v3291 = vld [vmem:[%s234 + $0xc98] sm:$0xff]
        %v3292 = vld [vmem:[%s234 + $0xca0] sm:$0xff]
        %v3293 = vld [vmem:[%s234 + $0xca8] sm:$0xff]
        %v3294 = vld [vmem:[%s234 + $0xcb0] sm:$0xff]
        %v3295 = vld [vmem:[%s234 + $0xcb8] sm:$0xff]
        %v3296 = vld [vmem:[%s234 + $0xcc0] sm:$0xff]
        %v3297 = vld [vmem:[%s234 + $0xcc8] sm:$0xff]
        %v3298 = vld [vmem:[%s234 + $0xcd0] sm:$0xff]
        %v3299 = vld [vmem:[%s234 + $0xcd8] sm:$0xff]
        %v3300 = vld [vmem:[%s234 + $0xce0] sm:$0xff]
        %v3301 = vld [vmem:[%s234 + $0xce8] sm:$0xff]
        %v3302 = vld [vmem:[%s234 + $0xcf0] sm:$0xff]
        %v3303 = vld [vmem:[%s234 + $0xcf8] sm:$0xff]
        %v3304 = vld [vmem:[%s234 + $0xd00] sm:$0xff]
        %v3305 = vld [vmem:[%s234 + $0xd08] sm:$0xff]
        %v3306 = vld [vmem:[%s234 + $0xd10] sm:$0xff]
        %v3307 = vld [vmem:[%s234 + $0xd18] sm:$0xff]
        %v3308 = vld [vmem:[%s234 + $0xd20] sm:$0xff]
        %v3309 = vld [vmem:[%s234 + $0xd28] sm:$0xff]
        %v3310 = vld [vmem:[%s234 + $0xd30] sm:$0xff]
        %v3311 = vld [vmem:[%s234 + $0xd38] sm:$0xff]
        %v3312 = vld [vmem:[%s234 + $0xd40] sm:$0xff]
        %v3313 = vld [vmem:[%s234 + $0xd48] sm:$0xff]
        %v3314 = vld [vmem:[%s234 + $0xd50] sm:$0xff]
        %v3315 = vld [vmem:[%s234 + $0xd58] sm:$0xff]
        %v3316 = vld [vmem:[%s234 + $0xd60] sm:$0xff]
        %v3317 = vld [vmem:[%s234 + $0xd68] sm:$0xff]
        %v3318 = vld [vmem:[%s234 + $0xd70] sm:$0xff]
        %v3319 = vld [vmem:[%s234 + $0xd78] sm:$0xff]
        %v3320 = vld [vmem:[%s234 + $0xd80] sm:$0xff]
        %v3321 = vld [vmem:[%s234 + $0xd88] sm:$0xff]
        %v3322 = vld [vmem:[%s234 + $0xd90] sm:$0xff]
        %v3323 = vld [vmem:[%s234 + $0xd98] sm:$0xff]
        %v3324 = vld [vmem:[%s234 + $0xda0] sm:$0xff]
        %v3325 = vld [vmem:[%s234 + $0xda8] sm:$0xff]
        %v3326 = vld [vmem:[%s234 + $0xdb0] sm:$0xff]
        %v3327 = vld [vmem:[%s234 + $0xdb8] sm:$0xff]
        %v3328 = vld [vmem:[%s234 + $0xdc0] sm:$0xff]
        %v3329 = vld [vmem:[%s234 + $0xdc8] sm:$0xff]
        %v3330 = vld [vmem:[%s234 + $0xdd0] sm:$0xff]
        %v3331 = vld [vmem:[%s234 + $0xdd8] sm:$0xff]
        %v3332 = vld [vmem:[%s234 + $0xde0] sm:$0xff]
        %v3333 = vld [vmem:[%s234 + $0xde8] sm:$0xff]
        %v3334 = vld [vmem:[%s234 + $0xdf0] sm:$0xff]
        %v3335 = vld [vmem:[%s234 + $0xdf8] sm:$0xff]
        %v3336 = vld [vmem:[%s234 + $0xe00] sm:$0xff]
        %v3337 = vld [vmem:[%s234 + $0xe08] sm:$0xff]
        %v3338 = vld [vmem:[%s234 + $0xe10] sm:$0xff]
        %v3339 = vld [vmem:[%s234 + $0xe18] sm:$0xff]
        %v3340 = vld [vmem:[%s234 + $0xe20] sm:$0xff]
        %v3341 = vld [vmem:[%s234 + $0xe28] sm:$0xff]
        %v3342 = vld [vmem:[%s234 + $0xe30] sm:$0xff]
        %v3343 = vld [vmem:[%s234 + $0xe38] sm:$0xff]
        %v3344 = vld [vmem:[%s234 + $0xe40] sm:$0xff]
        %v3345 = vld [vmem:[%s234 + $0xe48] sm:$0xff]
        %v3346 = vld [vmem:[%s234 + $0xe50] sm:$0xff]
        %v3347 = vld [vmem:[%s234 + $0xe58] sm:$0xff]
        %v3348 = vld [vmem:[%s234 + $0xe60] sm:$0xff]
        %v3349 = vld [vmem:[%s234 + $0xe68] sm:$0xff]
        %v3350 = vld [vmem:[%s234 + $0xe70] sm:$0xff]
        %v3351 = vld [vmem:[%s234 + $0xe78] sm:$0xff]
        %v3352 = vld [vmem:[%s234 + $0xe80] sm:$0xff]
        %v3353 = vld [vmem:[%s234 + $0xe88] sm:$0xff]
        %v3354 = vld [vmem:[%s234 + $0xe90] sm:$0xff]
        %v3355 = vld [vmem:[%s234 + $0xe98] sm:$0xff]
        %v3356 = vld [vmem:[%s234 + $0xea0] sm:$0xff]
        %v3357 = vld [vmem:[%s234 + $0xea8] sm:$0xff]
        %v3358 = vld [vmem:[%s234 + $0xeb0] sm:$0xff]
        %v3359 = vld [vmem:[%s234 + $0xeb8] sm:$0xff]
        %v3360 = vld [vmem:[%s234 + $0xec0] sm:$0xff]
        %v3361 = vld [vmem:[%s234 + $0xec8] sm:$0xff]
        %v3362 = vld [vmem:[%s234 + $0xed0] sm:$0xff]
        %v3363 = vld [vmem:[%s234 + $0xed8] sm:$0xff]
        %v3364 = vld [vmem:[%s234 + $0xee0] sm:$0xff]
        %v3365 = vld [vmem:[%s234 + $0xee8] sm:$0xff]
        %v3366 = vld [vmem:[%s234 + $0xef0] sm:$0xff]
        %v3367 = vld [vmem:[%s234 + $0xef8] sm:$0xff]
        %v3368 = vld [vmem:[%s234 + $0xf00] sm:$0xff]
        %v3369 = vld [vmem:[%s234 + $0xf08] sm:$0xff]
        %v3370 = vld [vmem:[%s234 + $0xf10] sm:$0xff]
        %v3371 = vld [vmem:[%s234 + $0xf18] sm:$0xff]
        %v3372 = vld [vmem:[%s234 + $0xf20] sm:$0xff]
        %v3373 = vld [vmem:[%s234 + $0xf28] sm:$0xff]
        %v3374 = vld [vmem:[%s234 + $0xf30] sm:$0xff]
        %v3375 = vld [vmem:[%s234 + $0xf38] sm:$0xff]
        %v3376 = vld [vmem:[%s234 + $0xf40] sm:$0xff]
        %v3377 = vld [vmem:[%s234 + $0xf48] sm:$0xff]
        %v3378 = vld [vmem:[%s234 + $0xf50] sm:$0xff]
        %v3379 = vld [vmem:[%s234 + $0xf58] sm:$0xff]
        %v3380 = vld [vmem:[%s234 + $0xf60] sm:$0xff]
        %v3381 = vld [vmem:[%s234 + $0xf68] sm:$0xff]
        %v3382 = vld [vmem:[%s234 + $0xf70] sm:$0xff]
        %v3383 = vld [vmem:[%s234 + $0xf78] sm:$0xff]
        %v3384 = vld [vmem:[%s234 + $0xf80] sm:$0xff]
        %v3385 = vld [vmem:[%s234 + $0xf88] sm:$0xff]
        %v3386 = vld [vmem:[%s234 + $0xf90] sm:$0xff]
        %v3387 = vld [vmem:[%s234 + $0xf98] sm:$0xff]
        %v3388 = vld [vmem:[%s234 + $0xfa0] sm:$0xff]
        %v3389 = vld [vmem:[%s234 + $0xfa8] sm:$0xff]
        %v3390 = vld [vmem:[%s234 + $0xfb0] sm:$0xff]
        %v3391 = vld [vmem:[%s234 + $0xfb8] sm:$0xff]
        %v3392 = vld [vmem:[%s234 + $0xfc0] sm:$0xff]
        %v3393 = vld [vmem:[%s234 + $0xfc8] sm:$0xff]
        %v3394 = vld [vmem:[%s234 + $0xfd0] sm:$0xff]
        %v3395 = vld [vmem:[%s234 + $0xfd8] sm:$0xff]
        %v3396 = vld [vmem:[%s234 + $0xfe0] sm:$0xff]
        %v3397 = vld [vmem:[%s234 + $0xfe8] sm:$0xff]
        %v3398 = vld [vmem:[%s234 + $0xff0] sm:$0xff]
        %v3399 = vld [vmem:[%s234 + $0xff8] sm:$0xff]
        %v3400 = vmul.f32 %v2888, %v2881
        %v3401 = vmul.f32 %v2889, %v2881
        %v3402 = vmul.f32 %v2890, %v2881
        %v3403 = vmul.f32 %v2891, %v2881
        %v3404 = vmul.f32 %v2892, %v2881
        %v3405 = vmul.f32 %v2893, %v2881
        %v3406 = vmul.f32 %v2894, %v2881
        %v3407 = vmul.f32 %v2895, %v2881
        %v3408 = vmul.f32 %v2896, %v2881
        %v3409 = vmul.f32 %v2897, %v2881
        %v3410 = vmul.f32 %v2898, %v2881
        %v3411 = vmul.f32 %v2899, %v2881
        %v3412 = vmul.f32 %v2900, %v2881
        %v3413 = vmul.f32 %v2901, %v2881
        %v3414 = vmul.f32 %v2902, %v2881
        %v3415 = vmul.f32 %v2903, %v2881
        %v3416 = vmul.f32 %v2904, %v2881
        %v3417 = vmul.f32 %v2905, %v2881
        %v3418 = vmul.f32 %v2906, %v2881
        %v3419 = vmul.f32 %v2907, %v2881
        %v3420 = vmul.f32 %v2908, %v2881
        %v3421 = vmul.f32 %v2909, %v2881
        %v3422 = vmul.f32 %v2910, %v2881
        %v3423 = vmul.f32 %v2911, %v2881
        %v3424 = vmul.f32 %v2912, %v2881
        %v3425 = vmul.f32 %v2913, %v2881
        %v3426 = vmul.f32 %v2914, %v2881
        %v3427 = vmul.f32 %v2915, %v2881
        %v3428 = vmul.f32 %v2916, %v2881
        %v3429 = vmul.f32 %v2917, %v2881
        %v3430 = vmul.f32 %v2918, %v2881
        %v3431 = vmul.f32 %v2919, %v2881
        %v3432 = vmul.f32 %v2920, %v2881
        %v3433 = vmul.f32 %v2921, %v2881
        %v3434 = vmul.f32 %v2922, %v2881
        %v3435 = vmul.f32 %v2923, %v2881
        %v3436 = vmul.f32 %v2924, %v2881
        %v3437 = vmul.f32 %v2925, %v2881
        %v3438 = vmul.f32 %v2926, %v2881
        %v3439 = vmul.f32 %v2927, %v2881
        %v3440 = vmul.f32 %v2928, %v2881
        %v3441 = vmul.f32 %v2929, %v2881
        %v3442 = vmul.f32 %v2930, %v2881
        %v3443 = vmul.f32 %v2931, %v2881
        %v3444 = vmul.f32 %v2932, %v2881
        %v3445 = vmul.f32 %v2933, %v2881
        %v3446 = vmul.f32 %v2934, %v2881
        %v3447 = vmul.f32 %v2935, %v2881
        %v3448 = vmul.f32 %v2936, %v2881
        %v3449 = vmul.f32 %v2937, %v2881
        %v3450 = vmul.f32 %v2938, %v2881
        %v3451 = vmul.f32 %v2939, %v2881
        %v3452 = vmul.f32 %v2940, %v2881
        %v3453 = vmul.f32 %v2941, %v2881
        %v3454 = vmul.f32 %v2942, %v2881
        %v3455 = vmul.f32 %v2943, %v2881
        %v3456 = vmul.f32 %v2944, %v2881
        %v3457 = vmul.f32 %v2945, %v2881
        %v3458 = vmul.f32 %v2946, %v2881
        %v3459 = vmul.f32 %v2947, %v2881
        %v3460 = vmul.f32 %v2948, %v2881
        %v3461 = vmul.f32 %v2949, %v2881
        %v3462 = vmul.f32 %v2950, %v2881
        %v3463 = vmul.f32 %v2951, %v2881
        %v3464 = vmul.f32 %v2952, %v2881
        %v3465 = vmul.f32 %v2953, %v2881
        %v3466 = vmul.f32 %v2954, %v2881
        %v3467 = vmul.f32 %v2955, %v2881
        %v3468 = vmul.f32 %v2956, %v2881
        %v3469 = vmul.f32 %v2957, %v2881
        %v3470 = vmul.f32 %v2958, %v2881
        %v3471 = vmul.f32 %v2959, %v2881
        %v3472 = vmul.f32 %v2960, %v2881
        %v3473 = vmul.f32 %v2961, %v2881
        %v3474 = vmul.f32 %v2962, %v2881
        %v3475 = vmul.f32 %v2963, %v2881
        %v3476 = vmul.f32 %v2964, %v2881
        %v3477 = vmul.f32 %v2965, %v2881
        %v3478 = vmul.f32 %v2966, %v2881
        %v3479 = vmul.f32 %v2967, %v2881
        %v3480 = vmul.f32 %v2968, %v2881
        %v3481 = vmul.f32 %v2969, %v2881
        %v3482 = vmul.f32 %v2970, %v2881
        %v3483 = vmul.f32 %v2971, %v2881
        %v3484 = vmul.f32 %v2972, %v2881
        %v3485 = vmul.f32 %v2973, %v2881
        %v3486 = vmul.f32 %v2974, %v2881
        %v3487 = vmul.f32 %v2975, %v2881
        %v3488 = vmul.f32 %v2976, %v2881
        %v3489 = vmul.f32 %v2977, %v2881
        %v3490 = vmul.f32 %v2978, %v2881
        %v3491 = vmul.f32 %v2979, %v2881
        %v3492 = vmul.f32 %v2980, %v2881
        %v3493 = vmul.f32 %v2981, %v2881
        %v3494 = vmul.f32 %v2982, %v2881
        %v3495 = vmul.f32 %v2983, %v2881
        %v3496 = vmul.f32 %v2984, %v2881
        %v3497 = vmul.f32 %v2985, %v2881
        %v3498 = vmul.f32 %v2986, %v2881
        %v3499 = vmul.f32 %v2987, %v2881
        %v3500 = vmul.f32 %v2988, %v2881
        %v3501 = vmul.f32 %v2989, %v2881
        %v3502 = vmul.f32 %v2990, %v2881
        %v3503 = vmul.f32 %v2991, %v2881
        %v3504 = vmul.f32 %v2992, %v2881
        %v3505 = vmul.f32 %v2993, %v2881
        %v3506 = vmul.f32 %v2994, %v2881
        %v3507 = vmul.f32 %v2995, %v2881
        %v3508 = vmul.f32 %v2996, %v2881
        %v3509 = vmul.f32 %v2997, %v2881
        %v3510 = vmul.f32 %v2998, %v2881
        %v3511 = vmul.f32 %v2999, %v2881
        %v3512 = vmul.f32 %v3000, %v2881
        %v3513 = vmul.f32 %v3001, %v2881
        %v3514 = vmul.f32 %v3002, %v2881
        %v3515 = vmul.f32 %v3003, %v2881
        %v3516 = vmul.f32 %v3004, %v2881
        %v3517 = vmul.f32 %v3005, %v2881
        %v3518 = vmul.f32 %v3006, %v2881
        %v3519 = vmul.f32 %v3007, %v2881
        %v3520 = vmul.f32 %v3008, %v2881
        %v3521 = vmul.f32 %v3009, %v2881
        %v3522 = vmul.f32 %v3010, %v2881
        %v3523 = vmul.f32 %v3011, %v2881
        %v3524 = vmul.f32 %v3012, %v2881
        %v3525 = vmul.f32 %v3013, %v2881
        %v3526 = vmul.f32 %v3014, %v2881
        %v3527 = vmul.f32 %v3015, %v2881
        %v3528 = vmul.f32 %v3016, %v2883
        %v3529 = vmul.f32 %v3017, %v2883
        %v3530 = vmul.f32 %v3018, %v2883
        %v3531 = vmul.f32 %v3019, %v2883
        %v3532 = vmul.f32 %v3020, %v2883
        %v3533 = vmul.f32 %v3021, %v2883
        %v3534 = vmul.f32 %v3022, %v2883
        %v3535 = vmul.f32 %v3023, %v2883
        %v3536 = vmul.f32 %v3024, %v2883
        %v3537 = vmul.f32 %v3025, %v2883
        %v3538 = vmul.f32 %v3026, %v2883
        %v3539 = vmul.f32 %v3027, %v2883
        %v3540 = vmul.f32 %v3028, %v2883
        %v3541 = vmul.f32 %v3029, %v2883
        %v3542 = vmul.f32 %v3030, %v2883
        %v3543 = vmul.f32 %v3031, %v2883
        %v3544 = vmul.f32 %v3032, %v2883
        %v3545 = vmul.f32 %v3033, %v2883
        %v3546 = vmul.f32 %v3034, %v2883
        %v3547 = vmul.f32 %v3035, %v2883
        %v3548 = vmul.f32 %v3036, %v2883
        %v3549 = vmul.f32 %v3037, %v2883
        %v3550 = vmul.f32 %v3038, %v2883
        %v3551 = vmul.f32 %v3039, %v2883
        %v3552 = vmul.f32 %v3040, %v2883
        %v3553 = vmul.f32 %v3041, %v2883
        %v3554 = vmul.f32 %v3042, %v2883
        %v3555 = vmul.f32 %v3043, %v2883
        %v3556 = vmul.f32 %v3044, %v2883
        %v3557 = vmul.f32 %v3045, %v2883
        %v3558 = vmul.f32 %v3046, %v2883
        %v3559 = vmul.f32 %v3047, %v2883
        %v3560 = vmul.f32 %v3048, %v2883
        %v3561 = vmul.f32 %v3049, %v2883
        %v3562 = vmul.f32 %v3050, %v2883
        %v3563 = vmul.f32 %v3051, %v2883
        %v3564 = vmul.f32 %v3052, %v2883
        %v3565 = vmul.f32 %v3053, %v2883
        %v3566 = vmul.f32 %v3054, %v2883
        %v3567 = vmul.f32 %v3055, %v2883
        %v3568 = vmul.f32 %v3056, %v2883
        %v3569 = vmul.f32 %v3057, %v2883
        %v3570 = vmul.f32 %v3058, %v2883
        %v3571 = vmul.f32 %v3059, %v2883
        %v3572 = vmul.f32 %v3060, %v2883
        %v3573 = vmul.f32 %v3061, %v2883
        %v3574 = vmul.f32 %v3062, %v2883
        %v3575 = vmul.f32 %v3063, %v2883
        %v3576 = vmul.f32 %v3064, %v2883
        %v3577 = vmul.f32 %v3065, %v2883
        %v3578 = vmul.f32 %v3066, %v2883
        %v3579 = vmul.f32 %v3067, %v2883
        %v3580 = vmul.f32 %v3068, %v2883
        %v3581 = vmul.f32 %v3069, %v2883
        %v3582 = vmul.f32 %v3070, %v2883
        %v3583 = vmul.f32 %v3071, %v2883
        %v3584 = vmul.f32 %v3072, %v2883
        %v3585 = vmul.f32 %v3073, %v2883
        %v3586 = vmul.f32 %v3074, %v2883
        %v3587 = vmul.f32 %v3075, %v2883
        %v3588 = vmul.f32 %v3076, %v2883
        %v3589 = vmul.f32 %v3077, %v2883
        %v3590 = vmul.f32 %v3078, %v2883
        %v3591 = vmul.f32 %v3079, %v2883
        %v3592 = vmul.f32 %v3080, %v2883
        %v3593 = vmul.f32 %v3081, %v2883
        %v3594 = vmul.f32 %v3082, %v2883
        %v3595 = vmul.f32 %v3083, %v2883
        %v3596 = vmul.f32 %v3084, %v2883
        %v3597 = vmul.f32 %v3085, %v2883
        %v3598 = vmul.f32 %v3086, %v2883
        %v3599 = vmul.f32 %v3087, %v2883
        %v3600 = vmul.f32 %v3088, %v2883
        %v3601 = vmul.f32 %v3089, %v2883
        %v3602 = vmul.f32 %v3090, %v2883
        %v3603 = vmul.f32 %v3091, %v2883
        %v3604 = vmul.f32 %v3092, %v2883
        %v3605 = vmul.f32 %v3093, %v2883
        %v3606 = vmul.f32 %v3094, %v2883
        %v3607 = vmul.f32 %v3095, %v2883
        %v3608 = vmul.f32 %v3096, %v2883
        %v3609 = vmul.f32 %v3097, %v2883
        %v3610 = vmul.f32 %v3098, %v2883
        %v3611 = vmul.f32 %v3099, %v2883
        %v3612 = vmul.f32 %v3100, %v2883
        %v3613 = vmul.f32 %v3101, %v2883
        %v3614 = vmul.f32 %v3102, %v2883
        %v3615 = vmul.f32 %v3103, %v2883
        %v3616 = vmul.f32 %v3104, %v2883
        %v3617 = vmul.f32 %v3105, %v2883
        %v3618 = vmul.f32 %v3106, %v2883
        %v3619 = vmul.f32 %v3107, %v2883
        %v3620 = vmul.f32 %v3108, %v2883
        %v3621 = vmul.f32 %v3109, %v2883
        %v3622 = vmul.f32 %v3110, %v2883
        %v3623 = vmul.f32 %v3111, %v2883
        %v3624 = vmul.f32 %v3112, %v2883
        %v3625 = vmul.f32 %v3113, %v2883
        %v3626 = vmul.f32 %v3114, %v2883
        %v3627 = vmul.f32 %v3115, %v2883
        %v3628 = vmul.f32 %v3116, %v2883
        %v3629 = vmul.f32 %v3117, %v2883
        %v3630 = vmul.f32 %v3118, %v2883
        %v3631 = vmul.f32 %v3119, %v2883
        %v3632 = vmul.f32 %v3120, %v2883
        %v3633 = vmul.f32 %v3121, %v2883
        %v3634 = vmul.f32 %v3122, %v2883
        %v3635 = vmul.f32 %v3123, %v2883
        %v3636 = vmul.f32 %v3124, %v2883
        %v3637 = vmul.f32 %v3125, %v2883
        %v3638 = vmul.f32 %v3126, %v2883
        %v3639 = vmul.f32 %v3127, %v2883
        %v3640 = vmul.f32 %v3128, %v2883
        %v3641 = vmul.f32 %v3129, %v2883
        %v3642 = vmul.f32 %v3130, %v2883
        %v3643 = vmul.f32 %v3131, %v2883
        %v3644 = vmul.f32 %v3132, %v2883
        %v3645 = vmul.f32 %v3133, %v2883
        %v3646 = vmul.f32 %v3134, %v2883
        %v3647 = vmul.f32 %v3135, %v2883
        %v3648 = vmul.f32 %v3136, %v2883
        %v3649 = vmul.f32 %v3137, %v2883
        %v3650 = vmul.f32 %v3138, %v2883
        %v3651 = vmul.f32 %v3139, %v2883
        %v3652 = vmul.f32 %v3140, %v2883
        %v3653 = vmul.f32 %v3141, %v2883
        %v3654 = vmul.f32 %v3142, %v2883
        %v3655 = vmul.f32 %v3143, %v2883
        %v3656 = vmul.f32 %v3144, %v2885
        %v3657 = vmul.f32 %v3145, %v2885
        %v3658 = vmul.f32 %v3146, %v2885
        %v3659 = vmul.f32 %v3147, %v2885
        %v3660 = vmul.f32 %v3148, %v2885
        %v3661 = vmul.f32 %v3149, %v2885
        %v3662 = vmul.f32 %v3150, %v2885
        %v3663 = vmul.f32 %v3151, %v2885
        %v3664 = vmul.f32 %v3152, %v2885
        %v3665 = vmul.f32 %v3153, %v2885
        %v3666 = vmul.f32 %v3154, %v2885
        %v3667 = vmul.f32 %v3155, %v2885
        %v3668 = vmul.f32 %v3156, %v2885
        %v3669 = vmul.f32 %v3157, %v2885
        %v3670 = vmul.f32 %v3158, %v2885
        %v3671 = vmul.f32 %v3159, %v2885
        %v3672 = vmul.f32 %v3160, %v2885
        %v3673 = vmul.f32 %v3161, %v2885
        %v3674 = vmul.f32 %v3162, %v2885
        %v3675 = vmul.f32 %v3163, %v2885
        %v3676 = vmul.f32 %v3164, %v2885
        %v3677 = vmul.f32 %v3165, %v2885
        %v3678 = vmul.f32 %v3166, %v2885
        %v3679 = vmul.f32 %v3167, %v2885
        %v3680 = vmul.f32 %v3168, %v2885
        %v3681 = vmul.f32 %v3169, %v2885
        %v3682 = vmul.f32 %v3170, %v2885
        %v3683 = vmul.f32 %v3171, %v2885
        %v3684 = vmul.f32 %v3172, %v2885
        %v3685 = vmul.f32 %v3173, %v2885
        %v3686 = vmul.f32 %v3174, %v2885
        %v3687 = vmul.f32 %v3175, %v2885
        %v3688 = vmul.f32 %v3176, %v2885
        %v3689 = vmul.f32 %v3177, %v2885
        %v3690 = vmul.f32 %v3178, %v2885
        %v3691 = vmul.f32 %v3179, %v2885
        %v3692 = vmul.f32 %v3180, %v2885
        %v3693 = vmul.f32 %v3181, %v2885
        %v3694 = vmul.f32 %v3182, %v2885
        %v3695 = vmul.f32 %v3183, %v2885
        %v3696 = vmul.f32 %v3184, %v2885
        %v3697 = vmul.f32 %v3185, %v2885
        %v3698 = vmul.f32 %v3186, %v2885
        %v3699 = vmul.f32 %v3187, %v2885
        %v3700 = vmul.f32 %v3188, %v2885
        %v3701 = vmul.f32 %v3189, %v2885
        %v3702 = vmul.f32 %v3190, %v2885
        %v3703 = vmul.f32 %v3191, %v2885
        %v3704 = vmul.f32 %v3192, %v2885
        %v3705 = vmul.f32 %v3193, %v2885
        %v3706 = vmul.f32 %v3194, %v2885
        %v3707 = vmul.f32 %v3195, %v2885
        %v3708 = vmul.f32 %v3196, %v2885
        %v3709 = vmul.f32 %v3197, %v2885
        %v3710 = vmul.f32 %v3198, %v2885
        %v3711 = vmul.f32 %v3199, %v2885
        %v3712 = vmul.f32 %v3200, %v2885
        %v3713 = vmul.f32 %v3201, %v2885
        %v3714 = vmul.f32 %v3202, %v2885
        %v3715 = vmul.f32 %v3203, %v2885
        %v3716 = vmul.f32 %v3204, %v2885
        %v3717 = vmul.f32 %v3205, %v2885
        %v3718 = vmul.f32 %v3206, %v2885
        %v3719 = vmul.f32 %v3207, %v2885
        %v3720 = vmul.f32 %v3208, %v2885
        %v3721 = vmul.f32 %v3209, %v2885
        %v3722 = vmul.f32 %v3210, %v2885
        %v3723 = vmul.f32 %v3211, %v2885
        %v3724 = vmul.f32 %v3212, %v2885
        %v3725 = vmul.f32 %v3213, %v2885
        %v3726 = vmul.f32 %v3214, %v2885
        %v3727 = vmul.f32 %v3215, %v2885
        %v3728 = vmul.f32 %v3216, %v2885
        %v3729 = vmul.f32 %v3217, %v2885
        %v3730 = vmul.f32 %v3218, %v2885
        %v3731 = vmul.f32 %v3219, %v2885
        %v3732 = vmul.f32 %v3220, %v2885
        %v3733 = vmul.f32 %v3221, %v2885
        %v3734 = vmul.f32 %v3222, %v2885
        %v3735 = vmul.f32 %v3223, %v2885
        %v3736 = vmul.f32 %v3224, %v2885
        %v3737 = vmul.f32 %v3225, %v2885
        %v3738 = vmul.f32 %v3226, %v2885
        %v3739 = vmul.f32 %v3227, %v2885
        %v3740 = vmul.f32 %v3228, %v2885
        %v3741 = vmul.f32 %v3229, %v2885
        %v3742 = vmul.f32 %v3230, %v2885
        %v3743 = vmul.f32 %v3231, %v2885
        %v3744 = vmul.f32 %v3232, %v2885
        %v3745 = vmul.f32 %v3233, %v2885
        %v3746 = vmul.f32 %v3234, %v2885
        %v3747 = vmul.f32 %v3235, %v2885
        %v3748 = vmul.f32 %v3236, %v2885
        %v3749 = vmul.f32 %v3237, %v2885
        %v3750 = vmul.f32 %v3238, %v2885
        %v3751 = vmul.f32 %v3239, %v2885
        %v3752 = vmul.f32 %v3240, %v2885
        %v3753 = vmul.f32 %v3241, %v2885
        %v3754 = vmul.f32 %v3242, %v2885
        %v3755 = vmul.f32 %v3243, %v2885
        %v3756 = vmul.f32 %v3244, %v2885
        %v3757 = vmul.f32 %v3245, %v2885
        %v3758 = vmul.f32 %v3246, %v2885
        %v3759 = vmul.f32 %v3247, %v2885
        %v3760 = vmul.f32 %v3248, %v2885
        %v3761 = vmul.f32 %v3249, %v2885
        %v3762 = vmul.f32 %v3250, %v2885
        %v3763 = vmul.f32 %v3251, %v2885
        %v3764 = vmul.f32 %v3252, %v2885
        %v3765 = vmul.f32 %v3253, %v2885
        %v3766 = vmul.f32 %v3254, %v2885
        %v3767 = vmul.f32 %v3255, %v2885
        %v3768 = vmul.f32 %v3256, %v2885
        %v3769 = vmul.f32 %v3257, %v2885
        %v3770 = vmul.f32 %v3258, %v2885
        %v3771 = vmul.f32 %v3259, %v2885
        %v3772 = vmul.f32 %v3260, %v2885
        %v3773 = vmul.f32 %v3261, %v2885
        %v3774 = vmul.f32 %v3262, %v2885
        %v3775 = vmul.f32 %v3263, %v2885
        %v3776 = vmul.f32 %v3264, %v2885
        %v3777 = vmul.f32 %v3265, %v2885
        %v3778 = vmul.f32 %v3266, %v2885
        %v3779 = vmul.f32 %v3267, %v2885
        %v3780 = vmul.f32 %v3268, %v2885
        %v3781 = vmul.f32 %v3269, %v2885
        %v3782 = vmul.f32 %v3270, %v2885
        %v3783 = vmul.f32 %v3271, %v2885
        %v3784 = vmul.f32 %v3272, %v2887
        %v3785 = vmul.f32 %v3273, %v2887
        %v3786 = vmul.f32 %v3274, %v2887
        %v3787 = vmul.f32 %v3275, %v2887
        %v3788 = vmul.f32 %v3276, %v2887
        %v3789 = vmul.f32 %v3277, %v2887
        %v3790 = vmul.f32 %v3278, %v2887
        %v3791 = vmul.f32 %v3279, %v2887
        %v3792 = vmul.f32 %v3280, %v2887
        %v3793 = vmul.f32 %v3281, %v2887
        %v3794 = vmul.f32 %v3282, %v2887
        %v3795 = vmul.f32 %v3283, %v2887
        %v3796 = vmul.f32 %v3284, %v2887
        %v3797 = vmul.f32 %v3285, %v2887
        %v3798 = vmul.f32 %v3286, %v2887
        %v3799 = vmul.f32 %v3287, %v2887
        %v3800 = vmul.f32 %v3288, %v2887
        %v3801 = vmul.f32 %v3289, %v2887
        %v3802 = vmul.f32 %v3290, %v2887
        %v3803 = vmul.f32 %v3291, %v2887
        %v3804 = vmul.f32 %v3292, %v2887
        %v3805 = vmul.f32 %v3293, %v2887
        %v3806 = vmul.f32 %v3294, %v2887
        %v3807 = vmul.f32 %v3295, %v2887
        %v3808 = vmul.f32 %v3296, %v2887
        %v3809 = vmul.f32 %v3297, %v2887
        %v3810 = vmul.f32 %v3298, %v2887
        %v3811 = vmul.f32 %v3299, %v2887
        %v3812 = vmul.f32 %v3300, %v2887
        %v3813 = vmul.f32 %v3301, %v2887
        %v3814 = vmul.f32 %v3302, %v2887
        %v3815 = vmul.f32 %v3303, %v2887
        %v3816 = vmul.f32 %v3304, %v2887
        %v3817 = vmul.f32 %v3305, %v2887
        %v3818 = vmul.f32 %v3306, %v2887
        %v3819 = vmul.f32 %v3307, %v2887
        %v3820 = vmul.f32 %v3308, %v2887
        %v3821 = vmul.f32 %v3309, %v2887
        %v3822 = vmul.f32 %v3310, %v2887
        %v3823 = vmul.f32 %v3311, %v2887
        %v3824 = vmul.f32 %v3312, %v2887
        %v3825 = vmul.f32 %v3313, %v2887
        %v3826 = vmul.f32 %v3314, %v2887
        %v3827 = vmul.f32 %v3315, %v2887
        %v3828 = vmul.f32 %v3316, %v2887
        %v3829 = vmul.f32 %v3317, %v2887
        %v3830 = vmul.f32 %v3318, %v2887
        %v3831 = vmul.f32 %v3319, %v2887
        %v3832 = vmul.f32 %v3320, %v2887
        %v3833 = vmul.f32 %v3321, %v2887
        %v3834 = vmul.f32 %v3322, %v2887
        %v3835 = vmul.f32 %v3323, %v2887
        %v3836 = vmul.f32 %v3324, %v2887
        %v3837 = vmul.f32 %v3325, %v2887
        %v3838 = vmul.f32 %v3326, %v2887
        %v3839 = vmul.f32 %v3327, %v2887
        %v3840 = vmul.f32 %v3328, %v2887
        %v3841 = vmul.f32 %v3329, %v2887
        %v3842 = vmul.f32 %v3330, %v2887
        %v3843 = vmul.f32 %v3331, %v2887
        %v3844 = vmul.f32 %v3332, %v2887
        %v3845 = vmul.f32 %v3333, %v2887
        %v3846 = vmul.f32 %v3334, %v2887
        %v3847 = vmul.f32 %v3335, %v2887
        %v3848 = vmul.f32 %v3336, %v2887
        %v3849 = vmul.f32 %v3337, %v2887
        %v3850 = vmul.f32 %v3338, %v2887
        %v3851 = vmul.f32 %v3339, %v2887
        %v3852 = vmul.f32 %v3340, %v2887
        %v3853 = vmul.f32 %v3341, %v2887
        %v3854 = vmul.f32 %v3342, %v2887
        %v3855 = vmul.f32 %v3343, %v2887
        %v3856 = vmul.f32 %v3344, %v2887
        %v3857 = vmul.f32 %v3345, %v2887
        %v3858 = vmul.f32 %v3346, %v2887
        %v3859 = vmul.f32 %v3347, %v2887
        %v3860 = vmul.f32 %v3348, %v2887
        %v3861 = vmul.f32 %v3349, %v2887
        %v3862 = vmul.f32 %v3350, %v2887
        %v3863 = vmul.f32 %v3351, %v2887
        %v3864 = vmul.f32 %v3352, %v2887
        %v3865 = vmul.f32 %v3353, %v2887
        %v3866 = vmul.f32 %v3354, %v2887
        %v3867 = vmul.f32 %v3355, %v2887
        %v3868 = vmul.f32 %v3356, %v2887
        %v3869 = vmul.f32 %v3357, %v2887
        %v3870 = vmul.f32 %v3358, %v2887
        %v3871 = vmul.f32 %v3359, %v2887
        %v3872 = vmul.f32 %v3360, %v2887
        %v3873 = vmul.f32 %v3361, %v2887
        %v3874 = vmul.f32 %v3362, %v2887
        %v3875 = vmul.f32 %v3363, %v2887
        %v3876 = vmul.f32 %v3364, %v2887
        %v3877 = vmul.f32 %v3365, %v2887
        %v3878 = vmul.f32 %v3366, %v2887
        %v3879 = vmul.f32 %v3367, %v2887
        %v3880 = vmul.f32 %v3368, %v2887
        %v3881 = vmul.f32 %v3369, %v2887
        %v3882 = vmul.f32 %v3370, %v2887
        %v3883 = vmul.f32 %v3371, %v2887
        %v3884 = vmul.f32 %v3372, %v2887
        %v3885 = vmul.f32 %v3373, %v2887
        %v3886 = vmul.f32 %v3374, %v2887
        %v3887 = vmul.f32 %v3375, %v2887
        %v3888 = vmul.f32 %v3376, %v2887
        %v3889 = vmul.f32 %v3377, %v2887
        %v3890 = vmul.f32 %v3378, %v2887
        %v3891 = vmul.f32 %v3379, %v2887
        %v3892 = vmul.f32 %v3380, %v2887
        %v3893 = vmul.f32 %v3381, %v2887
        %v3894 = vmul.f32 %v3382, %v2887
        %v3895 = vmul.f32 %v3383, %v2887
        %v3896 = vmul.f32 %v3384, %v2887
        %v3897 = vmul.f32 %v3385, %v2887
        %v3898 = vmul.f32 %v3386, %v2887
        %v3899 = vmul.f32 %v3387, %v2887
        %v3900 = vmul.f32 %v3388, %v2887
        %v3901 = vmul.f32 %v3389, %v2887
        %v3902 = vmul.f32 %v3390, %v2887
        %v3903 = vmul.f32 %v3391, %v2887
        %v3904 = vmul.f32 %v3392, %v2887
        %v3905 = vmul.f32 %v3393, %v2887
        %v3906 = vmul.f32 %v3394, %v2887
        %v3907 = vmul.f32 %v3395, %v2887
        %v3908 = vmul.f32 %v3396, %v2887
        %v3909 = vmul.f32 %v3397, %v2887
        %v3910 = vmul.f32 %v3398, %v2887
        %v3911 = vmul.f32 %v3399, %v2887
        %3912 = vst [vmem:[%s263] sm:$0xff] %v3400
        %3913 = vst [vmem:[%s263 + $0x8] sm:$0xff] %v3401
        %3914 = vst [vmem:[%s263 + $0x10] sm:$0xff] %v3402
        %3915 = vst [vmem:[%s263 + $0x18] sm:$0xff] %v3403
        %3916 = vst [vmem:[%s263 + $0x20] sm:$0xff] %v3404
        %3917 = vst [vmem:[%s263 + $0x28] sm:$0xff] %v3405
        %3918 = vst [vmem:[%s263 + $0x30] sm:$0xff] %v3406
        %3919 = vst [vmem:[%s263 + $0x38] sm:$0xff] %v3407
        %3920 = vst [vmem:[%s263 + $0x40] sm:$0xff] %v3408
        %3921 = vst [vmem:[%s263 + $0x48] sm:$0xff] %v3409
        %3922 = vst [vmem:[%s263 + $0x50] sm:$0xff] %v3410
        %3923 = vst [vmem:[%s263 + $0x58] sm:$0xff] %v3411
        %3924 = vst [vmem:[%s263 + $0x60] sm:$0xff] %v3412
        %3925 = vst [vmem:[%s263 + $0x68] sm:$0xff] %v3413
        %3926 = vst [vmem:[%s263 + $0x70] sm:$0xff] %v3414
        %3927 = vst [vmem:[%s263 + $0x78] sm:$0xff] %v3415
        %3928 = vst [vmem:[%s263 + $0x80] sm:$0xff] %v3416
        %3929 = vst [vmem:[%s263 + $0x88] sm:$0xff] %v3417
        %3930 = vst [vmem:[%s263 + $0x90] sm:$0xff] %v3418
        %3931 = vst [vmem:[%s263 + $0x98] sm:$0xff] %v3419
        %3932 = vst [vmem:[%s263 + $0xa0] sm:$0xff] %v3420
        %3933 = vst [vmem:[%s263 + $0xa8] sm:$0xff] %v3421
        %3934 = vst [vmem:[%s263 + $0xb0] sm:$0xff] %v3422
        %3935 = vst [vmem:[%s263 + $0xb8] sm:$0xff] %v3423
        %3936 = vst [vmem:[%s263 + $0xc0] sm:$0xff] %v3424
        %3937 = vst [vmem:[%s263 + $0xc8] sm:$0xff] %v3425
        %3938 = vst [vmem:[%s263 + $0xd0] sm:$0xff] %v3426
        %3939 = vst [vmem:[%s263 + $0xd8] sm:$0xff] %v3427
        %3940 = vst [vmem:[%s263 + $0xe0] sm:$0xff] %v3428
        %3941 = vst [vmem:[%s263 + $0xe8] sm:$0xff] %v3429
        %3942 = vst [vmem:[%s263 + $0xf0] sm:$0xff] %v3430
        %3943 = vst [vmem:[%s263 + $0xf8] sm:$0xff] %v3431
        %3944 = vst [vmem:[%s263 + $0x100] sm:$0xff] %v3432
        %3945 = vst [vmem:[%s263 + $0x108] sm:$0xff] %v3433
        %3946 = vst [vmem:[%s263 + $0x110] sm:$0xff] %v3434
        %3947 = vst [vmem:[%s263 + $0x118] sm:$0xff] %v3435
        %3948 = vst [vmem:[%s263 + $0x120] sm:$0xff] %v3436
        %3949 = vst [vmem:[%s263 + $0x128] sm:$0xff] %v3437
        %3950 = vst [vmem:[%s263 + $0x130] sm:$0xff] %v3438
        %3951 = vst [vmem:[%s263 + $0x138] sm:$0xff] %v3439
        %3952 = vst [vmem:[%s263 + $0x140] sm:$0xff] %v3440
        %3953 = vst [vmem:[%s263 + $0x148] sm:$0xff] %v3441
        %3954 = vst [vmem:[%s263 + $0x150] sm:$0xff] %v3442
        %3955 = vst [vmem:[%s263 + $0x158] sm:$0xff] %v3443
        %3956 = vst [vmem:[%s263 + $0x160] sm:$0xff] %v3444
        %3957 = vst [vmem:[%s263 + $0x168] sm:$0xff] %v3445
        %3958 = vst [vmem:[%s263 + $0x170] sm:$0xff] %v3446
        %3959 = vst [vmem:[%s263 + $0x178] sm:$0xff] %v3447
        %3960 = vst [vmem:[%s263 + $0x180] sm:$0xff] %v3448
        %3961 = vst [vmem:[%s263 + $0x188] sm:$0xff] %v3449
        %3962 = vst [vmem:[%s263 + $0x190] sm:$0xff] %v3450
        %3963 = vst [vmem:[%s263 + $0x198] sm:$0xff] %v3451
        %3964 = vst [vmem:[%s263 + $0x1a0] sm:$0xff] %v3452
        %3965 = vst [vmem:[%s263 + $0x1a8] sm:$0xff] %v3453
        %3966 = vst [vmem:[%s263 + $0x1b0] sm:$0xff] %v3454
        %3967 = vst [vmem:[%s263 + $0x1b8] sm:$0xff] %v3455
        %3968 = vst [vmem:[%s263 + $0x1c0] sm:$0xff] %v3456
        %3969 = vst [vmem:[%s263 + $0x1c8] sm:$0xff] %v3457
        %3970 = vst [vmem:[%s263 + $0x1d0] sm:$0xff] %v3458
        %3971 = vst [vmem:[%s263 + $0x1d8] sm:$0xff] %v3459
        %3972 = vst [vmem:[%s263 + $0x1e0] sm:$0xff] %v3460
        %3973 = vst [vmem:[%s263 + $0x1e8] sm:$0xff] %v3461
        %3974 = vst [vmem:[%s263 + $0x1f0] sm:$0xff] %v3462
        %3975 = vst [vmem:[%s263 + $0x1f8] sm:$0xff] %v3463
        %3976 = vst [vmem:[%s263 + $0x200] sm:$0xff] %v3464
        %3977 = vst [vmem:[%s263 + $0x208] sm:$0xff] %v3465
        %3978 = vst [vmem:[%s263 + $0x210] sm:$0xff] %v3466
        %3979 = vst [vmem:[%s263 + $0x218] sm:$0xff] %v3467
        %3980 = vst [vmem:[%s263 + $0x220] sm:$0xff] %v3468
        %3981 = vst [vmem:[%s263 + $0x228] sm:$0xff] %v3469
        %3982 = vst [vmem:[%s263 + $0x230] sm:$0xff] %v3470
        %3983 = vst [vmem:[%s263 + $0x238] sm:$0xff] %v3471
        %3984 = vst [vmem:[%s263 + $0x240] sm:$0xff] %v3472
        %3985 = vst [vmem:[%s263 + $0x248] sm:$0xff] %v3473
        %3986 = vst [vmem:[%s263 + $0x250] sm:$0xff] %v3474
        %3987 = vst [vmem:[%s263 + $0x258] sm:$0xff] %v3475
        %3988 = vst [vmem:[%s263 + $0x260] sm:$0xff] %v3476
        %3989 = vst [vmem:[%s263 + $0x268] sm:$0xff] %v3477
        %3990 = vst [vmem:[%s263 + $0x270] sm:$0xff] %v3478
        %3991 = vst [vmem:[%s263 + $0x278] sm:$0xff] %v3479
        %3992 = vst [vmem:[%s263 + $0x280] sm:$0xff] %v3480
        %3993 = vst [vmem:[%s263 + $0x288] sm:$0xff] %v3481
        %3994 = vst [vmem:[%s263 + $0x290] sm:$0xff] %v3482
        %3995 = vst [vmem:[%s263 + $0x298] sm:$0xff] %v3483
        %3996 = vst [vmem:[%s263 + $0x2a0] sm:$0xff] %v3484
        %3997 = vst [vmem:[%s263 + $0x2a8] sm:$0xff] %v3485
        %3998 = vst [vmem:[%s263 + $0x2b0] sm:$0xff] %v3486
        %3999 = vst [vmem:[%s263 + $0x2b8] sm:$0xff] %v3487
        %4000 = vst [vmem:[%s263 + $0x2c0] sm:$0xff] %v3488
        %4001 = vst [vmem:[%s263 + $0x2c8] sm:$0xff] %v3489
        %4002 = vst [vmem:[%s263 + $0x2d0] sm:$0xff] %v3490
        %4003 = vst [vmem:[%s263 + $0x2d8] sm:$0xff] %v3491
        %4004 = vst [vmem:[%s263 + $0x2e0] sm:$0xff] %v3492
        %4005 = vst [vmem:[%s263 + $0x2e8] sm:$0xff] %v3493
        %4006 = vst [vmem:[%s263 + $0x2f0] sm:$0xff] %v3494
        %4007 = vst [vmem:[%s263 + $0x2f8] sm:$0xff] %v3495
        %4008 = vst [vmem:[%s263 + $0x300] sm:$0xff] %v3496
        %4009 = vst [vmem:[%s263 + $0x308] sm:$0xff] %v3497
        %4010 = vst [vmem:[%s263 + $0x310] sm:$0xff] %v3498
        %4011 = vst [vmem:[%s263 + $0x318] sm:$0xff] %v3499
        %4012 = vst [vmem:[%s263 + $0x320] sm:$0xff] %v3500
        %4013 = vst [vmem:[%s263 + $0x328] sm:$0xff] %v3501
        %4014 = vst [vmem:[%s263 + $0x330] sm:$0xff] %v3502
        %4015 = vst [vmem:[%s263 + $0x338] sm:$0xff] %v3503
        %4016 = vst [vmem:[%s263 + $0x340] sm:$0xff] %v3504
        %4017 = vst [vmem:[%s263 + $0x348] sm:$0xff] %v3505
        %4018 = vst [vmem:[%s263 + $0x350] sm:$0xff] %v3506
        %4019 = vst [vmem:[%s263 + $0x358] sm:$0xff] %v3507
        %4020 = vst [vmem:[%s263 + $0x360] sm:$0xff] %v3508
        %4021 = vst [vmem:[%s263 + $0x368] sm:$0xff] %v3509
        %4022 = vst [vmem:[%s263 + $0x370] sm:$0xff] %v3510
        %4023 = vst [vmem:[%s263 + $0x378] sm:$0xff] %v3511
        %4024 = vst [vmem:[%s263 + $0x380] sm:$0xff] %v3512
        %4025 = vst [vmem:[%s263 + $0x388] sm:$0xff] %v3513
        %4026 = vst [vmem:[%s263 + $0x390] sm:$0xff] %v3514
        %4027 = vst [vmem:[%s263 + $0x398] sm:$0xff] %v3515
        %4028 = vst [vmem:[%s263 + $0x3a0] sm:$0xff] %v3516
        %4029 = vst [vmem:[%s263 + $0x3a8] sm:$0xff] %v3517
        %4030 = vst [vmem:[%s263 + $0x3b0] sm:$0xff] %v3518
        %4031 = vst [vmem:[%s263 + $0x3b8] sm:$0xff] %v3519
        %4032 = vst [vmem:[%s263 + $0x3c0] sm:$0xff] %v3520
        %4033 = vst [vmem:[%s263 + $0x3c8] sm:$0xff] %v3521
        %4034 = vst [vmem:[%s263 + $0x3d0] sm:$0xff] %v3522
        %4035 = vst [vmem:[%s263 + $0x3d8] sm:$0xff] %v3523
        %4036 = vst [vmem:[%s263 + $0x3e0] sm:$0xff] %v3524
        %4037 = vst [vmem:[%s263 + $0x3e8] sm:$0xff] %v3525
        %4038 = vst [vmem:[%s263 + $0x3f0] sm:$0xff] %v3526
        %4039 = vst [vmem:[%s263 + $0x3f8] sm:$0xff] %v3527
        %4040 = vst [vmem:[%s263 + $0x400] sm:$0xff] %v3528
        %4041 = vst [vmem:[%s263 + $0x408] sm:$0xff] %v3529
        %4042 = vst [vmem:[%s263 + $0x410] sm:$0xff] %v3530
        %4043 = vst [vmem:[%s263 + $0x418] sm:$0xff] %v3531
        %4044 = vst [vmem:[%s263 + $0x420] sm:$0xff] %v3532
        %4045 = vst [vmem:[%s263 + $0x428] sm:$0xff] %v3533
        %4046 = vst [vmem:[%s263 + $0x430] sm:$0xff] %v3534
        %4047 = vst [vmem:[%s263 + $0x438] sm:$0xff] %v3535
        %4048 = vst [vmem:[%s263 + $0x440] sm:$0xff] %v3536
        %4049 = vst [vmem:[%s263 + $0x448] sm:$0xff] %v3537
        %4050 = vst [vmem:[%s263 + $0x450] sm:$0xff] %v3538
        %4051 = vst [vmem:[%s263 + $0x458] sm:$0xff] %v3539
        %4052 = vst [vmem:[%s263 + $0x460] sm:$0xff] %v3540
        %4053 = vst [vmem:[%s263 + $0x468] sm:$0xff] %v3541
        %4054 = vst [vmem:[%s263 + $0x470] sm:$0xff] %v3542
        %4055 = vst [vmem:[%s263 + $0x478] sm:$0xff] %v3543
        %4056 = vst [vmem:[%s263 + $0x480] sm:$0xff] %v3544
        %4057 = vst [vmem:[%s263 + $0x488] sm:$0xff] %v3545
        %4058 = vst [vmem:[%s263 + $0x490] sm:$0xff] %v3546
        %4059 = vst [vmem:[%s263 + $0x498] sm:$0xff] %v3547
        %4060 = vst [vmem:[%s263 + $0x4a0] sm:$0xff] %v3548
        %4061 = vst [vmem:[%s263 + $0x4a8] sm:$0xff] %v3549
        %4062 = vst [vmem:[%s263 + $0x4b0] sm:$0xff] %v3550
        %4063 = vst [vmem:[%s263 + $0x4b8] sm:$0xff] %v3551
        %4064 = vst [vmem:[%s263 + $0x4c0] sm:$0xff] %v3552
        %4065 = vst [vmem:[%s263 + $0x4c8] sm:$0xff] %v3553
        %4066 = vst [vmem:[%s263 + $0x4d0] sm:$0xff] %v3554
        %4067 = vst [vmem:[%s263 + $0x4d8] sm:$0xff] %v3555
        %4068 = vst [vmem:[%s263 + $0x4e0] sm:$0xff] %v3556
        %4069 = vst [vmem:[%s263 + $0x4e8] sm:$0xff] %v3557
        %4070 = vst [vmem:[%s263 + $0x4f0] sm:$0xff] %v3558
        %4071 = vst [vmem:[%s263 + $0x4f8] sm:$0xff] %v3559
        %4072 = vst [vmem:[%s263 + $0x500] sm:$0xff] %v3560
        %4073 = vst [vmem:[%s263 + $0x508] sm:$0xff] %v3561
        %4074 = vst [vmem:[%s263 + $0x510] sm:$0xff] %v3562
        %4075 = vst [vmem:[%s263 + $0x518] sm:$0xff] %v3563
        %4076 = vst [vmem:[%s263 + $0x520] sm:$0xff] %v3564
        %4077 = vst [vmem:[%s263 + $0x528] sm:$0xff] %v3565
        %4078 = vst [vmem:[%s263 + $0x530] sm:$0xff] %v3566
        %4079 = vst [vmem:[%s263 + $0x538] sm:$0xff] %v3567
        %4080 = vst [vmem:[%s263 + $0x540] sm:$0xff] %v3568
        %4081 = vst [vmem:[%s263 + $0x548] sm:$0xff] %v3569
        %4082 = vst [vmem:[%s263 + $0x550] sm:$0xff] %v3570
        %4083 = vst [vmem:[%s263 + $0x558] sm:$0xff] %v3571
        %4084 = vst [vmem:[%s263 + $0x560] sm:$0xff] %v3572
        %4085 = vst [vmem:[%s263 + $0x568] sm:$0xff] %v3573
        %4086 = vst [vmem:[%s263 + $0x570] sm:$0xff] %v3574
        %4087 = vst [vmem:[%s263 + $0x578] sm:$0xff] %v3575
        %4088 = vst [vmem:[%s263 + $0x580] sm:$0xff] %v3576
        %4089 = vst [vmem:[%s263 + $0x588] sm:$0xff] %v3577
        %4090 = vst [vmem:[%s263 + $0x590] sm:$0xff] %v3578
        %4091 = vst [vmem:[%s263 + $0x598] sm:$0xff] %v3579
        %4092 = vst [vmem:[%s263 + $0x5a0] sm:$0xff] %v3580
        %4093 = vst [vmem:[%s263 + $0x5a8] sm:$0xff] %v3581
        %4094 = vst [vmem:[%s263 + $0x5b0] sm:$0xff] %v3582
        %4095 = vst [vmem:[%s263 + $0x5b8] sm:$0xff] %v3583
        %4096 = vst [vmem:[%s263 + $0x5c0] sm:$0xff] %v3584
        %4097 = vst [vmem:[%s263 + $0x5c8] sm:$0xff] %v3585
        %4098 = vst [vmem:[%s263 + $0x5d0] sm:$0xff] %v3586
        %4099 = vst [vmem:[%s263 + $0x5d8] sm:$0xff] %v3587
        %4100 = vst [vmem:[%s263 + $0x5e0] sm:$0xff] %v3588
        %4101 = vst [vmem:[%s263 + $0x5e8] sm:$0xff] %v3589
        %4102 = vst [vmem:[%s263 + $0x5f0] sm:$0xff] %v3590
        %4103 = vst [vmem:[%s263 + $0x5f8] sm:$0xff] %v3591
        %4104 = vst [vmem:[%s263 + $0x600] sm:$0xff] %v3592
        %4105 = vst [vmem:[%s263 + $0x608] sm:$0xff] %v3593
        %4106 = vst [vmem:[%s263 + $0x610] sm:$0xff] %v3594
        %4107 = vst [vmem:[%s263 + $0x618] sm:$0xff] %v3595
        %4108 = vst [vmem:[%s263 + $0x620] sm:$0xff] %v3596
        %4109 = vst [vmem:[%s263 + $0x628] sm:$0xff] %v3597
        %4110 = vst [vmem:[%s263 + $0x630] sm:$0xff] %v3598
        %4111 = vst [vmem:[%s263 + $0x638] sm:$0xff] %v3599
        %4112 = vst [vmem:[%s263 + $0x640] sm:$0xff] %v3600
        %4113 = vst [vmem:[%s263 + $0x648] sm:$0xff] %v3601
        %4114 = vst [vmem:[%s263 + $0x650] sm:$0xff] %v3602
        %4115 = vst [vmem:[%s263 + $0x658] sm:$0xff] %v3603
        %4116 = vst [vmem:[%s263 + $0x660] sm:$0xff] %v3604
        %4117 = vst [vmem:[%s263 + $0x668] sm:$0xff] %v3605
        %4118 = vst [vmem:[%s263 + $0x670] sm:$0xff] %v3606
        %4119 = vst [vmem:[%s263 + $0x678] sm:$0xff] %v3607
        %4120 = vst [vmem:[%s263 + $0x680] sm:$0xff] %v3608
        %4121 = vst [vmem:[%s263 + $0x688] sm:$0xff] %v3609
        %4122 = vst [vmem:[%s263 + $0x690] sm:$0xff] %v3610
        %4123 = vst [vmem:[%s263 + $0x698] sm:$0xff] %v3611
        %4124 = vst [vmem:[%s263 + $0x6a0] sm:$0xff] %v3612
        %4125 = vst [vmem:[%s263 + $0x6a8] sm:$0xff] %v3613
        %4126 = vst [vmem:[%s263 + $0x6b0] sm:$0xff] %v3614
        %4127 = vst [vmem:[%s263 + $0x6b8] sm:$0xff] %v3615
        %4128 = vst [vmem:[%s263 + $0x6c0] sm:$0xff] %v3616
        %4129 = vst [vmem:[%s263 + $0x6c8] sm:$0xff] %v3617
        %4130 = vst [vmem:[%s263 + $0x6d0] sm:$0xff] %v3618
        %4131 = vst [vmem:[%s263 + $0x6d8] sm:$0xff] %v3619
        %4132 = vst [vmem:[%s263 + $0x6e0] sm:$0xff] %v3620
        %4133 = vst [vmem:[%s263 + $0x6e8] sm:$0xff] %v3621
        %4134 = vst [vmem:[%s263 + $0x6f0] sm:$0xff] %v3622
        %4135 = vst [vmem:[%s263 + $0x6f8] sm:$0xff] %v3623
        %4136 = vst [vmem:[%s263 + $0x700] sm:$0xff] %v3624
        %4137 = vst [vmem:[%s263 + $0x708] sm:$0xff] %v3625
        %4138 = vst [vmem:[%s263 + $0x710] sm:$0xff] %v3626
        %4139 = vst [vmem:[%s263 + $0x718] sm:$0xff] %v3627
        %4140 = vst [vmem:[%s263 + $0x720] sm:$0xff] %v3628
        %4141 = vst [vmem:[%s263 + $0x728] sm:$0xff] %v3629
        %4142 = vst [vmem:[%s263 + $0x730] sm:$0xff] %v3630
        %4143 = vst [vmem:[%s263 + $0x738] sm:$0xff] %v3631
        %4144 = vst [vmem:[%s263 + $0x740] sm:$0xff] %v3632
        %4145 = vst [vmem:[%s263 + $0x748] sm:$0xff] %v3633
        %4146 = vst [vmem:[%s263 + $0x750] sm:$0xff] %v3634
        %4147 = vst [vmem:[%s263 + $0x758] sm:$0xff] %v3635
        %4148 = vst [vmem:[%s263 + $0x760] sm:$0xff] %v3636
        %4149 = vst [vmem:[%s263 + $0x768] sm:$0xff] %v3637
        %4150 = vst [vmem:[%s263 + $0x770] sm:$0xff] %v3638
        %4151 = vst [vmem:[%s263 + $0x778] sm:$0xff] %v3639
        %4152 = vst [vmem:[%s263 + $0x780] sm:$0xff] %v3640
        %4153 = vst [vmem:[%s263 + $0x788] sm:$0xff] %v3641
        %4154 = vst [vmem:[%s263 + $0x790] sm:$0xff] %v3642
        %4155 = vst [vmem:[%s263 + $0x798] sm:$0xff] %v3643
        %4156 = vst [vmem:[%s263 + $0x7a0] sm:$0xff] %v3644
        %4157 = vst [vmem:[%s263 + $0x7a8] sm:$0xff] %v3645
        %4158 = vst [vmem:[%s263 + $0x7b0] sm:$0xff] %v3646
        %4159 = vst [vmem:[%s263 + $0x7b8] sm:$0xff] %v3647
        %4160 = vst [vmem:[%s263 + $0x7c0] sm:$0xff] %v3648
        %4161 = vst [vmem:[%s263 + $0x7c8] sm:$0xff] %v3649
        %4162 = vst [vmem:[%s263 + $0x7d0] sm:$0xff] %v3650
        %4163 = vst [vmem:[%s263 + $0x7d8] sm:$0xff] %v3651
        %4164 = vst [vmem:[%s263 + $0x7e0] sm:$0xff] %v3652
        %4165 = vst [vmem:[%s263 + $0x7e8] sm:$0xff] %v3653
        %4166 = vst [vmem:[%s263 + $0x7f0] sm:$0xff] %v3654
        %4167 = vst [vmem:[%s263 + $0x7f8] sm:$0xff] %v3655
        %4168 = vst [vmem:[%s263 + $0x800] sm:$0xff] %v3656
        %4169 = vst [vmem:[%s263 + $0x808] sm:$0xff] %v3657
        %4170 = vst [vmem:[%s263 + $0x810] sm:$0xff] %v3658
        %4171 = vst [vmem:[%s263 + $0x818] sm:$0xff] %v3659
        %4172 = vst [vmem:[%s263 + $0x820] sm:$0xff] %v3660
        %4173 = vst [vmem:[%s263 + $0x828] sm:$0xff] %v3661
        %4174 = vst [vmem:[%s263 + $0x830] sm:$0xff] %v3662
        %4175 = vst [vmem:[%s263 + $0x838] sm:$0xff] %v3663
        %4176 = vst [vmem:[%s263 + $0x840] sm:$0xff] %v3664
        %4177 = vst [vmem:[%s263 + $0x848] sm:$0xff] %v3665
        %4178 = vst [vmem:[%s263 + $0x850] sm:$0xff] %v3666
        %4179 = vst [vmem:[%s263 + $0x858] sm:$0xff] %v3667
        %4180 = vst [vmem:[%s263 + $0x860] sm:$0xff] %v3668
        %4181 = vst [vmem:[%s263 + $0x868] sm:$0xff] %v3669
        %4182 = vst [vmem:[%s263 + $0x870] sm:$0xff] %v3670
        %4183 = vst [vmem:[%s263 + $0x878] sm:$0xff] %v3671
        %4184 = vst [vmem:[%s263 + $0x880] sm:$0xff] %v3672
        %4185 = vst [vmem:[%s263 + $0x888] sm:$0xff] %v3673
        %4186 = vst [vmem:[%s263 + $0x890] sm:$0xff] %v3674
        %4187 = vst [vmem:[%s263 + $0x898] sm:$0xff] %v3675
        %4188 = vst [vmem:[%s263 + $0x8a0] sm:$0xff] %v3676
        %4189 = vst [vmem:[%s263 + $0x8a8] sm:$0xff] %v3677
        %4190 = vst [vmem:[%s263 + $0x8b0] sm:$0xff] %v3678
        %4191 = vst [vmem:[%s263 + $0x8b8] sm:$0xff] %v3679
        %4192 = vst [vmem:[%s263 + $0x8c0] sm:$0xff] %v3680
        %4193 = vst [vmem:[%s263 + $0x8c8] sm:$0xff] %v3681
        %4194 = vst [vmem:[%s263 + $0x8d0] sm:$0xff] %v3682
        %4195 = vst [vmem:[%s263 + $0x8d8] sm:$0xff] %v3683
        %4196 = vst [vmem:[%s263 + $0x8e0] sm:$0xff] %v3684
        %4197 = vst [vmem:[%s263 + $0x8e8] sm:$0xff] %v3685
        %4198 = vst [vmem:[%s263 + $0x8f0] sm:$0xff] %v3686
        %4199 = vst [vmem:[%s263 + $0x8f8] sm:$0xff] %v3687
        %4200 = vst [vmem:[%s263 + $0x900] sm:$0xff] %v3688
        %4201 = vst [vmem:[%s263 + $0x908] sm:$0xff] %v3689
        %4202 = vst [vmem:[%s263 + $0x910] sm:$0xff] %v3690
        %4203 = vst [vmem:[%s263 + $0x918] sm:$0xff] %v3691
        %4204 = vst [vmem:[%s263 + $0x920] sm:$0xff] %v3692
        %4205 = vst [vmem:[%s263 + $0x928] sm:$0xff] %v3693
        %4206 = vst [vmem:[%s263 + $0x930] sm:$0xff] %v3694
        %4207 = vst [vmem:[%s263 + $0x938] sm:$0xff] %v3695
        %4208 = vst [vmem:[%s263 + $0x940] sm:$0xff] %v3696
        %4209 = vst [vmem:[%s263 + $0x948] sm:$0xff] %v3697
        %4210 = vst [vmem:[%s263 + $0x950] sm:$0xff] %v3698
        %4211 = vst [vmem:[%s263 + $0x958] sm:$0xff] %v3699
        %4212 = vst [vmem:[%s263 + $0x960] sm:$0xff] %v3700
        %4213 = vst [vmem:[%s263 + $0x968] sm:$0xff] %v3701
        %4214 = vst [vmem:[%s263 + $0x970] sm:$0xff] %v3702
        %4215 = vst [vmem:[%s263 + $0x978] sm:$0xff] %v3703
        %4216 = vst [vmem:[%s263 + $0x980] sm:$0xff] %v3704
        %4217 = vst [vmem:[%s263 + $0x988] sm:$0xff] %v3705
        %4218 = vst [vmem:[%s263 + $0x990] sm:$0xff] %v3706
        %4219 = vst [vmem:[%s263 + $0x998] sm:$0xff] %v3707
        %4220 = vst [vmem:[%s263 + $0x9a0] sm:$0xff] %v3708
        %4221 = vst [vmem:[%s263 + $0x9a8] sm:$0xff] %v3709
        %4222 = vst [vmem:[%s263 + $0x9b0] sm:$0xff] %v3710
        %4223 = vst [vmem:[%s263 + $0x9b8] sm:$0xff] %v3711
        %4224 = vst [vmem:[%s263 + $0x9c0] sm:$0xff] %v3712
        %4225 = vst [vmem:[%s263 + $0x9c8] sm:$0xff] %v3713
        %4226 = vst [vmem:[%s263 + $0x9d0] sm:$0xff] %v3714
        %4227 = vst [vmem:[%s263 + $0x9d8] sm:$0xff] %v3715
        %4228 = vst [vmem:[%s263 + $0x9e0] sm:$0xff] %v3716
        %4229 = vst [vmem:[%s263 + $0x9e8] sm:$0xff] %v3717
        %4230 = vst [vmem:[%s263 + $0x9f0] sm:$0xff] %v3718
        %4231 = vst [vmem:[%s263 + $0x9f8] sm:$0xff] %v3719
        %4232 = vst [vmem:[%s263 + $0xa00] sm:$0xff] %v3720
        %4233 = vst [vmem:[%s263 + $0xa08] sm:$0xff] %v3721
        %4234 = vst [vmem:[%s263 + $0xa10] sm:$0xff] %v3722
        %4235 = vst [vmem:[%s263 + $0xa18] sm:$0xff] %v3723
        %4236 = vst [vmem:[%s263 + $0xa20] sm:$0xff] %v3724
        %4237 = vst [vmem:[%s263 + $0xa28] sm:$0xff] %v3725
        %4238 = vst [vmem:[%s263 + $0xa30] sm:$0xff] %v3726
        %4239 = vst [vmem:[%s263 + $0xa38] sm:$0xff] %v3727
        %4240 = vst [vmem:[%s263 + $0xa40] sm:$0xff] %v3728
        %4241 = vst [vmem:[%s263 + $0xa48] sm:$0xff] %v3729
        %4242 = vst [vmem:[%s263 + $0xa50] sm:$0xff] %v3730
        %4243 = vst [vmem:[%s263 + $0xa58] sm:$0xff] %v3731
        %4244 = vst [vmem:[%s263 + $0xa60] sm:$0xff] %v3732
        %4245 = vst [vmem:[%s263 + $0xa68] sm:$0xff] %v3733
        %4246 = vst [vmem:[%s263 + $0xa70] sm:$0xff] %v3734
        %4247 = vst [vmem:[%s263 + $0xa78] sm:$0xff] %v3735
        %4248 = vst [vmem:[%s263 + $0xa80] sm:$0xff] %v3736
        %4249 = vst [vmem:[%s263 + $0xa88] sm:$0xff] %v3737
        %4250 = vst [vmem:[%s263 + $0xa90] sm:$0xff] %v3738
        %4251 = vst [vmem:[%s263 + $0xa98] sm:$0xff] %v3739
        %4252 = vst [vmem:[%s263 + $0xaa0] sm:$0xff] %v3740
        %4253 = vst [vmem:[%s263 + $0xaa8] sm:$0xff] %v3741
        %4254 = vst [vmem:[%s263 + $0xab0] sm:$0xff] %v3742
        %4255 = vst [vmem:[%s263 + $0xab8] sm:$0xff] %v3743
        %4256 = vst [vmem:[%s263 + $0xac0] sm:$0xff] %v3744
        %4257 = vst [vmem:[%s263 + $0xac8] sm:$0xff] %v3745
        %4258 = vst [vmem:[%s263 + $0xad0] sm:$0xff] %v3746
        %4259 = vst [vmem:[%s263 + $0xad8] sm:$0xff] %v3747
        %4260 = vst [vmem:[%s263 + $0xae0] sm:$0xff] %v3748
        %4261 = vst [vmem:[%s263 + $0xae8] sm:$0xff] %v3749
        %4262 = vst [vmem:[%s263 + $0xaf0] sm:$0xff] %v3750
        %4263 = vst [vmem:[%s263 + $0xaf8] sm:$0xff] %v3751
        %4264 = vst [vmem:[%s263 + $0xb00] sm:$0xff] %v3752
        %4265 = vst [vmem:[%s263 + $0xb08] sm:$0xff] %v3753
        %4266 = vst [vmem:[%s263 + $0xb10] sm:$0xff] %v3754
        %4267 = vst [vmem:[%s263 + $0xb18] sm:$0xff] %v3755
        %4268 = vst [vmem:[%s263 + $0xb20] sm:$0xff] %v3756
        %4269 = vst [vmem:[%s263 + $0xb28] sm:$0xff] %v3757
        %4270 = vst [vmem:[%s263 + $0xb30] sm:$0xff] %v3758
        %4271 = vst [vmem:[%s263 + $0xb38] sm:$0xff] %v3759
        %4272 = vst [vmem:[%s263 + $0xb40] sm:$0xff] %v3760
        %4273 = vst [vmem:[%s263 + $0xb48] sm:$0xff] %v3761
        %4274 = vst [vmem:[%s263 + $0xb50] sm:$0xff] %v3762
        %4275 = vst [vmem:[%s263 + $0xb58] sm:$0xff] %v3763
        %4276 = vst [vmem:[%s263 + $0xb60] sm:$0xff] %v3764
        %4277 = vst [vmem:[%s263 + $0xb68] sm:$0xff] %v3765
        %4278 = vst [vmem:[%s263 + $0xb70] sm:$0xff] %v3766
        %4279 = vst [vmem:[%s263 + $0xb78] sm:$0xff] %v3767
        %4280 = vst [vmem:[%s263 + $0xb80] sm:$0xff] %v3768
        %4281 = vst [vmem:[%s263 + $0xb88] sm:$0xff] %v3769
        %4282 = vst [vmem:[%s263 + $0xb90] sm:$0xff] %v3770
        %4283 = vst [vmem:[%s263 + $0xb98] sm:$0xff] %v3771
        %4284 = vst [vmem:[%s263 + $0xba0] sm:$0xff] %v3772
        %4285 = vst [vmem:[%s263 + $0xba8] sm:$0xff] %v3773
        %4286 = vst [vmem:[%s263 + $0xbb0] sm:$0xff] %v3774
        %4287 = vst [vmem:[%s263 + $0xbb8] sm:$0xff] %v3775
        %4288 = vst [vmem:[%s263 + $0xbc0] sm:$0xff] %v3776
        %4289 = vst [vmem:[%s263 + $0xbc8] sm:$0xff] %v3777
        %4290 = vst [vmem:[%s263 + $0xbd0] sm:$0xff] %v3778
        %4291 = vst [vmem:[%s263 + $0xbd8] sm:$0xff] %v3779
        %4292 = vst [vmem:[%s263 + $0xbe0] sm:$0xff] %v3780
        %4293 = vst [vmem:[%s263 + $0xbe8] sm:$0xff] %v3781
        %4294 = vst [vmem:[%s263 + $0xbf0] sm:$0xff] %v3782
        %4295 = vst [vmem:[%s263 + $0xbf8] sm:$0xff] %v3783
        %4296 = vst [vmem:[%s263 + $0xc00] sm:$0xff] %v3784
        %4297 = vst [vmem:[%s263 + $0xc08] sm:$0xff] %v3785
        %4298 = vst [vmem:[%s263 + $0xc10] sm:$0xff] %v3786
        %4299 = vst [vmem:[%s263 + $0xc18] sm:$0xff] %v3787
        %4300 = vst [vmem:[%s263 + $0xc20] sm:$0xff] %v3788
        %4301 = vst [vmem:[%s263 + $0xc28] sm:$0xff] %v3789
        %4302 = vst [vmem:[%s263 + $0xc30] sm:$0xff] %v3790
        %4303 = vst [vmem:[%s263 + $0xc38] sm:$0xff] %v3791
        %4304 = vst [vmem:[%s263 + $0xc40] sm:$0xff] %v3792
        %4305 = vst [vmem:[%s263 + $0xc48] sm:$0xff] %v3793
        %4306 = vst [vmem:[%s263 + $0xc50] sm:$0xff] %v3794
        %4307 = vst [vmem:[%s263 + $0xc58] sm:$0xff] %v3795
        %4308 = vst [vmem:[%s263 + $0xc60] sm:$0xff] %v3796
        %4309 = vst [vmem:[%s263 + $0xc68] sm:$0xff] %v3797
        %4310 = vst [vmem:[%s263 + $0xc70] sm:$0xff] %v3798
        %4311 = vst [vmem:[%s263 + $0xc78] sm:$0xff] %v3799
        %4312 = vst [vmem:[%s263 + $0xc80] sm:$0xff] %v3800
        %4313 = vst [vmem:[%s263 + $0xc88] sm:$0xff] %v3801
        %4314 = vst [vmem:[%s263 + $0xc90] sm:$0xff] %v3802
        %4315 = vst [vmem:[%s263 + $0xc98] sm:$0xff] %v3803
        %4316 = vst [vmem:[%s263 + $0xca0] sm:$0xff] %v3804
        %4317 = vst [vmem:[%s263 + $0xca8] sm:$0xff] %v3805
        %4318 = vst [vmem:[%s263 + $0xcb0] sm:$0xff] %v3806
        %4319 = vst [vmem:[%s263 + $0xcb8] sm:$0xff] %v3807
        %4320 = vst [vmem:[%s263 + $0xcc0] sm:$0xff] %v3808
        %4321 = vst [vmem:[%s263 + $0xcc8] sm:$0xff] %v3809
        %4322 = vst [vmem:[%s263 + $0xcd0] sm:$0xff] %v3810
        %4323 = vst [vmem:[%s263 + $0xcd8] sm:$0xff] %v3811
        %4324 = vst [vmem:[%s263 + $0xce0] sm:$0xff] %v3812
        %4325 = vst [vmem:[%s263 + $0xce8] sm:$0xff] %v3813
        %4326 = vst [vmem:[%s263 + $0xcf0] sm:$0xff] %v3814
        %4327 = vst [vmem:[%s263 + $0xcf8] sm:$0xff] %v3815
        %4328 = vst [vmem:[%s263 + $0xd00] sm:$0xff] %v3816
        %4329 = vst [vmem:[%s263 + $0xd08] sm:$0xff] %v3817
        %4330 = vst [vmem:[%s263 + $0xd10] sm:$0xff] %v3818
        %4331 = vst [vmem:[%s263 + $0xd18] sm:$0xff] %v3819
        %4332 = vst [vmem:[%s263 + $0xd20] sm:$0xff] %v3820
        %4333 = vst [vmem:[%s263 + $0xd28] sm:$0xff] %v3821
        %4334 = vst [vmem:[%s263 + $0xd30] sm:$0xff] %v3822
        %4335 = vst [vmem:[%s263 + $0xd38] sm:$0xff] %v3823
        %4336 = vst [vmem:[%s263 + $0xd40] sm:$0xff] %v3824
        %4337 = vst [vmem:[%s263 + $0xd48] sm:$0xff] %v3825
        %4338 = vst [vmem:[%s263 + $0xd50] sm:$0xff] %v3826
        %4339 = vst [vmem:[%s263 + $0xd58] sm:$0xff] %v3827
        %4340 = vst [vmem:[%s263 + $0xd60] sm:$0xff] %v3828
        %4341 = vst [vmem:[%s263 + $0xd68] sm:$0xff] %v3829
        %4342 = vst [vmem:[%s263 + $0xd70] sm:$0xff] %v3830
        %4343 = vst [vmem:[%s263 + $0xd78] sm:$0xff] %v3831
        %4344 = vst [vmem:[%s263 + $0xd80] sm:$0xff] %v3832
        %4345 = vst [vmem:[%s263 + $0xd88] sm:$0xff] %v3833
        %4346 = vst [vmem:[%s263 + $0xd90] sm:$0xff] %v3834
        %4347 = vst [vmem:[%s263 + $0xd98] sm:$0xff] %v3835
        %4348 = vst [vmem:[%s263 + $0xda0] sm:$0xff] %v3836
        %4349 = vst [vmem:[%s263 + $0xda8] sm:$0xff] %v3837
        %4350 = vst [vmem:[%s263 + $0xdb0] sm:$0xff] %v3838
        %4351 = vst [vmem:[%s263 + $0xdb8] sm:$0xff] %v3839
        %4352 = vst [vmem:[%s263 + $0xdc0] sm:$0xff] %v3840
        %4353 = vst [vmem:[%s263 + $0xdc8] sm:$0xff] %v3841
        %4354 = vst [vmem:[%s263 + $0xdd0] sm:$0xff] %v3842
        %4355 = vst [vmem:[%s263 + $0xdd8] sm:$0xff] %v3843
        %4356 = vst [vmem:[%s263 + $0xde0] sm:$0xff] %v3844
        %4357 = vst [vmem:[%s263 + $0xde8] sm:$0xff] %v3845
        %4358 = vst [vmem:[%s263 + $0xdf0] sm:$0xff] %v3846
        %4359 = vst [vmem:[%s263 + $0xdf8] sm:$0xff] %v3847
        %4360 = vst [vmem:[%s263 + $0xe00] sm:$0xff] %v3848
        %4361 = vst [vmem:[%s263 + $0xe08] sm:$0xff] %v3849
        %4362 = vst [vmem:[%s263 + $0xe10] sm:$0xff] %v3850
        %4363 = vst [vmem:[%s263 + $0xe18] sm:$0xff] %v3851
        %4364 = vst [vmem:[%s263 + $0xe20] sm:$0xff] %v3852
        %4365 = vst [vmem:[%s263 + $0xe28] sm:$0xff] %v3853
        %4366 = vst [vmem:[%s263 + $0xe30] sm:$0xff] %v3854
        %4367 = vst [vmem:[%s263 + $0xe38] sm:$0xff] %v3855
        %4368 = vst [vmem:[%s263 + $0xe40] sm:$0xff] %v3856
        %4369 = vst [vmem:[%s263 + $0xe48] sm:$0xff] %v3857
        %4370 = vst [vmem:[%s263 + $0xe50] sm:$0xff] %v3858
        %4371 = vst [vmem:[%s263 + $0xe58] sm:$0xff] %v3859
        %4372 = vst [vmem:[%s263 + $0xe60] sm:$0xff] %v3860
        %4373 = vst [vmem:[%s263 + $0xe68] sm:$0xff] %v3861
        %4374 = vst [vmem:[%s263 + $0xe70] sm:$0xff] %v3862
        %4375 = vst [vmem:[%s263 + $0xe78] sm:$0xff] %v3863
        %4376 = vst [vmem:[%s263 + $0xe80] sm:$0xff] %v3864
        %4377 = vst [vmem:[%s263 + $0xe88] sm:$0xff] %v3865
        %4378 = vst [vmem:[%s263 + $0xe90] sm:$0xff] %v3866
        %4379 = vst [vmem:[%s263 + $0xe98] sm:$0xff] %v3867
        %4380 = vst [vmem:[%s263 + $0xea0] sm:$0xff] %v3868
        %4381 = vst [vmem:[%s263 + $0xea8] sm:$0xff] %v3869
        %4382 = vst [vmem:[%s263 + $0xeb0] sm:$0xff] %v3870
        %4383 = vst [vmem:[%s263 + $0xeb8] sm:$0xff] %v3871
        %4384 = vst [vmem:[%s263 + $0xec0] sm:$0xff] %v3872
        %4385 = vst [vmem:[%s263 + $0xec8] sm:$0xff] %v3873
        %4386 = vst [vmem:[%s263 + $0xed0] sm:$0xff] %v3874
        %4387 = vst [vmem:[%s263 + $0xed8] sm:$0xff] %v3875
        %4388 = vst [vmem:[%s263 + $0xee0] sm:$0xff] %v3876
        %4389 = vst [vmem:[%s263 + $0xee8] sm:$0xff] %v3877
        %4390 = vst [vmem:[%s263 + $0xef0] sm:$0xff] %v3878
        %4391 = vst [vmem:[%s263 + $0xef8] sm:$0xff] %v3879
        %4392 = vst [vmem:[%s263 + $0xf00] sm:$0xff] %v3880
        %4393 = vst [vmem:[%s263 + $0xf08] sm:$0xff] %v3881
        %4394 = vst [vmem:[%s263 + $0xf10] sm:$0xff] %v3882
        %4395 = vst [vmem:[%s263 + $0xf18] sm:$0xff] %v3883
        %4396 = vst [vmem:[%s263 + $0xf20] sm:$0xff] %v3884
        %4397 = vst [vmem:[%s263 + $0xf28] sm:$0xff] %v3885
        %4398 = vst [vmem:[%s263 + $0xf30] sm:$0xff] %v3886
        %4399 = vst [vmem:[%s263 + $0xf38] sm:$0xff] %v3887
        %4400 = vst [vmem:[%s263 + $0xf40] sm:$0xff] %v3888
        %4401 = vst [vmem:[%s263 + $0xf48] sm:$0xff] %v3889
        %4402 = vst [vmem:[%s263 + $0xf50] sm:$0xff] %v3890
        %4403 = vst [vmem:[%s263 + $0xf58] sm:$0xff] %v3891
        %4404 = vst [vmem:[%s263 + $0xf60] sm:$0xff] %v3892
        %4405 = vst [vmem:[%s263 + $0xf68] sm:$0xff] %v3893
        %4406 = vst [vmem:[%s263 + $0xf70] sm:$0xff] %v3894
        %4407 = vst [vmem:[%s263 + $0xf78] sm:$0xff] %v3895
        %4408 = vst [vmem:[%s263 + $0xf80] sm:$0xff] %v3896
        %4409 = vst [vmem:[%s263 + $0xf88] sm:$0xff] %v3897
        %4410 = vst [vmem:[%s263 + $0xf90] sm:$0xff] %v3898
        %4411 = vst [vmem:[%s263 + $0xf98] sm:$0xff] %v3899
        %4412 = vst [vmem:[%s263 + $0xfa0] sm:$0xff] %v3900
        %4413 = vst [vmem:[%s263 + $0xfa8] sm:$0xff] %v3901
        %4414 = vst [vmem:[%s263 + $0xfb0] sm:$0xff] %v3902
        %4415 = vst [vmem:[%s263 + $0xfb8] sm:$0xff] %v3903
        %4416 = vst [vmem:[%s263 + $0xfc0] sm:$0xff] %v3904
        %4417 = vst [vmem:[%s263 + $0xfc8] sm:$0xff] %v3905
        %4418 = vst [vmem:[%s263 + $0xfd0] sm:$0xff] %v3906
        %4419 = vst [vmem:[%s263 + $0xfd8] sm:$0xff] %v3907
        %4420 = vst [vmem:[%s263 + $0xfe0] sm:$0xff] %v3908
        %4421 = vst [vmem:[%s263 + $0xfe8] sm:$0xff] %v3909
        %4422 = vst [vmem:[%s263 + $0xff0] sm:$0xff] %v3910
        %4423 = vst [vmem:[%s263 + $0xff8] sm:$0xff] %v3911
        %s4424 = sand.u32 %s140, 1
        %s4425 = scalar_lea.sflag [#allocation4], %s4424
        %s4426 = sand.u32 %s140, 1
        %s4427 = smul.addr %s4426, 4096
        %s4428 = scalar_lea.vmem [#allocation7], %s4427
        // Predicated region
        $region45: #{tpu_custom_call.1} parent=35 // pred_check
          %p4429 = pneg %p150
        $region46: #{tpu_custom_call.1} parent=35 // pred_check_branch
          %4431 = sbr.rel (%p4429) target = $region48
        $region47: #{tpu_custom_call.1} parent=35 // pred_region
          %s4432 = smul.u32 128, %s27
          %s4434 = ssub.s32 65536, 65536
          %4435 = vsyncadd %s4425, %s4434
          %s4436 = smul.addr %s26, 512
          %s4437 = sadd.s32 %s4432, %s4436
          %s4438 = smul.addr %s4437, 128
          %s4439 = scalar_lea.hbm %s4, %s4438
          %s4440 = sshll.u32 %s4428, 4
          %s4441 = int_to_ptr.vmem [resolvable:$true] %s4440
          %4446 = dma.vmem_to_hbm [thread:$0]  %s4441, 65536, %s4439, %s4425, 16384, 16384, 1024
        $region48: #{tpu_custom_call.1} parent=35 // pred_fallthru
          _
      $region36: #{tpu_custom_call.1} parent=5 // pred_fallthru
        _
      %p4447 = scmp.le.s32.totalorder 2, %s17
      // Predicated region
      $region49: #{tpu_custom_call.1} parent=5 // pred_check
        %p4448 = pneg %p4447
      $region50: #{tpu_custom_call.1} parent=5 // pred_check_branch
        %4450 = sbr.rel (%p4448) target = $region52
      $region51: #{tpu_custom_call.1} parent=5 // pred_region
        %s4451 = ssub.s32 %s17, 2
        // Predicated region
        $region53: #{tpu_custom_call.1} parent=51 // pred_check
          %p4452 = pneg %p156
        $region54: #{tpu_custom_call.1} parent=51 // pred_check_branch
          %4454 = sbr.rel (%p4452) target = $region56
        $region55: #{tpu_custom_call.1} parent=51 // pred_region
          %s4455 = sand.u32 %s141, 1
          %s4456 = scalar_lea.sflag [#allocation4], %s4455
          %s4457 = sand.u32 %s141, 1
          %s4458 = smul.addr %s4457, 4096
          %s4459 = scalar_lea.vmem [#allocation7], %s4458
          %4460 = dma.done %s4456, 65536
        $region56: #{tpu_custom_call.1} parent=51 // pred_fallthru
          _
      $region52: #{tpu_custom_call.1} parent=5 // pred_fallthru
        _
    $region6: #{tpu_custom_call.1} parent=1 // loop_footer
      %s21 = sadd.s32 1, %s17
    $region7: #{tpu_custom_call.1} parent=1 // loop_footer_branch
      %16 = sbr.rel target = $region3
    $region8: #{tpu_custom_call.1} parent=1 // loop_exit
      _
    %4461 = vsyncpa [#allocation3], 1
    %s4462 = scalar_lea.sflag [#allocation3], 1
    %4463 = vsyncpa %s4462, 1
    %4464 = vsyncpa [#allocation6], 1
    %s4465 = scalar_lea.sflag [#allocation6], 1
    %4466 = vsyncpa %s4465, 1
    %4467 = vsyncpa [#allocation4], 1
    %s4468 = scalar_lea.sflag [#allocation4], 1
    %4469 = vsyncpa %s4468, 1

</llo_original>
